<compile_context>
chip_gen: v5e
topology: v5e:2x2
jax: 0.10.0
libtpu: 0.0.40
codegen_flags: <defaults>
</compile_context>

<pallas_src>
import jax
import jax.numpy as jnp
from jax import lax
from jax.experimental import pallas as pl
from jax.experimental.pallas import tpu as pltpu

L = 1024          # sequence length fed to conv1d (must be even; real model: 714000)
Lp = L // 2       # length after MaxPool1d(kernel=2, stride=2)
C_OUT = 8         # conv1d out_channels
HIDDEN = 256      # fc1 out_features
N_CLASSES = 2     # fc2 out_features
EPS = 1e-5        # BatchNorm1d default eps


def fused_cnn_kernel(aff_ref, xe_ref, xo_ref, xom1_ref, xep1_ref,
                     w1_ref, b1_ref, w2_ref, b2_ref, o_ref, acc_ref):
    """Grid = (batch_tile i, k_block k); reduction axis k is last.

    aff_ref : (4, 8)   f32 SMEM -- rows 0..2: BN-folded conv taps, row 3: shift
    xe_ref  : (TB, TK) f32      -- x[2l]   for this (i, k) block
    xo_ref  : (TB, TK) f32      -- x[2l+1]
    xom1_ref: (TB, TK) f32      -- x[2l-1] (0 at global l == 0)
    xep1_ref: (TB, TK) f32      -- x[2l+2] (0 at global l == Lp-1)
    w1_ref  : (8, TK, HIDDEN) bf16 -- fc1 weight, channel-major k-block
    b1_ref  : (1, HIDDEN) f32
    w2_ref  : (HIDDEN, 2) f32
    b2_ref  : (1, 2) f32
    o_ref   : (TB, 2) f32
    acc_ref : (TB, HIDDEN) f32 VMEM scratch (fc1 accumulator across k)
    """
    k = pl.program_id(1)
    nk = pl.num_programs(1)

    @pl.when(k == 0)
    def _():
        acc_ref[...] = jnp.zeros_like(acc_ref)

    xe = xe_ref[...]
    xo = xo_ref[...]
    xom1 = xom1_ref[...]
    xep1 = xep1_ref[...]

    acc = acc_ref[...]
    for c in range(C_OUT):            # unrolled; VPU conv work hides under MXU
        a0 = aff_ref[0, c]            # scalar taps from SMEM (no lane broadcasts)
        a1 = aff_ref[1, c]
        a2 = aff_ref[2, c]
        dd = aff_ref[3, c]
        # Dense (TB, TK) conv at even/odd output phases, BN + bias folded in.
        y_even = a0 * xom1 + a1 * xe + a2 * xo + dd
        y_odd = a0 * xe + a1 * xo + a2 * xep1 + dd
        # relu(maxpool) == max(relu(even), relu(odd))
        pooled = jnp.maximum(jnp.maximum(y_even, y_odd), 0.0)
        # fc1 partial: full-height (TB, TK) x (TK, 256) bf16 MXU matmul.
        acc = acc + jnp.dot(pooled.astype(jnp.bfloat16), w1_ref[c],
                            preferred_element_type=jnp.float32)
    acc_ref[...] = acc

    @pl.when(k == nk - 1)
    def _():
        # TODO(synk): nn.Dropout(p=0.5) is identity in eval mode; train-mode RNG
        # mask (pltpu.prng_random_bits) intentionally not applied here.
        h = jnp.maximum(acc + b1_ref[...], 0.0)                     # (TB, HIDDEN)
        o_ref[...] = (jnp.dot(h, w2_ref[...],
                              preferred_element_type=jnp.float32) + b2_ref[...])


def cnn_classifier_forward(x, params, *, tb=None, tk=256):
    # x.view(-1, 1, L)
    xb = x.reshape(-1, L).astype(jnp.float32)
    b = xb.shape[0]

    # Batch tiling: fold small batches into ONE grid step (padded to a sublane
    # multiple); cap at 128 rows (use 256 on v6e/v7x if batches are that big).
    bp8 = ((b + 7) // 8) * 8
    if tb is None:
        tb = min(128, bp8)
    bp = ((bp8 + tb - 1) // tb) * tb
    xb = jnp.pad(xb, ((0, bp - b), (0, 0)))

    assert Lp % tk == 0 and tk % 128 == 0
    nb, nk = bp // tb, Lp // tk

    # Fold conv bias + BatchNorm1d (eval running stats) into 3 taps + shift.
    scale = params["bn_gamma"] / jnp.sqrt(params["bn_var"] + EPS)          # (8,)
    taps = params["conv_w"][:, 0, :] * scale[:, None]                      # (8, 3)
    shift = scale * (params["conv_b"] - params["bn_mean"]) + params["bn_beta"]
    affine = jnp.concatenate([taps.T, shift[None, :]], axis=0)             # (4, 8)
    affine = affine.astype(jnp.float32)

    # Even/odd phase split + global +-1 shifts done ONCE in the wrapper so the
    # in-kernel k-blocks need no halo exchange and stay (8,128)-aligned.
    xe = xb[:, 0::2]                                                       # (bp, Lp)
    xo = xb[:, 1::2]
    zcol = jnp.zeros((bp, 1), jnp.float32)
    xom1 = jnp.concatenate([zcol, xo[:, :-1]], axis=1)                     # x[2l-1]
    xep1 = jnp.concatenate([xe[:, 1:], zcol], axis=1)                      # x[2l+2]

    # fc1 weight: (HIDDEN, 8*Lp) -> (8, Lp, HIDDEN), streamed as bf16 k-blocks.
    # TODO(synk): on v7x consider fp8 weights (per-channel scales) to halve the
    # HBM-bound w1 stream at the real L=714000.
    w1r = jnp.transpose(params["fc1_w"].reshape(HIDDEN, C_OUT, Lp),
                        (1, 2, 0)).astype(jnp.bfloat16)
    b1 = params["fc1_b"].reshape(1, HIDDEN).astype(jnp.float32)
    w2 = params["fc2_w"].T.astype(jnp.float32)                             # (256, 2)
    b2 = params["fc2_b"].reshape(1, N_CLASSES).astype(jnp.float32)

    flops = (2 * bp * C_OUT * Lp * HIDDEN            # fc1
             + 2 * bp * HIDDEN * N_CLASSES           # fc2
             + 14 * bp * C_OUT * Lp)                 # conv + pool + relu
    bytes_accessed = (nb * C_OUT * Lp * HIDDEN * 2   # w1 stream (per batch tile)
                      + 4 * bp * Lp * 4              # xe/xo/xom1/xep1
                      + bp * N_CLASSES * 4)

    act_spec = pl.BlockSpec((tb, tk), lambda i, k: (i, k))

    out = pl.pallas_call(
        fused_cnn_kernel,
        out_shape=jax.ShapeDtypeStruct((bp, N_CLASSES), jnp.float32),
        grid=(nb, nk),
        in_specs=[
            pl.BlockSpec(memory_space=pltpu.MemorySpace.SMEM),             # affine
            act_spec,                                                      # xe
            act_spec,                                                      # xo
            act_spec,                                                      # xom1
            act_spec,                                                      # xep1
            pl.BlockSpec((C_OUT, tk, HIDDEN), lambda i, k: (0, k, 0)),     # w1 block
            pl.BlockSpec((1, HIDDEN), lambda i, k: (0, 0)),                # b1
            pl.BlockSpec((HIDDEN, N_CLASSES), lambda i, k: (0, 0)),        # w2
            pl.BlockSpec((1, N_CLASSES), lambda i, k: (0, 0)),             # b2
        ],
        out_specs=pl.BlockSpec((tb, N_CLASSES), lambda i, k: (i, 0)),
        scratch_shapes=[pltpu.VMEM((tb, HIDDEN), jnp.float32)],
        compiler_params=pltpu.CompilerParams(
            dimension_semantics=("parallel", "arbitrary")),
        cost_estimate=pl.CostEstimate(flops=int(flops), transcendentals=0,
                                      bytes_accessed=int(bytes_accessed)),
    )(affine, xe, xo, xom1, xep1, w1r, b1, w2, b2)
    return out[:b]


def reference_forward(x, params):
    """Pure-JAX f32 reference with the same (eval-mode) semantics."""
    x2 = x.reshape(-1, L).astype(jnp.float32)
    xpad = jnp.pad(x2, ((0, 0), (1, 1)))
    w = params["conv_w"][:, 0, :]  # (8, 3)
    conv = (w[None, :, 0, None] * xpad[:, None, 0:L]
            + w[None, :, 1, None] * xpad[:, None, 1:L + 1]
            + w[None, :, 2, None] * xpad[:, None, 2:L + 2]
            + params["conv_b"][None, :, None])                               # (B,8,L)
    bn = ((conv - params["bn_mean"][None, :, None])
          / jnp.sqrt(params["bn_var"][None, :, None] + EPS)
          * params["bn_gamma"][None, :, None] + params["bn_beta"][None, :, None])
    r = jnp.maximum(bn, 0.0)
    pooled = r.reshape(x2.shape[0], C_OUT, Lp, 2).max(axis=-1)               # (B,8,Lp)
    flat = pooled.reshape(x2.shape[0], C_OUT * Lp)
    h = jnp.maximum(
        jnp.dot(flat, params["fc1_w"].T, precision=lax.Precision.HIGHEST)
        + params["fc1_b"], 0.0)
    return (jnp.dot(h, params["fc2_w"].T, precision=lax.Precision.HIGHEST)
            + params["fc2_b"])


if __name__ == "__main__":
    key = jax.random.PRNGKey(0)
    ks = jax.random.split(key, 11)
    B = 2
    D = C_OUT * Lp

    params = {
        "conv_w": jax.random.normal(ks[0], (C_OUT, 1, 3), jnp.float32) * 0.5,
        "conv_b": jax.random.normal(ks[1], (C_OUT,), jnp.float32) * 0.1,
        "bn_gamma": 1.0 + 0.1 * jax.random.normal(ks[2], (C_OUT,), jnp.float32),
        "bn_beta": 0.1 * jax.random.normal(ks[3], (C_OUT,), jnp.float32),
        "bn_mean": 0.1 * jax.random.normal(ks[4], (C_OUT,), jnp.float32),
        "bn_var": 1.0 + 0.1 * jax.random.uniform(ks[5], (C_OUT,), jnp.float32),
        "fc1_w": jax.random.normal(ks[6], (HIDDEN, D), jnp.float32) * 0.01,
        "fc1_b": jax.random.normal(ks[7], (HIDDEN,), jnp.float32) * 0.01,
        "fc2_w": jax.random.normal(ks[8], (N_CLASSES, HIDDEN), jnp.float32) * 0.1,
        "fc2_b": jax.random.normal(ks[9], (N_CLASSES,), jnp.float32) * 0.1,
    }
    x = jax.random.normal(ks[10], (B, L), jnp.float32)

    out = jax.block_until_ready(cnn_classifier_forward(x, params))
    ref = jax.block_until_ready(reference_forward(x, params))

    assert out.shape == (B, N_CLASSES), out.shape
    # Tolerance widened vs. the pure-f32 reference because fc1 weights and the
    # pooled activation are deliberately quantised to bf16 on the MXU path
    # (~0.3% relative error on O(0.5) logits); real bugs would be O(0.1-1).
    if not bool(jnp.allclose(out, ref, rtol=2e-2, atol=2e-2)):
        raise AssertionError(f"mismatch: pallas={out} ref={ref}")
    print("KERNEL_OK")
</pallas_src>

<mosaic_0001>
module attributes {stable_mosaic.version = 11 : i64} {
  func.func @fused_cnn_kernel(%arg0: i32, %arg1: i32, %arg2: memref<4x8xf32, #tpu.memory_space<smem>>, %arg3: memref<8x256xf32, #tpu.memory_space<vmem>>, %arg4: memref<8x256xf32, #tpu.memory_space<vmem>>, %arg5: memref<8x256xf32, #tpu.memory_space<vmem>>, %arg6: memref<8x256xf32, #tpu.memory_space<vmem>>, %arg7: memref<8x256x256xbf16, #tpu.memory_space<vmem>>, %arg8: memref<1x256xf32, #tpu.memory_space<vmem>>, %arg9: memref<256x2xf32, #tpu.memory_space<vmem>>, %arg10: memref<1x2xf32, #tpu.memory_space<vmem>>, %arg11: memref<8x2xf32, #tpu.memory_space<vmem>>, %arg12: memref<8x256xf32, #tpu.memory_space<vmem>>) attributes {dimension_semantics = [#tpu.dimension_semantics<parallel>, #tpu.dimension_semantics<arbitrary>], iteration_bounds = array<i64: 1, 2>, scalar_prefetch = 0 : i64, scratch_operands = 1 : i64, tpu.core_type = #tpu.core_type<tc>, window_params = [{transform_indices = @transform_0, window_bounds = array<i64: 4, 8>}, {transform_indices = @transform_1, window_bounds = array<i64: 8, 256>}, {transform_indices = @transform_2, window_bounds = array<i64: 8, 256>}, {transform_indices = @transform_3, window_bounds = array<i64: 8, 256>}, {transform_indices = @transform_4, window_bounds = array<i64: 8, 256>}, {transform_indices = @transform_5, window_bounds = array<i64: 8, 256, 256>}, {pipeline_mode = #tpu.pipeline_mode<synchronous>, transform_indices = @transform_6, window_bounds = array<i64: 1, 256>}, {pipeline_mode = #tpu.pipeline_mode<synchronous>, transform_indices = @transform_7, window_bounds = array<i64: 256, 2>}, {pipeline_mode = #tpu.pipeline_mode<synchronous>, transform_indices = @transform_8, window_bounds = array<i64: 1, 2>}, {transform_indices = @transform_9, window_bounds = array<i64: 8, 2>}]} {
    %c0_i32 = arith.constant 0 : i32
    %0 = arith.cmpi eq, %arg1, %c0_i32 : i32
    %1 = arith.extui %0 : i1 to i32
    %c0_i32_0 = arith.constant 0 : i32
    %2 = arith.cmpi ne, %1, %c0_i32_0 : i32
    scf.if %2 {
      %cst_109 = arith.constant 0.000000e+00 : f32
      %268 = vector.broadcast %cst_109 : f32 to vector<8x256xf32>
      %c0_110 = arith.constant 0 : index
      %c0_111 = arith.constant 0 : index
      %269 = vector.load %arg12[%c0_110, %c0_111] : memref<8x256xf32, #tpu.memory_space<vmem>>, vector<8x256xf32>
      tpu.vector_store %arg12[%c0_110, %c0_111], %268 {strides = array<i32>} : memref<8x256xf32, #tpu.memory_space<vmem>>, vector<8x256xf32>,
    } else {
    }
    %c0 = arith.constant 0 : index
    %c0_1 = arith.constant 0 : index
    %3 = vector.load %arg3[%c0, %c0_1] : memref<8x256xf32, #tpu.memory_space<vmem>>, vector<8x256xf32>
    %c0_2 = arith.constant 0 : index
    %c0_3 = arith.constant 0 : index
    %4 = vector.load %arg4[%c0_2, %c0_3] : memref<8x256xf32, #tpu.memory_space<vmem>>, vector<8x256xf32>
    %c0_4 = arith.constant 0 : index
    %c0_5 = arith.constant 0 : index
    %5 = vector.load %arg5[%c0_4, %c0_5] : memref<8x256xf32, #tpu.memory_space<vmem>>, vector<8x256xf32>
    %c0_6 = arith.constant 0 : index
    %c0_7 = arith.constant 0 : index
    %6 = vector.load %arg6[%c0_6, %c0_7] : memref<8x256xf32, #tpu.memory_space<vmem>>, vector<8x256xf32>
    %c0_8 = arith.constant 0 : index
    %c0_9 = arith.constant 0 : index
    %7 = vector.load %arg12[%c0_8, %c0_9] : memref<8x256xf32, #tpu.memory_space<vmem>>, vector<8x256xf32>
    %c0_10 = arith.constant 0 : index
    %c0_11 = arith.constant 0 : index
    %8 = memref.load %arg2[%c0_10, %c0_11] : memref<4x8xf32, #tpu.memory_space<smem>>
    %c1 = arith.constant 1 : index
    %c0_12 = arith.constant 0 : index
    %9 = memref.load %arg2[%c1, %c0_12] : memref<4x8xf32, #tpu.memory_space<smem>>
    %c2 = arith.constant 2 : index
    %c0_13 = arith.constant 0 : index
    %10 = memref.load %arg2[%c2, %c0_13] : memref<4x8xf32, #tpu.memory_space<smem>>
    %c3 = arith.constant 3 : index
    %c0_14 = arith.constant 0 : index
    %11 = memref.load %arg2[%c3, %c0_14] : memref<4x8xf32, #tpu.memory_space<smem>>
    %12 = vector.broadcast %8 : f32 to vector<8x256xf32>
    %13 = arith.mulf %12, %5 : vector<8x256xf32>
    %14 = vector.broadcast %9 : f32 to vector<8x256xf32>
    %15 = arith.mulf %14, %3 : vector<8x256xf32>
    %16 = arith.addf %13, %15 : vector<8x256xf32>
    %17 = vector.broadcast %10 : f32 to vector<8x256xf32>
    %18 = arith.mulf %17, %4 : vector<8x256xf32>
    %19 = arith.addf %16, %18 : vector<8x256xf32>
    %20 = vector.broadcast %11 : f32 to vector<8x256xf32>
    %21 = arith.addf %19, %20 : vector<8x256xf32>
    %22 = vector.broadcast %8 : f32 to vector<8x256xf32>
    %23 = arith.mulf %22, %3 : vector<8x256xf32>
    %24 = vector.broadcast %9 : f32 to vector<8x256xf32>
    %25 = arith.mulf %24, %4 : vector<8x256xf32>
    %26 = arith.addf %23, %25 : vector<8x256xf32>
    %27 = vector.broadcast %10 : f32 to vector<8x256xf32>
    %28 = arith.mulf %27, %6 : vector<8x256xf32>
    %29 = arith.addf %26, %28 : vector<8x256xf32>
    %30 = vector.broadcast %11 : f32 to vector<8x256xf32>
    %31 = arith.addf %29, %30 : vector<8x256xf32>
    %32 = arith.maximumf %21, %31 : vector<8x256xf32>
    %cst = arith.constant 0.000000e+00 : f32
    %33 = vector.broadcast %cst : f32 to vector<8x256xf32>
    %34 = arith.maximumf %32, %33 : vector<8x256xf32>
    %35 = arith.truncf %34 : vector<8x256xf32> to vector<8x256xbf16>
    %c0_15 = arith.constant 0 : index
    %c0_16 = arith.constant 0 : index
    %c0_17 = arith.constant 0 : index
    %36 = vector.load %arg7[%c0_15, %c0_16, %c0_17] : memref<8x256x256xbf16, #tpu.memory_space<vmem>>, vector<1x256x256xbf16>
    %37 = vector.shape_cast %36 : vector<1x256x256xbf16> to vector<256x256xbf16>
    %cst_18 = arith.constant dense<0.000000e+00> : vector<8x256xf32>
    %38 = tpu.matmul %35, %37, %cst_18 {dimension_numbers = #tpu.dot_dimension_numbers<[1], [0], [0], [1], [0, 0, 1, 1], [], []>} : vector<8x256xbf16>, vector<256x256xbf16>, vector<8x256xf32> -> vector<8x256xf32>
    %39 = arith.addf %7, %38 : vector<8x256xf32>
    %c0_19 = arith.constant 0 : index
    %c1_20 = arith.constant 1 : index
    %40 = memref.load %arg2[%c0_19, %c1_20] : memref<4x8xf32, #tpu.memory_space<smem>>
    %c1_21 = arith.constant 1 : index
    %c1_22 = arith.constant 1 : index
    %41 = memref.load %arg2[%c1_21, %c1_22] : memref<4x8xf32, #tpu.memory_space<smem>>
    %c2_23 = arith.constant 2 : index
    %c1_24 = arith.constant 1 : index
    %42 = memref.load %arg2[%c2_23, %c1_24] : memref<4x8xf32, #tpu.memory_space<smem>>
    %c3_25 = arith.constant 3 : index
    %c1_26 = arith.constant 1 : index
    %43 = memref.load %arg2[%c3_25, %c1_26] : memref<4x8xf32, #tpu.memory_space<smem>>
    %44 = vector.broadcast %40 : f32 to vector<8x256xf32>
    %45 = arith.mulf %44, %5 : vector<8x256xf32>
    %46 = vector.broadcast %41 : f32 to vector<8x256xf32>
    %47 = arith.mulf %46, %3 : vector<8x256xf32>
    %48 = arith.addf %45, %47 : vector<8x256xf32>
    %49 = vector.broadcast %42 : f32 to vector<8x256xf32>
    %50 = arith.mulf %49, %4 : vector<8x256xf32>
    %51 = arith.addf %48, %50 : vector<8x256xf32>
    %52 = vector.broadcast %43 : f32 to vector<8x256xf32>
    %53 = arith.addf %51, %52 : vector<8x256xf32>
    %54 = vector.broadcast %40 : f32 to vector<8x256xf32>
    %55 = arith.mulf %54, %3 : vector<8x256xf32>
    %56 = vector.broadcast %41 : f32 to vector<8x256xf32>
    %57 = arith.mulf %56, %4 : vector<8x256xf32>
    %58 = arith.addf %55, %57 : vector<8x256xf32>
    %59 = vector.broadcast %42 : f32 to vector<8x256xf32>
    %60 = arith.mulf %59, %6 : vector<8x256xf32>
    %61 = arith.addf %58, %60 : vector<8x256xf32>
    %62 = vector.broadcast %43 : f32 to vector<8x256xf32>
    %63 = arith.addf %61, %62 : vector<8x256xf32>
    %64 = arith.maximumf %53, %63 : vector<8x256xf32>
    %cst_27 = arith.constant 0.000000e+00 : f32
    %65 = vector.broadcast %cst_27 : f32 to vector<8x256xf32>
    %66 = arith.maximumf %64, %65 : vector<8x256xf32>
    %67 = arith.truncf %66 : vector<8x256xf32> to vector<8x256xbf16>
    %c1_28 = arith.constant 1 : index
    %c0_29 = arith.constant 0 : index
    %c0_30 = arith.constant 0 : index
    %68 = vector.load %arg7[%c1_28, %c0_29, %c0_30] : memref<8x256x256xbf16, #tpu.memory_space<vmem>>, vector<1x256x256xbf16>
    %69 = vector.shape_cast %68 : vector<1x256x256xbf16> to vector<256x256xbf16>
    %cst_31 = arith.constant dense<0.000000e+00> : vector<8x256xf32>
    %70 = tpu.matmul %67, %69, %cst_31 {dimension_numbers = #tpu.dot_dimension_numbers<[1], [0], [0], [1], [0, 0, 1, 1], [], []>} : vector<8x256xbf16>, vector<256x256xbf16>, vector<8x256xf32> -> vector<8x256xf32>
    %71 = arith.addf %39, %70 : vector<8x256xf32>
    %c0_32 = arith.constant 0 : index
    %c2_33 = arith.constant 2 : index
    %72 = memref.load %arg2[%c0_32, %c2_33] : memref<4x8xf32, #tpu.memory_space<smem>>
    %c1_34 = arith.constant 1 : index
    %c2_35 = arith.constant 2 : index
    %73 = memref.load %arg2[%c1_34, %c2_35] : memref<4x8xf32, #tpu.memory_space<smem>>
    %c2_36 = arith.constant 2 : index
    %c2_37 = arith.constant 2 : index
    %74 = memref.load %arg2[%c2_36, %c2_37] : memref<4x8xf32, #tpu.memory_space<smem>>
    %c3_38 = arith.constant 3 : index
    %c2_39 = arith.constant 2 : index
    %75 = memref.load %arg2[%c3_38, %c2_39] : memref<4x8xf32, #tpu.memory_space<smem>>
    %76 = vector.broadcast %72 : f32 to vector<8x256xf32>
    %77 = arith.mulf %76, %5 : vector<8x256xf32>
    %78 = vector.broadcast %73 : f32 to vector<8x256xf32>
    %79 = arith.mulf %78, %3 : vector<8x256xf32>
    %80 = arith.addf %77, %79 : vector<8x256xf32>
    %81 = vector.broadcast %74 : f32 to vector<8x256xf32>
    %82 = arith.mulf %81, %4 : vector<8x256xf32>
    %83 = arith.addf %80, %82 : vector<8x256xf32>
    %84 = vector.broadcast %75 : f32 to vector<8x256xf32>
    %85 = arith.addf %83, %84 : vector<8x256xf32>
    %86 = vector.broadcast %72 : f32 to vector<8x256xf32>
    %87 = arith.mulf %86, %3 : vector<8x256xf32>
    %88 = vector.broadcast %73 : f32 to vector<8x256xf32>
    %89 = arith.mulf %88, %4 : vector<8x256xf32>
    %90 = arith.addf %87, %89 : vector<8x256xf32>
    %91 = vector.broadcast %74 : f32 to vector<8x256xf32>
    %92 = arith.mulf %91, %6 : vector<8x256xf32>
    %93 = arith.addf %90, %92 : vector<8x256xf32>
    %94 = vector.broadcast %75 : f32 to vector<8x256xf32>
    %95 = arith.addf %93, %94 : vector<8x256xf32>
    %96 = arith.maximumf %85, %95 : vector<8x256xf32>
    %cst_40 = arith.constant 0.000000e+00 : f32
    %97 = vector.broadcast %cst_40 : f32 to vector<8x256xf32>
    %98 = arith.maximumf %96, %97 : vector<8x256xf32>
    %99 = arith.truncf %98 : vector<8x256xf32> to vector<8x256xbf16>
    %c2_41 = arith.constant 2 : index
    %c0_42 = arith.constant 0 : index
    %c0_43 = arith.constant 0 : index
    %100 = vector.load %arg7[%c2_41, %c0_42, %c0_43] : memref<8x256x256xbf16, #tpu.memory_space<vmem>>, vector<1x256x256xbf16>
    %101 = vector.shape_cast %100 : vector<1x256x256xbf16> to vector<256x256xbf16>
    %cst_44 = arith.constant dense<0.000000e+00> : vector<8x256xf32>
    %102 = tpu.matmul %99, %101, %cst_44 {dimension_numbers = #tpu.dot_dimension_numbers<[1], [0], [0], [1], [0, 0, 1, 1], [], []>} : vector<8x256xbf16>, vector<256x256xbf16>, vector<8x256xf32> -> vector<8x256xf32>
    %103 = arith.addf %71, %102 : vector<8x256xf32>
    %c0_45 = arith.constant 0 : index
    %c3_46 = arith.constant 3 : index
    %104 = memref.load %arg2[%c0_45, %c3_46] : memref<4x8xf32, #tpu.memory_space<smem>>
    %c1_47 = arith.constant 1 : index
    %c3_48 = arith.constant 3 : index
    %105 = memref.load %arg2[%c1_47, %c3_48] : memref<4x8xf32, #tpu.memory_space<smem>>
    %c2_49 = arith.constant 2 : index
    %c3_50 = arith.constant 3 : index
    %106 = memref.load %arg2[%c2_49, %c3_50] : memref<4x8xf32, #tpu.memory_space<smem>>
    %c3_51 = arith.constant 3 : index
    %c3_52 = arith.constant 3 : index
    %107 = memref.load %arg2[%c3_51, %c3_52] : memref<4x8xf32, #tpu.memory_space<smem>>
    %108 = vector.broadcast %104 : f32 to vector<8x256xf32>
    %109 = arith.mulf %108, %5 : vector<8x256xf32>
    %110 = vector.broadcast %105 : f32 to vector<8x256xf32>
    %111 = arith.mulf %110, %3 : vector<8x256xf32>
    %112 = arith.addf %109, %111 : vector<8x256xf32>
    %113 = vector.broadcast %106 : f32 to vector<8x256xf32>
    %114 = arith.mulf %113, %4 : vector<8x256xf32>
    %115 = arith.addf %112, %114 : vector<8x256xf32>
    %116 = vector.broadcast %107 : f32 to vector<8x256xf32>
    %117 = arith.addf %115, %116 : vector<8x256xf32>
    %118 = vector.broadcast %104 : f32 to vector<8x256xf32>
    %119 = arith.mulf %118, %3 : vector<8x256xf32>
    %120 = vector.broadcast %105 : f32 to vector<8x256xf32>
    %121 = arith.mulf %120, %4 : vector<8x256xf32>
    %122 = arith.addf %119, %121 : vector<8x256xf32>
    %123 = vector.broadcast %106 : f32 to vector<8x256xf32>
    %124 = arith.mulf %123, %6 : vector<8x256xf32>
    %125 = arith.addf %122, %124 : vector<8x256xf32>
    %126 = vector.broadcast %107 : f32 to vector<8x256xf32>
    %127 = arith.addf %125, %126 : vector<8x256xf32>
    %128 = arith.maximumf %117, %127 : vector<8x256xf32>
    %cst_53 = arith.constant 0.000000e+00 : f32
    %129 = vector.broadcast %cst_53 : f32 to vector<8x256xf32>
    %130 = arith.maximumf %128, %129 : vector<8x256xf32>
    %131 = arith.truncf %130 : vector<8x256xf32> to vector<8x256xbf16>
    %c3_54 = arith.constant 3 : index
    %c0_55 = arith.constant 0 : index
    %c0_56 = arith.constant 0 : index
    %132 = vector.load %arg7[%c3_54, %c0_55, %c0_56] : memref<8x256x256xbf16, #tpu.memory_space<vmem>>, vector<1x256x256xbf16>
    %133 = vector.shape_cast %132 : vector<1x256x256xbf16> to vector<256x256xbf16>
    %cst_57 = arith.constant dense<0.000000e+00> : vector<8x256xf32>
    %134 = tpu.matmul %131, %133, %cst_57 {dimension_numbers = #tpu.dot_dimension_numbers<[1], [0], [0], [1], [0, 0, 1, 1], [], []>} : vector<8x256xbf16>, vector<256x256xbf16>, vector<8x256xf32> -> vector<8x256xf32>
    %135 = arith.addf %103, %134 : vector<8x256xf32>
    %c0_58 = arith.constant 0 : index
    %c4 = arith.constant 4 : index
    %136 = memref.load %arg2[%c0_58, %c4] : memref<4x8xf32, #tpu.memory_space<smem>>
    %c1_59 = arith.constant 1 : index
    %c4_60 = arith.constant 4 : index
    %137 = memref.load %arg2[%c1_59, %c4_60] : memref<4x8xf32, #tpu.memory_space<smem>>
    %c2_61 = arith.constant 2 : index
    %c4_62 = arith.constant 4 : index
    %138 = memref.load %arg2[%c2_61, %c4_62] : memref<4x8xf32, #tpu.memory_space<smem>>
    %c3_63 = arith.constant 3 : index
    %c4_64 = arith.constant 4 : index
    %139 = memref.load %arg2[%c3_63, %c4_64] : memref<4x8xf32, #tpu.memory_space<smem>>
    %140 = vector.broadcast %136 : f32 to vector<8x256xf32>
    %141 = arith.mulf %140, %5 : vector<8x256xf32>
    %142 = vector.broadcast %137 : f32 to vector<8x256xf32>
    %143 = arith.mulf %142, %3 : vector<8x256xf32>
    %144 = arith.addf %141, %143 : vector<8x256xf32>
    %145 = vector.broadcast %138 : f32 to vector<8x256xf32>
    %146 = arith.mulf %145, %4 : vector<8x256xf32>
    %147 = arith.addf %144, %146 : vector<8x256xf32>
    %148 = vector.broadcast %139 : f32 to vector<8x256xf32>
    %149 = arith.addf %147, %148 : vector<8x256xf32>
    %150 = vector.broadcast %136 : f32 to vector<8x256xf32>
    %151 = arith.mulf %150, %3 : vector<8x256xf32>
    %152 = vector.broadcast %137 : f32 to vector<8x256xf32>
    %153 = arith.mulf %152, %4 : vector<8x256xf32>
    %154 = arith.addf %151, %153 : vector<8x256xf32>
    %155 = vector.broadcast %138 : f32 to vector<8x256xf32>
    %156 = arith.mulf %155, %6 : vector<8x256xf32>
    %157 = arith.addf %154, %156 : vector<8x256xf32>
    %158 = vector.broadcast %139 : f32 to vector<8x256xf32>
    %159 = arith.addf %157, %158 : vector<8x256xf32>
    %160 = arith.maximumf %149, %159 : vector<8x256xf32>
    %cst_65 = arith.constant 0.000000e+00 : f32
    %161 = vector.broadcast %cst_65 : f32 to vector<8x256xf32>
    %162 = arith.maximumf %160, %161 : vector<8x256xf32>
    %163 = arith.truncf %162 : vector<8x256xf32> to vector<8x256xbf16>
    %c4_66 = arith.constant 4 : index
    %c0_67 = arith.constant 0 : index
    %c0_68 = arith.constant 0 : index
    %164 = vector.load %arg7[%c4_66, %c0_67, %c0_68] : memref<8x256x256xbf16, #tpu.memory_space<vmem>>, vector<1x256x256xbf16>
    %165 = vector.shape_cast %164 : vector<1x256x256xbf16> to vector<256x256xbf16>
    %cst_69 = arith.constant dense<0.000000e+00> : vector<8x256xf32>
    %166 = tpu.matmul %163, %165, %cst_69 {dimension_numbers = #tpu.dot_dimension_numbers<[1], [0], [0], [1], [0, 0, 1, 1], [], []>} : vector<8x256xbf16>, vector<256x256xbf16>, vector<8x256xf32> -> vector<8x256xf32>
    %167 = arith.addf %135, %166 : vector<8x256xf32>
    %c0_70 = arith.constant 0 : index
    %c5 = arith.constant 5 : index
    %168 = memref.load %arg2[%c0_70, %c5] : memref<4x8xf32, #tpu.memory_space<smem>>
    %c1_71 = arith.constant 1 : index
    %c5_72 = arith.constant 5 : index
    %169 = memref.load %arg2[%c1_71, %c5_72] : memref<4x8xf32, #tpu.memory_space<smem>>
    %c2_73 = arith.constant 2 : index
    %c5_74 = arith.constant 5 : index
    %170 = memref.load %arg2[%c2_73, %c5_74] : memref<4x8xf32, #tpu.memory_space<smem>>
    %c3_75 = arith.constant 3 : index
    %c5_76 = arith.constant 5 : index
    %171 = memref.load %arg2[%c3_75, %c5_76] : memref<4x8xf32, #tpu.memory_space<smem>>
    %172 = vector.broadcast %168 : f32 to vector<8x256xf32>
    %173 = arith.mulf %172, %5 : vector<8x256xf32>
    %174 = vector.broadcast %169 : f32 to vector<8x256xf32>
    %175 = arith.mulf %174, %3 : vector<8x256xf32>
    %176 = arith.addf %173, %175 : vector<8x256xf32>
    %177 = vector.broadcast %170 : f32 to vector<8x256xf32>
    %178 = arith.mulf %177, %4 : vector<8x256xf32>
    %179 = arith.addf %176, %178 : vector<8x256xf32>
    %180 = vector.broadcast %171 : f32 to vector<8x256xf32>
    %181 = arith.addf %179, %180 : vector<8x256xf32>
    %182 = vector.broadcast %168 : f32 to vector<8x256xf32>
    %183 = arith.mulf %182, %3 : vector<8x256xf32>
    %184 = vector.broadcast %169 : f32 to vector<8x256xf32>
    %185 = arith.mulf %184, %4 : vector<8x256xf32>
    %186 = arith.addf %183, %185 : vector<8x256xf32>
    %187 = vector.broadcast %170 : f32 to vector<8x256xf32>
    %188 = arith.mulf %187, %6 : vector<8x256xf32>
    %189 = arith.addf %186, %188 : vector<8x256xf32>
    %190 = vector.broadcast %171 : f32 to vector<8x256xf32>
    %191 = arith.addf %189, %190 : vector<8x256xf32>
    %192 = arith.maximumf %181, %191 : vector<8x256xf32>
    %cst_77 = arith.constant 0.000000e+00 : f32
    %193 = vector.broadcast %cst_77 : f32 to vector<8x256xf32>
    %194 = arith.maximumf %192, %193 : vector<8x256xf32>
    %195 = arith.truncf %194 : vector<8x256xf32> to vector<8x256xbf16>
    %c5_78 = arith.constant 5 : index
    %c0_79 = arith.constant 0 : index
    %c0_80 = arith.constant 0 : index
    %196 = vector.load %arg7[%c5_78, %c0_79, %c0_80] : memref<8x256x256xbf16, #tpu.memory_space<vmem>>, vector<1x256x256xbf16>
    %197 = vector.shape_cast %196 : vector<1x256x256xbf16> to vector<256x256xbf16>
    %cst_81 = arith.constant dense<0.000000e+00> : vector<8x256xf32>
    %198 = tpu.matmul %195, %197, %cst_81 {dimension_numbers = #tpu.dot_dimension_numbers<[1], [0], [0], [1], [0, 0, 1, 1], [], []>} : vector<8x256xbf16>, vector<256x256xbf16>, vector<8x256xf32> -> vector<8x256xf32>
    %199 = arith.addf %167, %198 : vector<8x256xf32>
    %c0_82 = arith.constant 0 : index
    %c6 = arith.constant 6 : index
    %200 = memref.load %arg2[%c0_82, %c6] : memref<4x8xf32, #tpu.memory_space<smem>>
    %c1_83 = arith.constant 1 : index
    %c6_84 = arith.constant 6 : index
    %201 = memref.load %arg2[%c1_83, %c6_84] : memref<4x8xf32, #tpu.memory_space<smem>>
    %c2_85 = arith.constant 2 : index
    %c6_86 = arith.constant 6 : index
    %202 = memref.load %arg2[%c2_85, %c6_86] : memref<4x8xf32, #tpu.memory_space<smem>>
    %c3_87 = arith.constant 3 : index
    %c6_88 = arith.constant 6 : index
    %203 = memref.load %arg2[%c3_87, %c6_88] : memref<4x8xf32, #tpu.memory_space<smem>>
    %204 = vector.broadcast %200 : f32 to vector<8x256xf32>
    %205 = arith.mulf %204, %5 : vector<8x256xf32>
    %206 = vector.broadcast %201 : f32 to vector<8x256xf32>
    %207 = arith.mulf %206, %3 : vector<8x256xf32>
    %208 = arith.addf %205, %207 : vector<8x256xf32>
    %209 = vector.broadcast %202 : f32 to vector<8x256xf32>
    %210 = arith.mulf %209, %4 : vector<8x256xf32>
    %211 = arith.addf %208, %210 : vector<8x256xf32>
    %212 = vector.broadcast %203 : f32 to vector<8x256xf32>
    %213 = arith.addf %211, %212 : vector<8x256xf32>
    %214 = vector.broadcast %200 : f32 to vector<8x256xf32>
    %215 = arith.mulf %214, %3 : vector<8x256xf32>
    %216 = vector.broadcast %201 : f32 to vector<8x256xf32>
    %217 = arith.mulf %216, %4 : vector<8x256xf32>
    %218 = arith.addf %215, %217 : vector<8x256xf32>
    %219 = vector.broadcast %202 : f32 to vector<8x256xf32>
    %220 = arith.mulf %219, %6 : vector<8x256xf32>
    %221 = arith.addf %218, %220 : vector<8x256xf32>
    %222 = vector.broadcast %203 : f32 to vector<8x256xf32>
    %223 = arith.addf %221, %222 : vector<8x256xf32>
    %224 = arith.maximumf %213, %223 : vector<8x256xf32>
    %cst_89 = arith.constant 0.000000e+00 : f32
    %225 = vector.broadcast %cst_89 : f32 to vector<8x256xf32>
    %226 = arith.maximumf %224, %225 : vector<8x256xf32>
    %227 = arith.truncf %226 : vector<8x256xf32> to vector<8x256xbf16>
    %c6_90 = arith.constant 6 : index
    %c0_91 = arith.constant 0 : index
    %c0_92 = arith.constant 0 : index
    %228 = vector.load %arg7[%c6_90, %c0_91, %c0_92] : memref<8x256x256xbf16, #tpu.memory_space<vmem>>, vector<1x256x256xbf16>
    %229 = vector.shape_cast %228 : vector<1x256x256xbf16> to vector<256x256xbf16>
    %cst_93 = arith.constant dense<0.000000e+00> : vector<8x256xf32>
    %230 = tpu.matmul %227, %229, %cst_93 {dimension_numbers = #tpu.dot_dimension_numbers<[1], [0], [0], [1], [0, 0, 1, 1], [], []>} : vector<8x256xbf16>, vector<256x256xbf16>, vector<8x256xf32> -> vector<8x256xf32>
    %231 = arith.addf %199, %230 : vector<8x256xf32>
    %c0_94 = arith.constant 0 : index
    %c7 = arith.constant 7 : index
    %232 = memref.load %arg2[%c0_94, %c7] : memref<4x8xf32, #tpu.memory_space<smem>>
    %c1_95 = arith.constant 1 : index
    %c7_96 = arith.constant 7 : index
    %233 = memref.load %arg2[%c1_95, %c7_96] : memref<4x8xf32, #tpu.memory_space<smem>>
    %c2_97 = arith.constant 2 : index
    %c7_98 = arith.constant 7 : index
    %234 = memref.load %arg2[%c2_97, %c7_98] : memref<4x8xf32, #tpu.memory_space<smem>>
    %c3_99 = arith.constant 3 : index
    %c7_100 = arith.constant 7 : index
    %235 = memref.load %arg2[%c3_99, %c7_100] : memref<4x8xf32, #tpu.memory_space<smem>>
    %236 = vector.broadcast %232 : f32 to vector<8x256xf32>
    %237 = arith.mulf %236, %5 : vector<8x256xf32>
    %238 = vector.broadcast %233 : f32 to vector<8x256xf32>
    %239 = arith.mulf %238, %3 : vector<8x256xf32>
    %240 = arith.addf %237, %239 : vector<8x256xf32>
    %241 = vector.broadcast %234 : f32 to vector<8x256xf32>
    %242 = arith.mulf %241, %4 : vector<8x256xf32>
    %243 = arith.addf %240, %242 : vector<8x256xf32>
    %244 = vector.broadcast %235 : f32 to vector<8x256xf32>
    %245 = arith.addf %243, %244 : vector<8x256xf32>
    %246 = vector.broadcast %232 : f32 to vector<8x256xf32>
    %247 = arith.mulf %246, %3 : vector<8x256xf32>
    %248 = vector.broadcast %233 : f32 to vector<8x256xf32>
    %249 = arith.mulf %248, %4 : vector<8x256xf32>
    %250 = arith.addf %247, %249 : vector<8x256xf32>
    %251 = vector.broadcast %234 : f32 to vector<8x256xf32>
    %252 = arith.mulf %251, %6 : vector<8x256xf32>
    %253 = arith.addf %250, %252 : vector<8x256xf32>
    %254 = vector.broadcast %235 : f32 to vector<8x256xf32>
    %255 = arith.addf %253, %254 : vector<8x256xf32>
    %256 = arith.maximumf %245, %255 : vector<8x256xf32>
    %cst_101 = arith.constant 0.000000e+00 : f32
    %257 = vector.broadcast %cst_101 : f32 to vector<8x256xf32>
    %258 = arith.maximumf %256, %257 : vector<8x256xf32>
    %259 = arith.truncf %258 : vector<8x256xf32> to vector<8x256xbf16>
    %c7_102 = arith.constant 7 : index
    %c0_103 = arith.constant 0 : index
    %c0_104 = arith.constant 0 : index
    %260 = vector.load %arg7[%c7_102, %c0_103, %c0_104] : memref<8x256x256xbf16, #tpu.memory_space<vmem>>, vector<1x256x256xbf16>
    %261 = vector.shape_cast %260 : vector<1x256x256xbf16> to vector<256x256xbf16>
    %cst_105 = arith.constant dense<0.000000e+00> : vector<8x256xf32>
    %262 = tpu.matmul %259, %261, %cst_105 {dimension_numbers = #tpu.dot_dimension_numbers<[1], [0], [0], [1], [0, 0, 1, 1], [], []>} : vector<8x256xbf16>, vector<256x256xbf16>, vector<8x256xf32> -> vector<8x256xf32>
    %263 = arith.addf %231, %262 : vector<8x256xf32>
    %c0_106 = arith.constant 0 : index
    %c0_107 = arith.constant 0 : index
    %264 = vector.load %arg12[%c0_106, %c0_107] : memref<8x256xf32, #tpu.memory_space<vmem>>, vector<8x256xf32>
    tpu.vector_store %arg12[%c0_106, %c0_107], %263 {strides = array<i32>} : memref<8x256xf32, #tpu.memory_space<vmem>>, vector<8x256xf32>,
    %c1_i32 = arith.constant 1 : i32
    %265 = arith.cmpi eq, %arg1, %c1_i32 : i32
    %266 = arith.extui %265 : i1 to i32
    %c0_i32_108 = arith.constant 0 : i32
    %267 = arith.cmpi ne, %266, %c0_i32_108 : i32
    scf.if %267 {
      %c0_109 = arith.constant 0 : index
      %c0_110 = arith.constant 0 : index
      %268 = vector.load %arg8[%c0_109, %c0_110] : memref<1x256xf32, #tpu.memory_space<vmem>>, vector<1x256xf32>
      %269 = vector.broadcast %268 : vector<1x256xf32> to vector<8x256xf32>
      %270 = arith.addf %263, %269 : vector<8x256xf32>
      %cst_111 = arith.constant 0.000000e+00 : f32
      %271 = vector.broadcast %cst_111 : f32 to vector<8x256xf32>
      %272 = arith.maximumf %270, %271 : vector<8x256xf32>
      %c0_112 = arith.constant 0 : index
      %c0_113 = arith.constant 0 : index
      %273 = vector.load %arg9[%c0_112, %c0_113] : memref<256x2xf32, #tpu.memory_space<vmem>>, vector<256x2xf32>
      %cst_114 = arith.constant dense<0.000000e+00> : vector<8x2xf32>
      %274 = tpu.matmul %272, %273, %cst_114 {dimension_numbers = #tpu.dot_dimension_numbers<[1], [0], [0], [1], [0, 0, 1, 1], [], []>} : vector<8x256xf32>, vector<256x2xf32>, vector<8x2xf32> -> vector<8x2xf32>
      %c0_115 = arith.constant 0 : index
      %c0_116 = arith.constant 0 : index
      %275 = vector.load %arg10[%c0_115, %c0_116] : memref<1x2xf32, #tpu.memory_space<vmem>>, vector<1x2xf32>
      %276 = vector.broadcast %275 : vector<1x2xf32> to vector<8x2xf32>
      %277 = arith.addf %274, %276 : vector<8x2xf32>
      %c0_117 = arith.constant 0 : index
      %c0_118 = arith.constant 0 : index
      %278 = vector.load %arg11[%c0_117, %c0_118] : memref<8x2xf32, #tpu.memory_space<vmem>>, vector<8x2xf32>
      tpu.vector_store %arg11[%c0_117, %c0_118], %277 {strides = array<i32>} : memref<8x2xf32, #tpu.memory_space<vmem>>, vector<8x2xf32>,
    } else {
    }
    return
  }
  func.func @transform_0(%arg0: i32, %arg1: i32) -> (i32, i32) {
    %c0_i32 = arith.constant 0 : i32
    %c0_i32_0 = arith.constant 0 : i32
    %c0_i32_1 = arith.constant 0 : i32
    return %c0_i32, %c0_i32_0 : i32, i32
  }
  func.func @transform_1(%arg0: i32, %arg1: i32) -> (i32, i32) {
    %c0_i32 = arith.constant 0 : i32
    return %arg0, %arg1 : i32, i32
  }
  func.func @transform_2(%arg0: i32, %arg1: i32) -> (i32, i32) {
    %c0_i32 = arith.constant 0 : i32
    return %arg0, %arg1 : i32, i32
  }
  func.func @transform_3(%arg0: i32, %arg1: i32) -> (i32, i32) {
    %c0_i32 = arith.constant 0 : i32
    return %arg0, %arg1 : i32, i32
  }
  func.func @transform_4(%arg0: i32, %arg1: i32) -> (i32, i32) {
    %c0_i32 = arith.constant 0 : i32
    return %arg0, %arg1 : i32, i32
  }
  func.func @transform_5(%arg0: i32, %arg1: i32) -> (i32, i32, i32) {
    %c0_i32 = arith.constant 0 : i32
    %c0_i32_0 = arith.constant 0 : i32
    %c0_i32_1 = arith.constant 0 : i32
    return %c0_i32, %arg1, %c0_i32_0 : i32, i32, i32
  }
  func.func @transform_6(%arg0: i32, %arg1: i32) -> (i32, i32) {
    %c0_i32 = arith.constant 0 : i32
    %c0_i32_0 = arith.constant 0 : i32
    %c0_i32_1 = arith.constant 0 : i32
    return %c0_i32, %c0_i32_0 : i32, i32
  }
  func.func @transform_7(%arg0: i32, %arg1: i32) -> (i32, i32) {
    %c0_i32 = arith.constant 0 : i32
    %c0_i32_0 = arith.constant 0 : i32
    %c0_i32_1 = arith.constant 0 : i32
    return %c0_i32, %c0_i32_0 : i32, i32
  }
  func.func @transform_8(%arg0: i32, %arg1: i32) -> (i32, i32) {
    %c0_i32 = arith.constant 0 : i32
    %c0_i32_0 = arith.constant 0 : i32
    %c0_i32_1 = arith.constant 0 : i32
    return %c0_i32, %c0_i32_0 : i32, i32
  }
  func.func @transform_9(%arg0: i32, %arg1: i32) -> (i32, i32) {
    %c0_i32 = arith.constant 0 : i32
    %c0_i32_0 = arith.constant 0 : i32
    return %arg0, %c0_i32 : i32, i32
  }
}

</mosaic_0001>

<llo_original>
// kernel: tpu_custom_call.1
$region0: #{tpu_custom_call.1}
  #allocation0 [shape = 'u32[]', space=smem, size = 0x4, offset = 0x4, fixed_abs, tag = 'smem constant byte address 0x4 - core index']
  #allocation1 [shape = 'u32[72,128]{1,0:T(1,128)}', space=vmem, size = 0x9000, scoped, tag = 'internal scratch']
  #allocation2 [shape = 'f32[8,256]{1,0:T(8,128)}', space=vmem, size = 0x2000, scoped, tag = 'scratch operand']
  #allocation16 [shape = 's32[]', space=sflag, size = 0x4, offset = 0, fixed_abs, tag = 'sflag constant byte address 0x0 - dummy sync flag']
  %s0 = inlined_call_operand.hbm [shape: f32[4,8], index: 0, kind: input, shape index: {}]
  %s1 = inlined_call_operand.hbm [shape: f32[8,512], index: 1, kind: input, shape index: {}]
  %s2 = inlined_call_operand.hbm [shape: f32[8,512], index: 2, kind: input, shape index: {}]
  %s3 = inlined_call_operand.hbm [shape: f32[8,512], index: 3, kind: input, shape index: {}]
  %s4 = inlined_call_operand.hbm [shape: f32[8,512], index: 4, kind: input, shape index: {}]
  %s5 = inlined_call_operand.hbm [shape: bf16[8,512,256], index: 5, kind: input, shape index: {}]
  %s6 = inlined_call_operand.hbm [shape: f32[1,256], index: 6, kind: input, shape index: {}]
  %s7 = inlined_call_operand.vmem [shape: f32[256,2], index: 7, kind: input, shape index: {}]
  %s8 = inlined_call_operand.hbm [shape: f32[1,2], index: 8, kind: input, shape index: {}]
  %s9 = inlined_call_operand.vmem [shape: f32[8,2], index: 9, kind: output, shape index: {}]
  %s10 = sld [smem:[#allocation0]]
  $region109: #{tpu_custom_call.1} parent=0
    _
  %s12 = ssub.s32 1, %s10
  %s13 = scalar_select 0, %s12, %s10
  $region1: #{tpu_custom_call.1} parent=0
    #allocation3 [shape = 'u8[2048]{0}', space=smem, size = 0x800, scoped, tag = 'input window, operand 0, single buffered']
    #allocation4 [shape = 's32[2]{0}', space=sflag, size = 0x8, scoped, tag = 'scoped memory for tpu_custom_call.1']
    #allocation5 [shape = 's32[2]{0}', space=sflag, size = 0x8, scoped, tag = 'scoped memory for tpu_custom_call.1']
    #allocation6 [shape = 'u8[16384]{0}', space=vmem, size = 0x4000, scoped, tag = 'input window, operand 1']
    #allocation7 [shape = 'u8[16384]{0}', space=vmem, size = 0x4000, scoped, tag = 'input window, operand 2']
    #allocation8 [shape = 's32[2]{0}', space=sflag, size = 0x8, scoped, tag = 'scoped memory for tpu_custom_call.1']
    #allocation9 [shape = 'u8[16384]{0}', space=vmem, size = 0x4000, scoped, tag = 'input window, operand 3']
    #allocation10 [shape = 'u8[16384]{0}', space=vmem, size = 0x4000, scoped, tag = 'input window, operand 4']
    #allocation11 [shape = 's32[2]{0}', space=sflag, size = 0x8, scoped, tag = 'scoped memory for tpu_custom_call.1']
    #allocation12 [shape = 'u8[2097152]{0}', space=vmem, size = 0x200000, scoped, tag = 'input window, operand 5']
    #allocation13 [shape = 'u8[1024]{0}', space=vmem, size = 0x400, scoped, tag = 'input window, operand 6, single buffered']
    #allocation14 [shape = 's32[1]{0}', space=sflag, size = 0x4, scoped, tag = 'scoped memory for tpu_custom_call.1']
    #allocation15 [shape = 'u8[512]{0}', space=vmem, size = 0x400, scoped, tag = 'input window, operand 8, single buffered']
    %14 = vsyncpa [#allocation5], 0
    %15 = vsyncpa [#allocation4], 0
    %s16 = scalar_lea.sflag [#allocation4], 1
    %17 = vsyncpa %s16, 0
    %18 = vsyncpa [#allocation8], 0
    %s19 = scalar_lea.sflag [#allocation8], 1
    %20 = vsyncpa %s19, 0
    %21 = vsyncpa [#allocation11], 0
    %s22 = scalar_lea.sflag [#allocation11], 1
    %23 = vsyncpa %s22, 0
    %24 = vsyncpa [#allocation14], 0
    loop: start=0, step=1, limit=4
    $region2: #{tpu_custom_call.1} parent=1 // loop_pre_header
      _
    $region3: #{tpu_custom_call.1} parent=1 // loop_header
      %s26 = sphi 0, %s30
      %p27 = scmp.ge.s32.totalorder %s26, 4
      %s33 = sphi 0, %s45
      %s34 = sphi 0, %s41
      %s35 = sphi 0, %s33
      %s36 = sphi 0, %s34
      %s37 = sphi 0, %s35
      %s38 = sphi 0, %s36
      %s46 = sphi 0, %s46
      %s48 = sphi 0, %s46
      %s49 = sphi 0, %s48
      %s63 = sphi 0, %s49
      %s71 = sphi 0, %s73
      %s74 = sphi 0, %s71
      %s75 = sphi 0, %s74
      %s91 = sphi 0, %s75
      %s99 = sphi 0, %s101
      %s102 = sphi 0, %s99
      %s103 = sphi 0, %s102
      %s119 = sphi 0, %s103
      %s127 = sphi 0, %s129
      %s130 = sphi 0, %s127
      %s131 = sphi 0, %s130
      %s147 = sphi 0, %s131
      %s155 = sphi 0, %s157
      %s158 = sphi 0, %s155
      %s159 = sphi 0, %s158
      %s175 = sphi 0, %s159
      %s181 = sphi 0, %s183
      %s184 = sphi 0, %s181
      %s185 = sphi 0, %s184
      %s201 = sphi 0, %s185
      %s205 = sphi 0, %s205
      %s207 = sphi 0, %s205
      %s208 = sphi 0, %s207
      %s222 = sphi 0, %s208
      %s226 = sphi 0, %s226
      %s228 = sphi 0, %s226
      %s229 = sphi 0, %s228
      %s243 = sphi 0, %s229
      %s247 = sphi 0, %s247
      %s249 = sphi 0, %s247
      %s250 = sphi 0, %s249
      %s264 = sphi 0, %s250
      %s270 = sphi 0, %s272
      %s273 = sphi 0, %s270
      %s274 = sphi 0, %s273
      %s290 = sphi 0, %s274
    $region4: #{tpu_custom_call.1} parent=1 // loop_header_branch
      %29 = sbr.rel (%p27) target = $region8
    $region5: #{tpu_custom_call.1} parent=1 // loop_body
      %s31 = ssub.s32 %s26, 1
      %s32 = ssub.s32 %s26, 2
      %s39 = sadd.s32 1, %s34
      %p40 = scmp.ge.s32.totalorder %s39, 2
      %s41 = scalar_select %p40, 0, %s39
      %s42 = sadd.s32 1, %s33
      %s43 = scalar_select %p40, %s42, %s33
      %p44 = scmp.ge.s32.totalorder %s43, 1
      %s45 = scalar_select %p44, 0, %s43
      %s47 = sadd.s32 %s46, 1
      %p50 = scmp.eq.s32.totalorder %s26, 1
      %p51 = scmp.ne.s32.totalorder %s46, %s48
      %p52 = scmp.eq.s32.totalorder %s26, 0
      %p53 = por %p51, %p52
      %p54 = scmp.ne.s32.totalorder %s46, %s48
      %p55 = scmp.eq.s32.totalorder %s31, 1
      %p56 = por %p54, %p55
      %p57 = scmp.ne.s32.totalorder %s48, %s49
      %p58 = scmp.eq.s32.totalorder %s31, 0
      %p59 = por %p57, %p58
      %p60 = scmp.ne.s32.totalorder %s48, %s49
      %p61 = scmp.eq.s32.totalorder %s32, 1
      %p62 = por %p60, %p61
      %p64 = scmp.ne.s32.totalorder %s49, %s63
      %p65 = scmp.eq.s32.totalorder %s32, 0
      %p66 = por %p64, %p65
      %s67 = ssub.s32 %s33, %s45
      %s68 = ssub.s32 %s34, %s41
      %s69 = sor.u32 %s67, %s68
      %p70 = scmp.eq.s32.totalorder %s69, 0
      %s72 = sadd.s32 %s71, 1
      %s73 = scalar_select %p70, %s71, %s72
      %p76 = pneg %p70
      %p77 = scmp.eq.s32.totalorder %s26, 1
      %p78 = por %p76, %p77
      %p79 = scmp.ne.s32.totalorder %s71, %s74
      %p80 = scmp.eq.s32.totalorder %s26, 0
      %p81 = por %p79, %p80
      %p82 = scmp.ne.s32.totalorder %s71, %s74
      %p83 = scmp.eq.s32.totalorder %s31, 1
      %p84 = por %p82, %p83
      %p85 = scmp.ne.s32.totalorder %s74, %s75
      %p86 = scmp.eq.s32.totalorder %s31, 0
      %p87 = por %p85, %p86
      %p88 = scmp.ne.s32.totalorder %s74, %s75
      %p89 = scmp.eq.s32.totalorder %s32, 1
      %p90 = por %p88, %p89
      %p92 = scmp.ne.s32.totalorder %s75, %s91
      %p93 = scmp.eq.s32.totalorder %s32, 0
      %p94 = por %p92, %p93
      %s95 = ssub.s32 %s33, %s45
      %s96 = ssub.s32 %s34, %s41
      %s97 = sor.u32 %s95, %s96
      %p98 = scmp.eq.s32.totalorder %s97, 0
      %s100 = sadd.s32 %s99, 1
      %s101 = scalar_select %p98, %s99, %s100
      %p104 = pneg %p98
      %p105 = scmp.eq.s32.totalorder %s26, 1
      %p106 = por %p104, %p105
      %p107 = scmp.ne.s32.totalorder %s99, %s102
      %p108 = scmp.eq.s32.totalorder %s26, 0
      %p109 = por %p107, %p108
      %p110 = scmp.ne.s32.totalorder %s99, %s102
      %p111 = scmp.eq.s32.totalorder %s31, 1
      %p112 = por %p110, %p111
      %p113 = scmp.ne.s32.totalorder %s102, %s103
      %p114 = scmp.eq.s32.totalorder %s31, 0
      %p115 = por %p113, %p114
      %p116 = scmp.ne.s32.totalorder %s102, %s103
      %p117 = scmp.eq.s32.totalorder %s32, 1
      %p118 = por %p116, %p117
      %p120 = scmp.ne.s32.totalorder %s103, %s119
      %p121 = scmp.eq.s32.totalorder %s32, 0
      %p122 = por %p120, %p121
      %s123 = ssub.s32 %s33, %s45
      %s124 = ssub.s32 %s34, %s41
      %s125 = sor.u32 %s123, %s124
      %p126 = scmp.eq.s32.totalorder %s125, 0
      %s128 = sadd.s32 %s127, 1
      %s129 = scalar_select %p126, %s127, %s128
      %p132 = pneg %p126
      %p133 = scmp.eq.s32.totalorder %s26, 1
      %p134 = por %p132, %p133
      %p135 = scmp.ne.s32.totalorder %s127, %s130
      %p136 = scmp.eq.s32.totalorder %s26, 0
      %p137 = por %p135, %p136
      %p138 = scmp.ne.s32.totalorder %s127, %s130
      %p139 = scmp.eq.s32.totalorder %s31, 1
      %p140 = por %p138, %p139
      %p141 = scmp.ne.s32.totalorder %s130, %s131
      %p142 = scmp.eq.s32.totalorder %s31, 0
      %p143 = por %p141, %p142
      %p144 = scmp.ne.s32.totalorder %s130, %s131
      %p145 = scmp.eq.s32.totalorder %s32, 1
      %p146 = por %p144, %p145
      %p148 = scmp.ne.s32.totalorder %s131, %s147
      %p149 = scmp.eq.s32.totalorder %s32, 0
      %p150 = por %p148, %p149
      %s151 = ssub.s32 %s33, %s45
      %s152 = ssub.s32 %s34, %s41
      %s153 = sor.u32 %s151, %s152
      %p154 = scmp.eq.s32.totalorder %s153, 0
      %s156 = sadd.s32 %s155, 1
      %s157 = scalar_select %p154, %s155, %s156
      %p160 = pneg %p154
      %p161 = scmp.eq.s32.totalorder %s26, 1
      %p162 = por %p160, %p161
      %p163 = scmp.ne.s32.totalorder %s155, %s158
      %p164 = scmp.eq.s32.totalorder %s26, 0
      %p165 = por %p163, %p164
      %p166 = scmp.ne.s32.totalorder %s155, %s158
      %p167 = scmp.eq.s32.totalorder %s31, 1
      %p168 = por %p166, %p167
      %p169 = scmp.ne.s32.totalorder %s158, %s159
      %p170 = scmp.eq.s32.totalorder %s31, 0
      %p171 = por %p169, %p170
      %p172 = scmp.ne.s32.totalorder %s158, %s159
      %p173 = scmp.eq.s32.totalorder %s32, 1
      %p174 = por %p172, %p173
      %p176 = scmp.ne.s32.totalorder %s159, %s175
      %p177 = scmp.eq.s32.totalorder %s32, 0
      %p178 = por %p176, %p177
      %s179 = ssub.s32 %s34, %s41
      %p180 = scmp.eq.s32.totalorder %s179, 0
      %s182 = sadd.s32 %s181, 1
      %s183 = scalar_select %p180, %s181, %s182
      %p186 = pneg %p180
      %p187 = scmp.eq.s32.totalorder %s26, 1
      %p188 = por %p186, %p187
      %p189 = scmp.ne.s32.totalorder %s181, %s184
      %p190 = scmp.eq.s32.totalorder %s26, 0
      %p191 = por %p189, %p190
      %p192 = scmp.ne.s32.totalorder %s181, %s184
      %p193 = scmp.eq.s32.totalorder %s31, 1
      %p194 = por %p192, %p193
      %p195 = scmp.ne.s32.totalorder %s184, %s185
      %p196 = scmp.eq.s32.totalorder %s31, 0
      %p197 = por %p195, %p196
      %p198 = scmp.ne.s32.totalorder %s184, %s185
      %p199 = scmp.eq.s32.totalorder %s32, 1
      %p200 = por %p198, %p199
      %p202 = scmp.ne.s32.totalorder %s185, %s201
      %p203 = scmp.eq.s32.totalorder %s32, 0
      %p204 = por %p202, %p203
      %s206 = sadd.s32 %s205, 1
      %p209 = scmp.eq.s32.totalorder %s26, 1
      %p210 = scmp.ne.s32.totalorder %s205, %s207
      %p211 = scmp.eq.s32.totalorder %s26, 0
      %p212 = por %p210, %p211
      %p213 = scmp.ne.s32.totalorder %s205, %s207
      %p214 = scmp.eq.s32.totalorder %s31, 1
      %p215 = por %p213, %p214
      %p216 = scmp.ne.s32.totalorder %s207, %s208
      %p217 = scmp.eq.s32.totalorder %s31, 0
      %p218 = por %p216, %p217
      %p219 = scmp.ne.s32.totalorder %s207, %s208
      %p220 = scmp.eq.s32.totalorder %s32, 1
      %p221 = por %p219, %p220
      %p223 = scmp.ne.s32.totalorder %s208, %s222
      %p224 = scmp.eq.s32.totalorder %s32, 0
      %p225 = por %p223, %p224
      %s227 = sadd.s32 %s226, 1
      %p230 = scmp.eq.s32.totalorder %s26, 1
      %p231 = scmp.ne.s32.totalorder %s226, %s228
      %p232 = scmp.eq.s32.totalorder %s26, 0
      %p233 = por %p231, %p232
      %p234 = scmp.ne.s32.totalorder %s226, %s228
      %p235 = scmp.eq.s32.totalorder %s31, 1
      %p236 = por %p234, %p235
      %p237 = scmp.ne.s32.totalorder %s228, %s229
      %p238 = scmp.eq.s32.totalorder %s31, 0
      %p239 = por %p237, %p238
      %p240 = scmp.ne.s32.totalorder %s228, %s229
      %p241 = scmp.eq.s32.totalorder %s32, 1
      %p242 = por %p240, %p241
      %p244 = scmp.ne.s32.totalorder %s229, %s243
      %p245 = scmp.eq.s32.totalorder %s32, 0
      %p246 = por %p244, %p245
      %s248 = sadd.s32 %s247, 1
      %p251 = scmp.eq.s32.totalorder %s26, 1
      %p252 = scmp.ne.s32.totalorder %s247, %s249
      %p253 = scmp.eq.s32.totalorder %s26, 0
      %p254 = por %p252, %p253
      %p255 = scmp.ne.s32.totalorder %s247, %s249
      %p256 = scmp.eq.s32.totalorder %s31, 1
      %p257 = por %p255, %p256
      %p258 = scmp.ne.s32.totalorder %s249, %s250
      %p259 = scmp.eq.s32.totalorder %s31, 0
      %p260 = por %p258, %p259
      %p261 = scmp.ne.s32.totalorder %s249, %s250
      %p262 = scmp.eq.s32.totalorder %s32, 1
      %p263 = por %p261, %p262
      %p265 = scmp.ne.s32.totalorder %s250, %s264
      %p266 = scmp.eq.s32.totalorder %s32, 0
      %p267 = por %p265, %p266
      %s268 = ssub.s32 %s33, %s45
      %p269 = scmp.eq.s32.totalorder %s268, 0
      %s271 = sadd.s32 %s270, 1
      %s272 = scalar_select %p269, %s270, %s271
      %p275 = pneg %p269
      %p276 = scmp.eq.s32.totalorder %s26, 1
      %p277 = por %p275, %p276
      %p278 = scmp.ne.s32.totalorder %s270, %s273
      %p279 = scmp.eq.s32.totalorder %s26, 0
      %p280 = por %p278, %p279
      %p281 = scmp.ne.s32.totalorder %s270, %s273
      %p282 = scmp.eq.s32.totalorder %s31, 1
      %p283 = por %p281, %p282
      %p284 = scmp.ne.s32.totalorder %s273, %s274
      %p285 = scmp.eq.s32.totalorder %s31, 0
      %p286 = por %p284, %p285
      %p287 = scmp.ne.s32.totalorder %s273, %s274
      %p288 = scmp.eq.s32.totalorder %s32, 1
      %p289 = por %p287, %p288
      %p291 = scmp.ne.s32.totalorder %s274, %s290
      %p292 = scmp.eq.s32.totalorder %s32, 0
      %p293 = por %p291, %p292
      %p294 = scmp.le.s32.totalorder 1, %s26
      %p295 = scmp.lt.s32.totalorder %s26, 3
      %p296 = pnand %p294, %p295
      %p297 = pneg %p296
      // Predicated region
      $region9: #{tpu_custom_call.1} parent=5 // pred_check
        _
      $region10: #{tpu_custom_call.1} parent=5 // pred_check_branch
        %299 = sbr.rel (%p296) target = $region12
      $region11: #{tpu_custom_call.1} parent=5 // pred_region
        %s300 = ssub.s32 %s26, 1
        // Predicated region
        $region13: #{tpu_custom_call.1} parent=11 // pred_check
          %p301 = pneg %p59
        $region14: #{tpu_custom_call.1} parent=11 // pred_check_branch
          %303 = sbr.rel (%p301) target = $region16
        $region15: #{tpu_custom_call.1} parent=11 // pred_region
          %305 = vsyncadd [#allocation5], 0
          %s307 = sshll.u32 %s0, 4
          %s308 = int_to_ptr.hbm [resolvable:$true] %s307
          %310 = dma.hbm_to_smem %s308, 64, [#allocation3], [#allocation5]
        $region16: #{tpu_custom_call.1} parent=11 // pred_fallthru
          _
        // Predicated region
        $region17: #{tpu_custom_call.1} parent=11 // pred_check
          %p311 = pneg %p218
        $region18: #{tpu_custom_call.1} parent=11 // pred_check_branch
          %313 = sbr.rel (%p311) target = $region20
        $region19: #{tpu_custom_call.1} parent=11 // pred_region
          %315 = vsyncadd [#allocation14], 0
          %s317 = sshll.u32 %s6, 4
          %s318 = int_to_ptr.hbm [resolvable:$true] %s317
          %s319 = sshll.u32 [#allocation13], 4
          %s320 = int_to_ptr.vmem [resolvable:$true] %s319
          %322 = dma.hbm_to_vmem [thread:$0]  %s318, 32, %s320, [#allocation14]
        $region20: #{tpu_custom_call.1} parent=11 // pred_fallthru
          _
        // Predicated region
        $region21: #{tpu_custom_call.1} parent=11 // pred_check
          %p323 = pneg %p239
        $region22: #{tpu_custom_call.1} parent=11 // pred_check_branch
          %325 = sbr.rel (%p323) target = $region24
        $region23: #{tpu_custom_call.1} parent=11 // pred_region
          _
        $region24: #{tpu_custom_call.1} parent=11 // pred_fallthru
          _
        // Predicated region
        $region25: #{tpu_custom_call.1} parent=11 // pred_check
          %p326 = pneg %p260
        $region26: #{tpu_custom_call.1} parent=11 // pred_check_branch
          %328 = sbr.rel (%p326) target = $region28
        $region27: #{tpu_custom_call.1} parent=11 // pred_region
          %330 = vsyncadd [#allocation14], 0
          %s332 = sshll.u32 %s8, 4
          %s333 = int_to_ptr.hbm [resolvable:$true] %s332
          %s334 = sshll.u32 [#allocation15], 4
          %s335 = int_to_ptr.vmem [resolvable:$true] %s334
          %337 = dma.hbm_to_vmem [thread:$0]  %s333, 16, %s335, [#allocation14]
        $region28: #{tpu_custom_call.1} parent=11 // pred_fallthru
          _
      $region12: #{tpu_custom_call.1} parent=5 // pred_fallthru
        _
      %p338 = scmp.lt.s32.totalorder %s26, 2
      // Predicated region
      $region29: #{tpu_custom_call.1} parent=5 // pred_check
        %p339 = pneg %p338
      $region30: #{tpu_custom_call.1} parent=5 // pred_check_branch
        %341 = sbr.rel (%p339) target = $region32
      $region31: #{tpu_custom_call.1} parent=5 // pred_region
        // Predicated region
        $region33: #{tpu_custom_call.1} parent=31 // pred_check
          %p342 = pneg %p81
        $region34: #{tpu_custom_call.1} parent=31 // pred_check_branch
          %344 = sbr.rel (%p342) target = $region36
        $region35: #{tpu_custom_call.1} parent=31 // pred_region
          %s345 = sand.u32 %s71, 1
          %s346 = scalar_lea.sflag [#allocation4], %s345
          %s347 = sand.u32 %s71, 1
          %s348 = smul.addr %s347, 16
          %s349 = scalar_lea.vmem [#allocation6], %s348
          %s350 = smul.u32 2, %s34
          %352 = vsyncadd %s346, 0
          %s353 = smul.addr %s33, 4
          %s354 = sadd.s32 %s350, %s353
          %s355 = smul.addr %s354, 8
          %s356 = scalar_lea.hbm %s1, %s355
          %s358 = sshll.u32 %s356, 4
          %s359 = int_to_ptr.hbm [resolvable:$true] %s358
          %s360 = sshll.u32 %s349, 4
          %s361 = int_to_ptr.vmem [resolvable:$true] %s360
          %363 = dma.hbm_to_vmem [thread:$0]  %s359, 256, %s361, %s346
        $region36: #{tpu_custom_call.1} parent=31 // pred_fallthru
          _
        // Predicated region
        $region37: #{tpu_custom_call.1} parent=31 // pred_check
          %p364 = pneg %p109
        $region38: #{tpu_custom_call.1} parent=31 // pred_check_branch
          %366 = sbr.rel (%p364) target = $region40
        $region39: #{tpu_custom_call.1} parent=31 // pred_region
          %s367 = sand.u32 %s26, 1
          %s368 = scalar_lea.sflag [#allocation8], %s367
          %s369 = sand.u32 %s99, 1
          %s370 = smul.addr %s369, 16
          %s371 = scalar_lea.vmem [#allocation7], %s370
          %s372 = smul.u32 2, %s34
          %374 = vsyncadd %s368, 0
          %s375 = smul.addr %s33, 4
          %s376 = sadd.s32 %s372, %s375
          %s377 = smul.addr %s376, 8
          %s378 = scalar_lea.hbm %s2, %s377
          %s380 = sshll.u32 %s378, 4
          %s381 = int_to_ptr.hbm [resolvable:$true] %s380
          %s382 = sshll.u32 %s371, 4
          %s383 = int_to_ptr.vmem [resolvable:$true] %s382
          %385 = dma.hbm_to_vmem [thread:$0]  %s381, 256, %s383, %s368
        $region40: #{tpu_custom_call.1} parent=31 // pred_fallthru
          _
        // Predicated region
        $region41: #{tpu_custom_call.1} parent=31 // pred_check
          %p386 = pneg %p137
        $region42: #{tpu_custom_call.1} parent=31 // pred_check_branch
          %388 = sbr.rel (%p386) target = $region44
        $region43: #{tpu_custom_call.1} parent=31 // pred_region
          %s389 = sand.u32 %s26, 1
          %s390 = scalar_lea.sflag [#allocation8], %s389
          %s391 = sand.u32 %s127, 1
          %s392 = smul.addr %s391, 16
          %s393 = scalar_lea.vmem [#allocation9], %s392
          %s394 = smul.u32 2, %s34
          %396 = vsyncadd %s390, 0
          %s397 = smul.addr %s33, 4
          %s398 = sadd.s32 %s394, %s397
          %s399 = smul.addr %s398, 8
          %s400 = scalar_lea.hbm %s3, %s399
          %s402 = sshll.u32 %s400, 4
          %s403 = int_to_ptr.hbm [resolvable:$true] %s402
          %s404 = sshll.u32 %s393, 4
          %s405 = int_to_ptr.vmem [resolvable:$true] %s404
          %407 = dma.hbm_to_vmem [thread:$0]  %s403, 256, %s405, %s390
        $region44: #{tpu_custom_call.1} parent=31 // pred_fallthru
          _
        // Predicated region
        $region45: #{tpu_custom_call.1} parent=31 // pred_check
          %p408 = pneg %p165
        $region46: #{tpu_custom_call.1} parent=31 // pred_check_branch
          %410 = sbr.rel (%p408) target = $region48
        $region47: #{tpu_custom_call.1} parent=31 // pred_region
          %s411 = sand.u32 %s26, 1
          %s412 = scalar_lea.sflag [#allocation11], %s411
          %s413 = sand.u32 %s155, 1
          %s414 = smul.addr %s413, 16
          %s415 = scalar_lea.vmem [#allocation10], %s414
          %s416 = smul.u32 2, %s34
          %418 = vsyncadd %s412, 0
          %s419 = smul.addr %s33, 4
          %s420 = sadd.s32 %s416, %s419
          %s421 = smul.addr %s420, 8
          %s422 = scalar_lea.hbm %s4, %s421
          %s424 = sshll.u32 %s422, 4
          %s425 = int_to_ptr.hbm [resolvable:$true] %s424
          %s426 = sshll.u32 %s415, 4
          %s427 = int_to_ptr.vmem [resolvable:$true] %s426
          %429 = dma.hbm_to_vmem [thread:$0]  %s425, 256, %s427, %s412
        $region48: #{tpu_custom_call.1} parent=31 // pred_fallthru
          _
        // Predicated region
        $region49: #{tpu_custom_call.1} parent=31 // pred_check
          %p430 = pneg %p191
        $region50: #{tpu_custom_call.1} parent=31 // pred_check_branch
          %432 = sbr.rel (%p430) target = $region52
        $region51: #{tpu_custom_call.1} parent=31 // pred_region
          #allocation17 [shape = 'u32[6]{0}', space=smem, size = 0x18, scoped, tag = 'DMA stride descriptor']
          %s433 = sand.u32 %s26, 1
          %s434 = scalar_lea.sflag [#allocation11], %s433
          %s435 = sand.u32 %s181, 1
          %s436 = smul.addr %s435, 2048
          %s437 = scalar_lea.vmem [#allocation12], %s436
          %s438 = smul.u32 32, %s34
          %440 = vsyncadd %s434, 0
          %s441 = smul.addr %s438, 2
          %s442 = smul.addr %s441, 4
          %s443 = scalar_lea.hbm %s5, %s442
          %s445 = sshll.u32 1, 14
          %s446 = sxor.u32 4294967295, %s445
          %s448 = sld [smem:[#allocation0]]
          %s449 = sadd.s32 2, %s448
          %s451 = sshll.u32 7, 26
          %s452 = sxor.u32 4294967295, %s451
          %s453 = sand.u32 0, %s452
          %s454 = sshll.u32 %s449, 26
          %s455 = sor.u32 %s453, %s454
          %s456 = sshll.u32 %s443, 4
          %s457 = int_to_ptr.hbm [resolvable:$true] %s456
          %s458 = sshll.u32 %s437, 4
          %s459 = int_to_ptr.vmem [resolvable:$true] %s458
          %465 = sst [smem:[#allocation17]] 8192
          %s466 = scalar_lea.smem [#allocation17], 1
          %467 = sst [smem:[%s466]] 4096
          %s468 = scalar_lea.smem [#allocation17], 2
          %469 = sst [smem:[%s468]] 32
          %s470 = scalar_lea.smem [#allocation17], 3
          %471 = sst [smem:[%s470]] 128
          %s472 = scalar_lea.smem [#allocation17], 4
          %473 = sst [smem:[%s472]] 128
          %s474 = scalar_lea.smem [#allocation17], 5
          %475 = sst [smem:[%s474]] 8
          %477 = dma.general %s457, 32768, %s459, %s434, [#allocation16], [#allocation17], %s455, 0
        $region52: #{tpu_custom_call.1} parent=31 // pred_fallthru
          _
      $region32: #{tpu_custom_call.1} parent=5 // pred_fallthru
        _
      %p478 = scmp.le.s32.totalorder 1, %s26
      %p479 = scmp.lt.s32.totalorder %s26, 3
      %p480 = pnand %p478, %p479
      %p481 = pneg %p480
      // Predicated region
      $region53: #{tpu_custom_call.1} parent=5 // pred_check
        _
      $region54: #{tpu_custom_call.1} parent=5 // pred_check_branch
        %483 = sbr.rel (%p480) target = $region56
      $region55: #{tpu_custom_call.1} parent=5 // pred_region
        %s484 = ssub.s32 %s26, 1
        // Predicated region
        $region57: #{tpu_custom_call.1} parent=55 // pred_check
          %p485 = pneg %p59
        $region58: #{tpu_custom_call.1} parent=55 // pred_check_branch
          %487 = sbr.rel (%p485) target = $region60
        $region59: #{tpu_custom_call.1} parent=55 // pred_region
          %489 = dma.done [#allocation5], 64
        $region60: #{tpu_custom_call.1} parent=55 // pred_fallthru
          _
        %s490 = sand.u32 %s74, 1
        %s491 = scalar_lea.sflag [#allocation4], %s490
        %s492 = sand.u32 %s74, 1
        %s493 = smul.addr %s492, 16
        %s494 = scalar_lea.vmem [#allocation6], %s493
        // Predicated region
        $region61: #{tpu_custom_call.1} parent=55 // pred_check
          %p495 = pneg %p87
        $region62: #{tpu_custom_call.1} parent=55 // pred_check_branch
          %497 = sbr.rel (%p495) target = $region64
        $region63: #{tpu_custom_call.1} parent=55 // pred_region
          %499 = dma.done %s491, 256
        $region64: #{tpu_custom_call.1} parent=55 // pred_fallthru
          _
        %s500 = sand.u32 %s31, 1
        %s501 = scalar_lea.sflag [#allocation8], %s500
        %s502 = sand.u32 %s102, 1
        %s503 = smul.addr %s502, 16
        %s504 = scalar_lea.vmem [#allocation7], %s503
        // Predicated region
        $region65: #{tpu_custom_call.1} parent=55 // pred_check
          %p505 = pneg %p115
        $region66: #{tpu_custom_call.1} parent=55 // pred_check_branch
          %507 = sbr.rel (%p505) target = $region68
        $region67: #{tpu_custom_call.1} parent=55 // pred_region
          %509 = dma.done %s501, 256
        $region68: #{tpu_custom_call.1} parent=55 // pred_fallthru
          _
        %s510 = sand.u32 %s31, 1
        %s511 = scalar_lea.sflag [#allocation8], %s510
        %s512 = sand.u32 %s130, 1
        %s513 = smul.addr %s512, 16
        %s514 = scalar_lea.vmem [#allocation9], %s513
        // Predicated region
        $region69: #{tpu_custom_call.1} parent=55 // pred_check
          %p515 = pneg %p143
        $region70: #{tpu_custom_call.1} parent=55 // pred_check_branch
          %517 = sbr.rel (%p515) target = $region72
        $region71: #{tpu_custom_call.1} parent=55 // pred_region
          %519 = dma.done %s511, 256
        $region72: #{tpu_custom_call.1} parent=55 // pred_fallthru
          _
        %s520 = sand.u32 %s31, 1
        %s521 = scalar_lea.sflag [#allocation11], %s520
        %s522 = sand.u32 %s158, 1
        %s523 = smul.addr %s522, 16
        %s524 = scalar_lea.vmem [#allocation10], %s523
        // Predicated region
        $region73: #{tpu_custom_call.1} parent=55 // pred_check
          %p525 = pneg %p171
        $region74: #{tpu_custom_call.1} parent=55 // pred_check_branch
          %527 = sbr.rel (%p525) target = $region76
        $region75: #{tpu_custom_call.1} parent=55 // pred_region
          %529 = dma.done %s521, 256
        $region76: #{tpu_custom_call.1} parent=55 // pred_fallthru
          _
        %s530 = sand.u32 %s31, 1
        %s531 = scalar_lea.sflag [#allocation11], %s530
        %s532 = sand.u32 %s184, 1
        %s533 = smul.addr %s532, 2048
        %s534 = scalar_lea.vmem [#allocation12], %s533
        // Predicated region
        $region77: #{tpu_custom_call.1} parent=55 // pred_check
          %p535 = pneg %p197
        $region78: #{tpu_custom_call.1} parent=55 // pred_check_branch
          %537 = sbr.rel (%p535) target = $region80
        $region79: #{tpu_custom_call.1} parent=55 // pred_region
          %539 = dma.done %s531, 32768
        $region80: #{tpu_custom_call.1} parent=55 // pred_fallthru
          _
        // Predicated region
        $region81: #{tpu_custom_call.1} parent=55 // pred_check
          %p540 = pneg %p218
        $region82: #{tpu_custom_call.1} parent=55 // pred_check_branch
          %542 = sbr.rel (%p540) target = $region84
        $region83: #{tpu_custom_call.1} parent=55 // pred_region
          %544 = dma.done [#allocation14], 32
        $region84: #{tpu_custom_call.1} parent=55 // pred_fallthru
          _
        // Predicated region
        $region85: #{tpu_custom_call.1} parent=55 // pred_check
          %p545 = pneg %p260
        $region86: #{tpu_custom_call.1} parent=55 // pred_check_branch
          %547 = sbr.rel (%p545) target = $region88
        $region87: #{tpu_custom_call.1} parent=55 // pred_region
          %549 = dma.done [#allocation14], 16
        $region88: #{tpu_custom_call.1} parent=55 // pred_fallthru
          _
        %550 = sfence
        %p551 = pneg %p59
        %p552 = pneg %p56
        %s553 = sand.u32 %s74, 1
        %s554 = scalar_lea.sflag [#allocation4], %s553
        %s555 = sand.u32 %s74, 1
        %s556 = smul.addr %s555, 16
        %s557 = scalar_lea.vmem [#allocation6], %s556
        %p558 = pneg %p87
        %p559 = pneg %p84
        %s560 = sand.u32 %s31, 1
        %s561 = scalar_lea.sflag [#allocation8], %s560
        %s562 = sand.u32 %s102, 1
        %s563 = smul.addr %s562, 16
        %s564 = scalar_lea.vmem [#allocation7], %s563
        %p565 = pneg %p115
        %p566 = pneg %p112
        %s567 = sand.u32 %s31, 1
        %s568 = scalar_lea.sflag [#allocation8], %s567
        %s569 = sand.u32 %s130, 1
        %s570 = smul.addr %s569, 16
        %s571 = scalar_lea.vmem [#allocation9], %s570
        %p572 = pneg %p143
        %p573 = pneg %p140
        %s574 = sand.u32 %s31, 1
        %s575 = scalar_lea.sflag [#allocation11], %s574
        %s576 = sand.u32 %s158, 1
        %s577 = smul.addr %s576, 16
        %s578 = scalar_lea.vmem [#allocation10], %s577
        %p579 = pneg %p171
        %p580 = pneg %p168
        %s581 = sand.u32 %s31, 1
        %s582 = scalar_lea.sflag [#allocation11], %s581
        %s583 = sand.u32 %s184, 1
        %s584 = smul.addr %s583, 2048
        %s585 = scalar_lea.vmem [#allocation12], %s584
        %p586 = pneg %p197
        %p587 = pneg %p194
        %p588 = pneg %p218
        %p589 = pneg %p215
        %p590 = pneg %p239
        %p591 = pneg %p236
        %p592 = pneg %p260
        %p593 = pneg %p257
        %p594 = pneg %p286
        %p595 = pneg %p283
        %p596 = scmp.lt.s32.totalorder %s35, 0
        %s597 = scalar_select %p596, %s35, 0
        %s598 = smul.addr %s597, 8
        %s599 = scalar_lea.vmem %s9, %s598
        %s600 = smul.u32 2, %s36
        %s601 = smul.u32 2, %s36
        %s602 = smul.u32 2, %s36
        %s603 = smul.u32 2, %s36
        %s604 = smul.u32 32, %s36
        %p605 = scmp.lt.s32.totalorder %s35, 0
        %s606 = scalar_select %p605, %s35, 0
        %s607 = smul.addr %s606, 8
        %s608 = scalar_lea.vmem %s9, %s607
        %p609 = scmp.eq.s32.totalorder %s36, 0
        // Predicated region
        $region89: #{tpu_custom_call.1} parent=55 // pred_check
          %p610 = pneg %p609
        $region90: #{tpu_custom_call.1} parent=55 // pred_check_branch
          %612 = sbr.rel (%p610) target = $region92
        $region91: #{tpu_custom_call.1} parent=55 // pred_region
          %613 = vst [vmem:[#allocation2] sm:$0xff] 0.0
          %614 = vst [vmem:[#allocation2 + $0x8] sm:$0xff] 0.0
        $region92: #{tpu_custom_call.1} parent=55 // pred_fallthru
          _
        %v615 = vld [vmem:[%s494] sm:$0xff]
        %v616 = vld [vmem:[%s494 + $0x8] sm:$0xff]
        %v617 = vld [vmem:[%s504] sm:$0xff]
        %v618 = vld [vmem:[%s504 + $0x8] sm:$0xff]
        %v619 = vld [vmem:[%s514] sm:$0xff]
        %v620 = vld [vmem:[%s514 + $0x8] sm:$0xff]
        %v621 = vld [vmem:[%s524] sm:$0xff]
        %v622 = vld [vmem:[%s524 + $0x8] sm:$0xff]
        %v623 = vld [vmem:[#allocation2] sm:$0xff]
        %v624 = vld [vmem:[#allocation2 + $0x8] sm:$0xff]
        %s625 = sld [smem:[#allocation3]]
        %s626 = sld [smem:[#allocation3 + $0x80]]
        %s627 = sld [smem:[#allocation3 + $0x100]]
        %s628 = sld [smem:[#allocation3 + $0x180]]
        %v629 = vstv %s625
        %v630 = vmul.f32 %v629, %v619
        %v631 = vmul.f32 %v629, %v620
        %v632 = vstv %s626
        %v633 = vmul.f32 %v632, %v615
        %v634 = vmul.f32 %v632, %v616
        %v635 = vadd.f32 %v630, %v633
        %v636 = vadd.f32 %v631, %v634
        %v637 = vstv %s627
        %v638 = vmul.f32 %v637, %v617
        %v639 = vmul.f32 %v637, %v618
        %v640 = vadd.f32 %v635, %v638
        %v641 = vadd.f32 %v636, %v639
        %v642 = vstv %s628
        %v643 = vadd.f32 %v640, %v642
        %v644 = vadd.f32 %v641, %v642
        %v645 = vmul.f32 %v629, %v615
        %v646 = vmul.f32 %v629, %v616
        %v647 = vmul.f32 %v632, %v617
        %v648 = vmul.f32 %v632, %v618
        %v649 = vadd.f32 %v645, %v647
        %v650 = vadd.f32 %v646, %v648
        %v651 = vmul.f32 %v637, %v621
        %v652 = vmul.f32 %v637, %v622
        %v653 = vadd.f32 %v649, %v651
        %v654 = vadd.f32 %v650, %v652
        %v655 = vadd.f32 %v653, %v642
        %v656 = vadd.f32 %v654, %v642
        %v657 = vmax.f32 %v643, %v655
        %v658 = vmax.f32 %v644, %v656
        %v659 = vmax.f32 %v657, 0.0
        %v660 = vmax.f32 %v658, 0.0
        %v661 = vpack.c.bf16 %v659, %v659
        %v662 = vpack.c.bf16 %v660, %v660
        %v663 = vld [vmem:[%s534] sm:$0xff]
        %v664 = vld [vmem:[%s534 + $0x8] sm:$0xff]
        %v665 = vld [vmem:[%s534 + $0x10] sm:$0xff]
        %v666 = vld [vmem:[%s534 + $0x18] sm:$0xff]
        %v667 = vld [vmem:[%s534 + $0x20] sm:$0xff]
        %v668 = vld [vmem:[%s534 + $0x28] sm:$0xff]
        %v669 = vld [vmem:[%s534 + $0x30] sm:$0xff]
        %v670 = vld [vmem:[%s534 + $0x38] sm:$0xff]
        %v671 = vld [vmem:[%s534 + $0x40] sm:$0xff]
        %v672 = vld [vmem:[%s534 + $0x48] sm:$0xff]
        %v673 = vld [vmem:[%s534 + $0x50] sm:$0xff]
        %v674 = vld [vmem:[%s534 + $0x58] sm:$0xff]
        %v675 = vld [vmem:[%s534 + $0x60] sm:$0xff]
        %v676 = vld [vmem:[%s534 + $0x68] sm:$0xff]
        %v677 = vld [vmem:[%s534 + $0x70] sm:$0xff]
        %v678 = vld [vmem:[%s534 + $0x78] sm:$0xff]
        %v679 = vld [vmem:[%s534 + $0x80] sm:$0xff]
        %v680 = vld [vmem:[%s534 + $0x88] sm:$0xff]
        %v681 = vld [vmem:[%s534 + $0x90] sm:$0xff]
        %v682 = vld [vmem:[%s534 + $0x98] sm:$0xff]
        %v683 = vld [vmem:[%s534 + $0xa0] sm:$0xff]
        %v684 = vld [vmem:[%s534 + $0xa8] sm:$0xff]
        %v685 = vld [vmem:[%s534 + $0xb0] sm:$0xff]
        %v686 = vld [vmem:[%s534 + $0xb8] sm:$0xff]
        %v687 = vld [vmem:[%s534 + $0xc0] sm:$0xff]
        %v688 = vld [vmem:[%s534 + $0xc8] sm:$0xff]
        %v689 = vld [vmem:[%s534 + $0xd0] sm:$0xff]
        %v690 = vld [vmem:[%s534 + $0xd8] sm:$0xff]
        %v691 = vld [vmem:[%s534 + $0xe0] sm:$0xff]
        %v692 = vld [vmem:[%s534 + $0xe8] sm:$0xff]
        %v693 = vld [vmem:[%s534 + $0xf0] sm:$0xff]
        %v694 = vld [vmem:[%s534 + $0xf8] sm:$0xff]
        %v727 = vunpack.c.l.b16 %v663
        %v728 = vunpack.c.h.b16 %v663
        %v729 = vunpack.c.l.b16 %v664
        %v730 = vunpack.c.h.b16 %v664
        %v731 = vunpack.c.l.b16 %v665
        %v732 = vunpack.c.h.b16 %v665
        %v733 = vunpack.c.l.b16 %v666
        %v734 = vunpack.c.h.b16 %v666
        %v735 = vunpack.c.l.b16 %v667
        %v736 = vunpack.c.h.b16 %v667
        %v737 = vunpack.c.l.b16 %v668
        %v738 = vunpack.c.h.b16 %v668
        %v739 = vunpack.c.l.b16 %v669
        %v740 = vunpack.c.h.b16 %v669
        %v741 = vunpack.c.l.b16 %v670
        %v742 = vunpack.c.h.b16 %v670
        %v743 = vunpack.c.l.b16 %v671
        %v744 = vunpack.c.h.b16 %v671
        %v745 = vunpack.c.l.b16 %v672
        %v746 = vunpack.c.h.b16 %v672
        %v747 = vunpack.c.l.b16 %v673
        %v748 = vunpack.c.h.b16 %v673
        %v749 = vunpack.c.l.b16 %v674
        %v750 = vunpack.c.h.b16 %v674
        %v751 = vunpack.c.l.b16 %v675
        %v752 = vunpack.c.h.b16 %v675
        %v753 = vunpack.c.l.b16 %v676
        %v754 = vunpack.c.h.b16 %v676
        %v755 = vunpack.c.l.b16 %v677
        %v756 = vunpack.c.h.b16 %v677
        %v757 = vunpack.c.l.b16 %v678
        %v758 = vunpack.c.h.b16 %v678
        %v759 = vunpack.c.l.b16 %v679
        %v760 = vunpack.c.h.b16 %v679
        %v761 = vunpack.c.l.b16 %v680
        %v762 = vunpack.c.h.b16 %v680
        %v763 = vunpack.c.l.b16 %v681
        %v764 = vunpack.c.h.b16 %v681
        %v765 = vunpack.c.l.b16 %v682
        %v766 = vunpack.c.h.b16 %v682
        %v767 = vunpack.c.l.b16 %v683
        %v768 = vunpack.c.h.b16 %v683
        %v769 = vunpack.c.l.b16 %v684
        %v770 = vunpack.c.h.b16 %v684
        %v771 = vunpack.c.l.b16 %v685
        %v772 = vunpack.c.h.b16 %v685
        %v773 = vunpack.c.l.b16 %v686
        %v774 = vunpack.c.h.b16 %v686
        %v775 = vunpack.c.l.b16 %v687
        %v776 = vunpack.c.h.b16 %v687
        %v777 = vunpack.c.l.b16 %v688
        %v778 = vunpack.c.h.b16 %v688
        %v779 = vunpack.c.l.b16 %v689
        %v780 = vunpack.c.h.b16 %v689
        %v781 = vunpack.c.l.b16 %v690
        %v782 = vunpack.c.h.b16 %v690
        %v783 = vunpack.c.l.b16 %v691
        %v784 = vunpack.c.h.b16 %v691
        %v785 = vunpack.c.l.b16 %v692
        %v786 = vunpack.c.h.b16 %v692
        %v787 = vunpack.c.l.b16 %v693
        %v788 = vunpack.c.h.b16 %v693
        %v789 = vunpack.c.l.b16 %v694
        %v790 = vunpack.c.h.b16 %v694
        %v791 = vpack.c.b16 %v729, %v727
        %v792 = vpack.c.b16 %v730, %v728
        %v793 = vpack.c.b16 %v733, %v731
        %v794 = vpack.c.b16 %v734, %v732
        %v795 = vpack.c.b16 %v737, %v735
        %v796 = vpack.c.b16 %v738, %v736
        %v797 = vpack.c.b16 %v741, %v739
        %v798 = vpack.c.b16 %v742, %v740
        %v799 = vpack.c.b16 %v745, %v743
        %v800 = vpack.c.b16 %v746, %v744
        %v801 = vpack.c.b16 %v749, %v747
        %v802 = vpack.c.b16 %v750, %v748
        %v803 = vpack.c.b16 %v753, %v751
        %v804 = vpack.c.b16 %v754, %v752
        %v805 = vpack.c.b16 %v757, %v755
        %v806 = vpack.c.b16 %v758, %v756
        %v807 = vpack.c.b16 %v761, %v759
        %v808 = vpack.c.b16 %v762, %v760
        %v809 = vpack.c.b16 %v765, %v763
        %v810 = vpack.c.b16 %v766, %v764
        %v811 = vpack.c.b16 %v769, %v767
        %v812 = vpack.c.b16 %v770, %v768
        %v813 = vpack.c.b16 %v773, %v771
        %v814 = vpack.c.b16 %v774, %v772
        %v815 = vpack.c.b16 %v777, %v775
        %v816 = vpack.c.b16 %v778, %v776
        %v817 = vpack.c.b16 %v781, %v779
        %v818 = vpack.c.b16 %v782, %v780
        %v819 = vpack.c.b16 %v785, %v783
        %v820 = vpack.c.b16 %v786, %v784
        %v821 = vpack.c.b16 %v789, %v787
        %v822 = vpack.c.b16 %v790, %v788
        %855 = vmatpush.bf16.msra.mxu0 %v805
        %856 = vmatpush.bf16.msra.mxu0 %v803
        %857 = vmatpush.bf16.msra.mxu0 %v801
        %858 = vmatpush.bf16.msra.mxu0 %v799
        %859 = vmatpush.bf16.msra.mxu0 %v797
        %860 = vmatpush.bf16.msra.mxu0 %v795
        %861 = vmatpush.bf16.msra.mxu0 %v793
        %862 = vmatpush.bf16.msra.mxu0 %v791
        %863 = vmatmul.bf16.gmra.mxu0 %v661
        %v864 = vpop.f32.mrf.mxu0
        %v865 = vadd.f32 0.0, %v864
        %v866 = vpop.f32.mrf.mxu0
        %867 = vdwg.mxu0
        %868 = vmatpush.bf16.msra.mxu0 %v821
        %869 = vmatpush.bf16.msra.mxu0 %v819
        %870 = vmatpush.bf16.msra.mxu0 %v817
        %871 = vmatpush.bf16.msra.mxu0 %v815
        %872 = vmatpush.bf16.msra.mxu0 %v813
        %873 = vmatpush.bf16.msra.mxu0 %v811
        %874 = vmatpush.bf16.msra.mxu0 %v809
        %875 = vmatpush.bf16.msra.mxu0 %v807
        %876 = vmatmul.bf16.gmra.mxu0 %v662
        %v877 = vpop.f32.mrf.mxu0
        %v878 = vadd.f32 %v865, %v877
        %v879 = vpop.f32.mrf.mxu0
        %880 = vdwg.mxu0
        %881 = vmatpush.bf16.msra.mxu0 %v806
        %882 = vmatpush.bf16.msra.mxu0 %v804
        %883 = vmatpush.bf16.msra.mxu0 %v802
        %884 = vmatpush.bf16.msra.mxu0 %v800
        %885 = vmatpush.bf16.msra.mxu0 %v798
        %886 = vmatpush.bf16.msra.mxu0 %v796
        %887 = vmatpush.bf16.msra.mxu0 %v794
        %888 = vmatpush.bf16.msra.mxu0 %v792
        %889 = vmatmul.bf16.gmra.mxu0 %v661
        %v890 = vpop.f32.mrf.mxu0
        %v891 = vadd.f32 0.0, %v890
        %v892 = vpop.f32.mrf.mxu0
        %893 = vdwg.mxu0
        %894 = vmatpush.bf16.msra.mxu0 %v822
        %895 = vmatpush.bf16.msra.mxu0 %v820
        %896 = vmatpush.bf16.msra.mxu0 %v818
        %897 = vmatpush.bf16.msra.mxu0 %v816
        %898 = vmatpush.bf16.msra.mxu0 %v814
        %899 = vmatpush.bf16.msra.mxu0 %v812
        %900 = vmatpush.bf16.msra.mxu0 %v810
        %901 = vmatpush.bf16.msra.mxu0 %v808
        %902 = vmatmul.bf16.gmra.mxu0 %v662
        %v903 = vpop.f32.mrf.mxu0
        %v904 = vadd.f32 %v891, %v903
        %v905 = vpop.f32.mrf.mxu0
        %906 = vdwg.mxu0
        %v907 = vadd.f32 %v623, %v878
        %v908 = vadd.f32 %v624, %v904
        %s909 = sld [smem:[#allocation3 + $0x1]]
        %s910 = sld [smem:[#allocation3 + $0x81]]
        %s911 = sld [smem:[#allocation3 + $0x101]]
        %s912 = sld [smem:[#allocation3 + $0x181]]
        %v913 = vstv %s909
        %v914 = vmul.f32 %v913, %v619
        %v915 = vmul.f32 %v913, %v620
        %v916 = vstv %s910
        %v917 = vmul.f32 %v916, %v615
        %v918 = vmul.f32 %v916, %v616
        %v919 = vadd.f32 %v914, %v917
        %v920 = vadd.f32 %v915, %v918
        %v921 = vstv %s911
        %v922 = vmul.f32 %v921, %v617
        %v923 = vmul.f32 %v921, %v618
        %v924 = vadd.f32 %v919, %v922
        %v925 = vadd.f32 %v920, %v923
        %v926 = vstv %s912
        %v927 = vadd.f32 %v924, %v926
        %v928 = vadd.f32 %v925, %v926
        %v929 = vmul.f32 %v913, %v615
        %v930 = vmul.f32 %v913, %v616
        %v931 = vmul.f32 %v916, %v617
        %v932 = vmul.f32 %v916, %v618
        %v933 = vadd.f32 %v929, %v931
        %v934 = vadd.f32 %v930, %v932
        %v935 = vmul.f32 %v921, %v621
        %v936 = vmul.f32 %v921, %v622
        %v937 = vadd.f32 %v933, %v935
        %v938 = vadd.f32 %v934, %v936
        %v939 = vadd.f32 %v937, %v926
        %v940 = vadd.f32 %v938, %v926
        %v941 = vmax.f32 %v927, %v939
        %v942 = vmax.f32 %v928, %v940
        %v943 = vmax.f32 %v941, 0.0
        %v944 = vmax.f32 %v942, 0.0
        %v945 = vpack.c.bf16 %v943, %v943
        %v946 = vpack.c.bf16 %v944, %v944
        %s947 = scalar_lea.vmem %s534, 256 [#allocation12]
        %v948 = vld [vmem:[%s947] sm:$0xff]
        %v949 = vld [vmem:[%s947 + $0x8] sm:$0xff]
        %v950 = vld [vmem:[%s947 + $0x10] sm:$0xff]
        %v951 = vld [vmem:[%s947 + $0x18] sm:$0xff]
        %v952 = vld [vmem:[%s947 + $0x20] sm:$0xff]
        %v953 = vld [vmem:[%s947 + $0x28] sm:$0xff]
        %v954 = vld [vmem:[%s947 + $0x30] sm:$0xff]
        %v955 = vld [vmem:[%s947 + $0x38] sm:$0xff]
        %v956 = vld [vmem:[%s947 + $0x40] sm:$0xff]
        %v957 = vld [vmem:[%s947 + $0x48] sm:$0xff]
        %v958 = vld [vmem:[%s947 + $0x50] sm:$0xff]
        %v959 = vld [vmem:[%s947 + $0x58] sm:$0xff]
        %v960 = vld [vmem:[%s947 + $0x60] sm:$0xff]
        %v961 = vld [vmem:[%s947 + $0x68] sm:$0xff]
        %v962 = vld [vmem:[%s947 + $0x70] sm:$0xff]
        %v963 = vld [vmem:[%s947 + $0x78] sm:$0xff]
        %v964 = vld [vmem:[%s947 + $0x80] sm:$0xff]
        %v965 = vld [vmem:[%s947 + $0x88] sm:$0xff]
        %v966 = vld [vmem:[%s947 + $0x90] sm:$0xff]
        %v967 = vld [vmem:[%s947 + $0x98] sm:$0xff]
        %v968 = vld [vmem:[%s947 + $0xa0] sm:$0xff]
        %v969 = vld [vmem:[%s947 + $0xa8] sm:$0xff]
        %v970 = vld [vmem:[%s947 + $0xb0] sm:$0xff]
        %v971 = vld [vmem:[%s947 + $0xb8] sm:$0xff]
        %v972 = vld [vmem:[%s947 + $0xc0] sm:$0xff]
        %v973 = vld [vmem:[%s947 + $0xc8] sm:$0xff]
        %v974 = vld [vmem:[%s947 + $0xd0] sm:$0xff]
        %v975 = vld [vmem:[%s947 + $0xd8] sm:$0xff]
        %v976 = vld [vmem:[%s947 + $0xe0] sm:$0xff]
        %v977 = vld [vmem:[%s947 + $0xe8] sm:$0xff]
        %v978 = vld [vmem:[%s947 + $0xf0] sm:$0xff]
        %v979 = vld [vmem:[%s947 + $0xf8] sm:$0xff]
        %v1012 = vunpack.c.l.b16 %v948
        %v1013 = vunpack.c.h.b16 %v948
        %v1014 = vunpack.c.l.b16 %v949
        %v1015 = vunpack.c.h.b16 %v949
        %v1016 = vunpack.c.l.b16 %v950
        %v1017 = vunpack.c.h.b16 %v950
        %v1018 = vunpack.c.l.b16 %v951
        %v1019 = vunpack.c.h.b16 %v951
        %v1020 = vunpack.c.l.b16 %v952
        %v1021 = vunpack.c.h.b16 %v952
        %v1022 = vunpack.c.l.b16 %v953
        %v1023 = vunpack.c.h.b16 %v953
        %v1024 = vunpack.c.l.b16 %v954
        %v1025 = vunpack.c.h.b16 %v954
        %v1026 = vunpack.c.l.b16 %v955
        %v1027 = vunpack.c.h.b16 %v955
        %v1028 = vunpack.c.l.b16 %v956
        %v1029 = vunpack.c.h.b16 %v956
        %v1030 = vunpack.c.l.b16 %v957
        %v1031 = vunpack.c.h.b16 %v957
        %v1032 = vunpack.c.l.b16 %v958
        %v1033 = vunpack.c.h.b16 %v958
        %v1034 = vunpack.c.l.b16 %v959
        %v1035 = vunpack.c.h.b16 %v959
        %v1036 = vunpack.c.l.b16 %v960
        %v1037 = vunpack.c.h.b16 %v960
        %v1038 = vunpack.c.l.b16 %v961
        %v1039 = vunpack.c.h.b16 %v961
        %v1040 = vunpack.c.l.b16 %v962
        %v1041 = vunpack.c.h.b16 %v962
        %v1042 = vunpack.c.l.b16 %v963
        %v1043 = vunpack.c.h.b16 %v963
        %v1044 = vunpack.c.l.b16 %v964
        %v1045 = vunpack.c.h.b16 %v964
        %v1046 = vunpack.c.l.b16 %v965
        %v1047 = vunpack.c.h.b16 %v965
        %v1048 = vunpack.c.l.b16 %v966
        %v1049 = vunpack.c.h.b16 %v966
        %v1050 = vunpack.c.l.b16 %v967
        %v1051 = vunpack.c.h.b16 %v967
        %v1052 = vunpack.c.l.b16 %v968
        %v1053 = vunpack.c.h.b16 %v968
        %v1054 = vunpack.c.l.b16 %v969
        %v1055 = vunpack.c.h.b16 %v969
        %v1056 = vunpack.c.l.b16 %v970
        %v1057 = vunpack.c.h.b16 %v970
        %v1058 = vunpack.c.l.b16 %v971
        %v1059 = vunpack.c.h.b16 %v971
        %v1060 = vunpack.c.l.b16 %v972
        %v1061 = vunpack.c.h.b16 %v972
        %v1062 = vunpack.c.l.b16 %v973
        %v1063 = vunpack.c.h.b16 %v973
        %v1064 = vunpack.c.l.b16 %v974
        %v1065 = vunpack.c.h.b16 %v974
        %v1066 = vunpack.c.l.b16 %v975
        %v1067 = vunpack.c.h.b16 %v975
        %v1068 = vunpack.c.l.b16 %v976
        %v1069 = vunpack.c.h.b16 %v976
        %v1070 = vunpack.c.l.b16 %v977
        %v1071 = vunpack.c.h.b16 %v977
        %v1072 = vunpack.c.l.b16 %v978
        %v1073 = vunpack.c.h.b16 %v978
        %v1074 = vunpack.c.l.b16 %v979
        %v1075 = vunpack.c.h.b16 %v979
        %v1076 = vpack.c.b16 %v1014, %v1012
        %v1077 = vpack.c.b16 %v1015, %v1013
        %v1078 = vpack.c.b16 %v1018, %v1016
        %v1079 = vpack.c.b16 %v1019, %v1017
        %v1080 = vpack.c.b16 %v1022, %v1020
        %v1081 = vpack.c.b16 %v1023, %v1021
        %v1082 = vpack.c.b16 %v1026, %v1024
        %v1083 = vpack.c.b16 %v1027, %v1025
        %v1084 = vpack.c.b16 %v1030, %v1028
        %v1085 = vpack.c.b16 %v1031, %v1029
        %v1086 = vpack.c.b16 %v1034, %v1032
        %v1087 = vpack.c.b16 %v1035, %v1033
        %v1088 = vpack.c.b16 %v1038, %v1036
        %v1089 = vpack.c.b16 %v1039, %v1037
        %v1090 = vpack.c.b16 %v1042, %v1040
        %v1091 = vpack.c.b16 %v1043, %v1041
        %v1092 = vpack.c.b16 %v1046, %v1044
        %v1093 = vpack.c.b16 %v1047, %v1045
        %v1094 = vpack.c.b16 %v1050, %v1048
        %v1095 = vpack.c.b16 %v1051, %v1049
        %v1096 = vpack.c.b16 %v1054, %v1052
        %v1097 = vpack.c.b16 %v1055, %v1053
        %v1098 = vpack.c.b16 %v1058, %v1056
        %v1099 = vpack.c.b16 %v1059, %v1057
        %v1100 = vpack.c.b16 %v1062, %v1060
        %v1101 = vpack.c.b16 %v1063, %v1061
        %v1102 = vpack.c.b16 %v1066, %v1064
        %v1103 = vpack.c.b16 %v1067, %v1065
        %v1104 = vpack.c.b16 %v1070, %v1068
        %v1105 = vpack.c.b16 %v1071, %v1069
        %v1106 = vpack.c.b16 %v1074, %v1072
        %v1107 = vpack.c.b16 %v1075, %v1073
        %1140 = vmatpush.bf16.msra.mxu0 %v1090
        %1141 = vmatpush.bf16.msra.mxu0 %v1088
        %1142 = vmatpush.bf16.msra.mxu0 %v1086
        %1143 = vmatpush.bf16.msra.mxu0 %v1084
        %1144 = vmatpush.bf16.msra.mxu0 %v1082
        %1145 = vmatpush.bf16.msra.mxu0 %v1080
        %1146 = vmatpush.bf16.msra.mxu0 %v1078
        %1147 = vmatpush.bf16.msra.mxu0 %v1076
        %1148 = vmatmul.bf16.gmra.mxu0 %v945
        %v1149 = vpop.f32.mrf.mxu0
        %v1150 = vadd.f32 0.0, %v1149
        %v1151 = vpop.f32.mrf.mxu0
        %1152 = vdwg.mxu0
        %1153 = vmatpush.bf16.msra.mxu0 %v1106
        %1154 = vmatpush.bf16.msra.mxu0 %v1104
        %1155 = vmatpush.bf16.msra.mxu0 %v1102
        %1156 = vmatpush.bf16.msra.mxu0 %v1100
        %1157 = vmatpush.bf16.msra.mxu0 %v1098
        %1158 = vmatpush.bf16.msra.mxu0 %v1096
        %1159 = vmatpush.bf16.msra.mxu0 %v1094
        %1160 = vmatpush.bf16.msra.mxu0 %v1092
        %1161 = vmatmul.bf16.gmra.mxu0 %v946
        %v1162 = vpop.f32.mrf.mxu0
        %v1163 = vadd.f32 %v1150, %v1162
        %v1164 = vpop.f32.mrf.mxu0
        %1165 = vdwg.mxu0
        %1166 = vmatpush.bf16.msra.mxu0 %v1091
        %1167 = vmatpush.bf16.msra.mxu0 %v1089
        %1168 = vmatpush.bf16.msra.mxu0 %v1087
        %1169 = vmatpush.bf16.msra.mxu0 %v1085
        %1170 = vmatpush.bf16.msra.mxu0 %v1083
        %1171 = vmatpush.bf16.msra.mxu0 %v1081
        %1172 = vmatpush.bf16.msra.mxu0 %v1079
        %1173 = vmatpush.bf16.msra.mxu0 %v1077
        %1174 = vmatmul.bf16.gmra.mxu0 %v945
        %v1175 = vpop.f32.mrf.mxu0
        %v1176 = vadd.f32 0.0, %v1175
        %v1177 = vpop.f32.mrf.mxu0
        %1178 = vdwg.mxu0
        %1179 = vmatpush.bf16.msra.mxu0 %v1107
        %1180 = vmatpush.bf16.msra.mxu0 %v1105
        %1181 = vmatpush.bf16.msra.mxu0 %v1103
        %1182 = vmatpush.bf16.msra.mxu0 %v1101
        %1183 = vmatpush.bf16.msra.mxu0 %v1099
        %1184 = vmatpush.bf16.msra.mxu0 %v1097
        %1185 = vmatpush.bf16.msra.mxu0 %v1095
        %1186 = vmatpush.bf16.msra.mxu0 %v1093
        %1187 = vmatmul.bf16.gmra.mxu0 %v946
        %v1188 = vpop.f32.mrf.mxu0
        %v1189 = vadd.f32 %v1176, %v1188
        %v1190 = vpop.f32.mrf.mxu0
        %1191 = vdwg.mxu0
        %v1192 = vadd.f32 %v907, %v1163
        %v1193 = vadd.f32 %v908, %v1189
        %s1194 = sld [smem:[#allocation3 + $0x2]]
        %s1195 = sld [smem:[#allocation3 + $0x82]]
        %s1196 = sld [smem:[#allocation3 + $0x102]]
        %s1197 = sld [smem:[#allocation3 + $0x182]]
        %v1198 = vstv %s1194
        %v1199 = vmul.f32 %v1198, %v619
        %v1200 = vmul.f32 %v1198, %v620
        %v1201 = vstv %s1195
        %v1202 = vmul.f32 %v1201, %v615
        %v1203 = vmul.f32 %v1201, %v616
        %v1204 = vadd.f32 %v1199, %v1202
        %v1205 = vadd.f32 %v1200, %v1203
        %v1206 = vstv %s1196
        %v1207 = vmul.f32 %v1206, %v617
        %v1208 = vmul.f32 %v1206, %v618
        %v1209 = vadd.f32 %v1204, %v1207
        %v1210 = vadd.f32 %v1205, %v1208
        %v1211 = vstv %s1197
        %v1212 = vadd.f32 %v1209, %v1211
        %v1213 = vadd.f32 %v1210, %v1211
        %v1214 = vmul.f32 %v1198, %v615
        %v1215 = vmul.f32 %v1198, %v616
        %v1216 = vmul.f32 %v1201, %v617
        %v1217 = vmul.f32 %v1201, %v618
        %v1218 = vadd.f32 %v1214, %v1216
        %v1219 = vadd.f32 %v1215, %v1217
        %v1220 = vmul.f32 %v1206, %v621
        %v1221 = vmul.f32 %v1206, %v622
        %v1222 = vadd.f32 %v1218, %v1220
        %v1223 = vadd.f32 %v1219, %v1221
        %v1224 = vadd.f32 %v1222, %v1211
        %v1225 = vadd.f32 %v1223, %v1211
        %v1226 = vmax.f32 %v1212, %v1224
        %v1227 = vmax.f32 %v1213, %v1225
        %v1228 = vmax.f32 %v1226, 0.0
        %v1229 = vmax.f32 %v1227, 0.0
        %v1230 = vpack.c.bf16 %v1228, %v1228
        %v1231 = vpack.c.bf16 %v1229, %v1229
        %s1232 = scalar_lea.vmem %s534, 512 [#allocation12]
        %v1233 = vld [vmem:[%s1232] sm:$0xff]
        %v1234 = vld [vmem:[%s1232 + $0x8] sm:$0xff]
        %v1235 = vld [vmem:[%s1232 + $0x10] sm:$0xff]
        %v1236 = vld [vmem:[%s1232 + $0x18] sm:$0xff]
        %v1237 = vld [vmem:[%s1232 + $0x20] sm:$0xff]
        %v1238 = vld [vmem:[%s1232 + $0x28] sm:$0xff]
        %v1239 = vld [vmem:[%s1232 + $0x30] sm:$0xff]
        %v1240 = vld [vmem:[%s1232 + $0x38] sm:$0xff]
        %v1241 = vld [vmem:[%s1232 + $0x40] sm:$0xff]
        %v1242 = vld [vmem:[%s1232 + $0x48] sm:$0xff]
        %v1243 = vld [vmem:[%s1232 + $0x50] sm:$0xff]
        %v1244 = vld [vmem:[%s1232 + $0x58] sm:$0xff]
        %v1245 = vld [vmem:[%s1232 + $0x60] sm:$0xff]
        %v1246 = vld [vmem:[%s1232 + $0x68] sm:$0xff]
        %v1247 = vld [vmem:[%s1232 + $0x70] sm:$0xff]
        %v1248 = vld [vmem:[%s1232 + $0x78] sm:$0xff]
        %v1249 = vld [vmem:[%s1232 + $0x80] sm:$0xff]
        %v1250 = vld [vmem:[%s1232 + $0x88] sm:$0xff]
        %v1251 = vld [vmem:[%s1232 + $0x90] sm:$0xff]
        %v1252 = vld [vmem:[%s1232 + $0x98] sm:$0xff]
        %v1253 = vld [vmem:[%s1232 + $0xa0] sm:$0xff]
        %v1254 = vld [vmem:[%s1232 + $0xa8] sm:$0xff]
        %v1255 = vld [vmem:[%s1232 + $0xb0] sm:$0xff]
        %v1256 = vld [vmem:[%s1232 + $0xb8] sm:$0xff]
        %v1257 = vld [vmem:[%s1232 + $0xc0] sm:$0xff]
        %v1258 = vld [vmem:[%s1232 + $0xc8] sm:$0xff]
        %v1259 = vld [vmem:[%s1232 + $0xd0] sm:$0xff]
        %v1260 = vld [vmem:[%s1232 + $0xd8] sm:$0xff]
        %v1261 = vld [vmem:[%s1232 + $0xe0] sm:$0xff]
        %v1262 = vld [vmem:[%s1232 + $0xe8] sm:$0xff]
        %v1263 = vld [vmem:[%s1232 + $0xf0] sm:$0xff]
        %v1264 = vld [vmem:[%s1232 + $0xf8] sm:$0xff]
        %v1297 = vunpack.c.l.b16 %v1233
        %v1298 = vunpack.c.h.b16 %v1233
        %v1299 = vunpack.c.l.b16 %v1234
        %v1300 = vunpack.c.h.b16 %v1234
        %v1301 = vunpack.c.l.b16 %v1235
        %v1302 = vunpack.c.h.b16 %v1235
        %v1303 = vunpack.c.l.b16 %v1236
        %v1304 = vunpack.c.h.b16 %v1236
        %v1305 = vunpack.c.l.b16 %v1237
        %v1306 = vunpack.c.h.b16 %v1237
        %v1307 = vunpack.c.l.b16 %v1238
        %v1308 = vunpack.c.h.b16 %v1238
        %v1309 = vunpack.c.l.b16 %v1239
        %v1310 = vunpack.c.h.b16 %v1239
        %v1311 = vunpack.c.l.b16 %v1240
        %v1312 = vunpack.c.h.b16 %v1240
        %v1313 = vunpack.c.l.b16 %v1241
        %v1314 = vunpack.c.h.b16 %v1241
        %v1315 = vunpack.c.l.b16 %v1242
        %v1316 = vunpack.c.h.b16 %v1242
        %v1317 = vunpack.c.l.b16 %v1243
        %v1318 = vunpack.c.h.b16 %v1243
        %v1319 = vunpack.c.l.b16 %v1244
        %v1320 = vunpack.c.h.b16 %v1244
        %v1321 = vunpack.c.l.b16 %v1245
        %v1322 = vunpack.c.h.b16 %v1245
        %v1323 = vunpack.c.l.b16 %v1246
        %v1324 = vunpack.c.h.b16 %v1246
        %v1325 = vunpack.c.l.b16 %v1247
        %v1326 = vunpack.c.h.b16 %v1247
        %v1327 = vunpack.c.l.b16 %v1248
        %v1328 = vunpack.c.h.b16 %v1248
        %v1329 = vunpack.c.l.b16 %v1249
        %v1330 = vunpack.c.h.b16 %v1249
        %v1331 = vunpack.c.l.b16 %v1250
        %v1332 = vunpack.c.h.b16 %v1250
        %v1333 = vunpack.c.l.b16 %v1251
        %v1334 = vunpack.c.h.b16 %v1251
        %v1335 = vunpack.c.l.b16 %v1252
        %v1336 = vunpack.c.h.b16 %v1252
        %v1337 = vunpack.c.l.b16 %v1253
        %v1338 = vunpack.c.h.b16 %v1253
        %v1339 = vunpack.c.l.b16 %v1254
        %v1340 = vunpack.c.h.b16 %v1254
        %v1341 = vunpack.c.l.b16 %v1255
        %v1342 = vunpack.c.h.b16 %v1255
        %v1343 = vunpack.c.l.b16 %v1256
        %v1344 = vunpack.c.h.b16 %v1256
        %v1345 = vunpack.c.l.b16 %v1257
        %v1346 = vunpack.c.h.b16 %v1257
        %v1347 = vunpack.c.l.b16 %v1258
        %v1348 = vunpack.c.h.b16 %v1258
        %v1349 = vunpack.c.l.b16 %v1259
        %v1350 = vunpack.c.h.b16 %v1259
        %v1351 = vunpack.c.l.b16 %v1260
        %v1352 = vunpack.c.h.b16 %v1260
        %v1353 = vunpack.c.l.b16 %v1261
        %v1354 = vunpack.c.h.b16 %v1261
        %v1355 = vunpack.c.l.b16 %v1262
        %v1356 = vunpack.c.h.b16 %v1262
        %v1357 = vunpack.c.l.b16 %v1263
        %v1358 = vunpack.c.h.b16 %v1263
        %v1359 = vunpack.c.l.b16 %v1264
        %v1360 = vunpack.c.h.b16 %v1264
        %v1361 = vpack.c.b16 %v1299, %v1297
        %v1362 = vpack.c.b16 %v1300, %v1298
        %v1363 = vpack.c.b16 %v1303, %v1301
        %v1364 = vpack.c.b16 %v1304, %v1302
        %v1365 = vpack.c.b16 %v1307, %v1305
        %v1366 = vpack.c.b16 %v1308, %v1306
        %v1367 = vpack.c.b16 %v1311, %v1309
        %v1368 = vpack.c.b16 %v1312, %v1310
        %v1369 = vpack.c.b16 %v1315, %v1313
        %v1370 = vpack.c.b16 %v1316, %v1314
        %v1371 = vpack.c.b16 %v1319, %v1317
        %v1372 = vpack.c.b16 %v1320, %v1318
        %v1373 = vpack.c.b16 %v1323, %v1321
        %v1374 = vpack.c.b16 %v1324, %v1322
        %v1375 = vpack.c.b16 %v1327, %v1325
        %v1376 = vpack.c.b16 %v1328, %v1326
        %v1377 = vpack.c.b16 %v1331, %v1329
        %v1378 = vpack.c.b16 %v1332, %v1330
        %v1379 = vpack.c.b16 %v1335, %v1333
        %v1380 = vpack.c.b16 %v1336, %v1334
        %v1381 = vpack.c.b16 %v1339, %v1337
        %v1382 = vpack.c.b16 %v1340, %v1338
        %v1383 = vpack.c.b16 %v1343, %v1341
        %v1384 = vpack.c.b16 %v1344, %v1342
        %v1385 = vpack.c.b16 %v1347, %v1345
        %v1386 = vpack.c.b16 %v1348, %v1346
        %v1387 = vpack.c.b16 %v1351, %v1349
        %v1388 = vpack.c.b16 %v1352, %v1350
        %v1389 = vpack.c.b16 %v1355, %v1353
        %v1390 = vpack.c.b16 %v1356, %v1354
        %v1391 = vpack.c.b16 %v1359, %v1357
        %v1392 = vpack.c.b16 %v1360, %v1358
        %1425 = vmatpush.bf16.msra.mxu0 %v1375
        %1426 = vmatpush.bf16.msra.mxu0 %v1373
        %1427 = vmatpush.bf16.msra.mxu0 %v1371
        %1428 = vmatpush.bf16.msra.mxu0 %v1369
        %1429 = vmatpush.bf16.msra.mxu0 %v1367
        %1430 = vmatpush.bf16.msra.mxu0 %v1365
        %1431 = vmatpush.bf16.msra.mxu0 %v1363
        %1432 = vmatpush.bf16.msra.mxu0 %v1361
        %1433 = vmatmul.bf16.gmra.mxu0 %v1230
        %v1434 = vpop.f32.mrf.mxu0
        %v1435 = vadd.f32 0.0, %v1434
        %v1436 = vpop.f32.mrf.mxu0
        %1437 = vdwg.mxu0
        %1438 = vmatpush.bf16.msra.mxu0 %v1391
        %1439 = vmatpush.bf16.msra.mxu0 %v1389
        %1440 = vmatpush.bf16.msra.mxu0 %v1387
        %1441 = vmatpush.bf16.msra.mxu0 %v1385
        %1442 = vmatpush.bf16.msra.mxu0 %v1383
        %1443 = vmatpush.bf16.msra.mxu0 %v1381
        %1444 = vmatpush.bf16.msra.mxu0 %v1379
        %1445 = vmatpush.bf16.msra.mxu0 %v1377
        %1446 = vmatmul.bf16.gmra.mxu0 %v1231
        %v1447 = vpop.f32.mrf.mxu0
        %v1448 = vadd.f32 %v1435, %v1447
        %v1449 = vpop.f32.mrf.mxu0
        %1450 = vdwg.mxu0
        %1451 = vmatpush.bf16.msra.mxu0 %v1376
        %1452 = vmatpush.bf16.msra.mxu0 %v1374
        %1453 = vmatpush.bf16.msra.mxu0 %v1372
        %1454 = vmatpush.bf16.msra.mxu0 %v1370
        %1455 = vmatpush.bf16.msra.mxu0 %v1368
        %1456 = vmatpush.bf16.msra.mxu0 %v1366
        %1457 = vmatpush.bf16.msra.mxu0 %v1364
        %1458 = vmatpush.bf16.msra.mxu0 %v1362
        %1459 = vmatmul.bf16.gmra.mxu0 %v1230
        %v1460 = vpop.f32.mrf.mxu0
        %v1461 = vadd.f32 0.0, %v1460
        %v1462 = vpop.f32.mrf.mxu0
        %1463 = vdwg.mxu0
        %1464 = vmatpush.bf16.msra.mxu0 %v1392
        %1465 = vmatpush.bf16.msra.mxu0 %v1390
        %1466 = vmatpush.bf16.msra.mxu0 %v1388
        %1467 = vmatpush.bf16.msra.mxu0 %v1386
        %1468 = vmatpush.bf16.msra.mxu0 %v1384
        %1469 = vmatpush.bf16.msra.mxu0 %v1382
        %1470 = vmatpush.bf16.msra.mxu0 %v1380
        %1471 = vmatpush.bf16.msra.mxu0 %v1378
        %1472 = vmatmul.bf16.gmra.mxu0 %v1231
        %v1473 = vpop.f32.mrf.mxu0
        %v1474 = vadd.f32 %v1461, %v1473
        %v1475 = vpop.f32.mrf.mxu0
        %1476 = vdwg.mxu0
        %v1477 = vadd.f32 %v1192, %v1448
        %v1478 = vadd.f32 %v1193, %v1474
        %s1479 = sld [smem:[#allocation3 + $0x3]]
        %s1480 = sld [smem:[#allocation3 + $0x83]]
        %s1481 = sld [smem:[#allocation3 + $0x103]]
        %s1482 = sld [smem:[#allocation3 + $0x183]]
        %v1483 = vstv %s1479
        %v1484 = vmul.f32 %v1483, %v619
        %v1485 = vmul.f32 %v1483, %v620
        %v1486 = vstv %s1480
        %v1487 = vmul.f32 %v1486, %v615
        %v1488 = vmul.f32 %v1486, %v616
        %v1489 = vadd.f32 %v1484, %v1487
        %v1490 = vadd.f32 %v1485, %v1488
        %v1491 = vstv %s1481
        %v1492 = vmul.f32 %v1491, %v617
        %v1493 = vmul.f32 %v1491, %v618
        %v1494 = vadd.f32 %v1489, %v1492
        %v1495 = vadd.f32 %v1490, %v1493
        %v1496 = vstv %s1482
        %v1497 = vadd.f32 %v1494, %v1496
        %v1498 = vadd.f32 %v1495, %v1496
        %v1499 = vmul.f32 %v1483, %v615
        %v1500 = vmul.f32 %v1483, %v616
        %v1501 = vmul.f32 %v1486, %v617
        %v1502 = vmul.f32 %v1486, %v618
        %v1503 = vadd.f32 %v1499, %v1501
        %v1504 = vadd.f32 %v1500, %v1502
        %v1505 = vmul.f32 %v1491, %v621
        %v1506 = vmul.f32 %v1491, %v622
        %v1507 = vadd.f32 %v1503, %v1505
        %v1508 = vadd.f32 %v1504, %v1506
        %v1509 = vadd.f32 %v1507, %v1496
        %v1510 = vadd.f32 %v1508, %v1496
        %v1511 = vmax.f32 %v1497, %v1509
        %v1512 = vmax.f32 %v1498, %v1510
        %v1513 = vmax.f32 %v1511, 0.0
        %v1514 = vmax.f32 %v1512, 0.0
        %v1515 = vpack.c.bf16 %v1513, %v1513
        %v1516 = vpack.c.bf16 %v1514, %v1514
        %s1517 = scalar_lea.vmem %s534, 768 [#allocation12]
        %v1518 = vld [vmem:[%s1517] sm:$0xff]
        %v1519 = vld [vmem:[%s1517 + $0x8] sm:$0xff]
        %v1520 = vld [vmem:[%s1517 + $0x10] sm:$0xff]
        %v1521 = vld [vmem:[%s1517 + $0x18] sm:$0xff]
        %v1522 = vld [vmem:[%s1517 + $0x20] sm:$0xff]
        %v1523 = vld [vmem:[%s1517 + $0x28] sm:$0xff]
        %v1524 = vld [vmem:[%s1517 + $0x30] sm:$0xff]
        %v1525 = vld [vmem:[%s1517 + $0x38] sm:$0xff]
        %v1526 = vld [vmem:[%s1517 + $0x40] sm:$0xff]
        %v1527 = vld [vmem:[%s1517 + $0x48] sm:$0xff]
        %v1528 = vld [vmem:[%s1517 + $0x50] sm:$0xff]
        %v1529 = vld [vmem:[%s1517 + $0x58] sm:$0xff]
        %v1530 = vld [vmem:[%s1517 + $0x60] sm:$0xff]
        %v1531 = vld [vmem:[%s1517 + $0x68] sm:$0xff]
        %v1532 = vld [vmem:[%s1517 + $0x70] sm:$0xff]
        %v1533 = vld [vmem:[%s1517 + $0x78] sm:$0xff]
        %v1534 = vld [vmem:[%s1517 + $0x80] sm:$0xff]
        %v1535 = vld [vmem:[%s1517 + $0x88] sm:$0xff]
        %v1536 = vld [vmem:[%s1517 + $0x90] sm:$0xff]
        %v1537 = vld [vmem:[%s1517 + $0x98] sm:$0xff]
        %v1538 = vld [vmem:[%s1517 + $0xa0] sm:$0xff]
        %v1539 = vld [vmem:[%s1517 + $0xa8] sm:$0xff]
        %v1540 = vld [vmem:[%s1517 + $0xb0] sm:$0xff]
        %v1541 = vld [vmem:[%s1517 + $0xb8] sm:$0xff]
        %v1542 = vld [vmem:[%s1517 + $0xc0] sm:$0xff]
        %v1543 = vld [vmem:[%s1517 + $0xc8] sm:$0xff]
        %v1544 = vld [vmem:[%s1517 + $0xd0] sm:$0xff]
        %v1545 = vld [vmem:[%s1517 + $0xd8] sm:$0xff]
        %v1546 = vld [vmem:[%s1517 + $0xe0] sm:$0xff]
        %v1547 = vld [vmem:[%s1517 + $0xe8] sm:$0xff]
        %v1548 = vld [vmem:[%s1517 + $0xf0] sm:$0xff]
        %v1549 = vld [vmem:[%s1517 + $0xf8] sm:$0xff]
        %v1582 = vunpack.c.l.b16 %v1518
        %v1583 = vunpack.c.h.b16 %v1518
        %v1584 = vunpack.c.l.b16 %v1519
        %v1585 = vunpack.c.h.b16 %v1519
        %v1586 = vunpack.c.l.b16 %v1520
        %v1587 = vunpack.c.h.b16 %v1520
        %v1588 = vunpack.c.l.b16 %v1521
        %v1589 = vunpack.c.h.b16 %v1521
        %v1590 = vunpack.c.l.b16 %v1522
        %v1591 = vunpack.c.h.b16 %v1522
        %v1592 = vunpack.c.l.b16 %v1523
        %v1593 = vunpack.c.h.b16 %v1523
        %v1594 = vunpack.c.l.b16 %v1524
        %v1595 = vunpack.c.h.b16 %v1524
        %v1596 = vunpack.c.l.b16 %v1525
        %v1597 = vunpack.c.h.b16 %v1525
        %v1598 = vunpack.c.l.b16 %v1526
        %v1599 = vunpack.c.h.b16 %v1526
        %v1600 = vunpack.c.l.b16 %v1527
        %v1601 = vunpack.c.h.b16 %v1527
        %v1602 = vunpack.c.l.b16 %v1528
        %v1603 = vunpack.c.h.b16 %v1528
        %v1604 = vunpack.c.l.b16 %v1529
        %v1605 = vunpack.c.h.b16 %v1529
        %v1606 = vunpack.c.l.b16 %v1530
        %v1607 = vunpack.c.h.b16 %v1530
        %v1608 = vunpack.c.l.b16 %v1531
        %v1609 = vunpack.c.h.b16 %v1531
        %v1610 = vunpack.c.l.b16 %v1532
        %v1611 = vunpack.c.h.b16 %v1532
        %v1612 = vunpack.c.l.b16 %v1533
        %v1613 = vunpack.c.h.b16 %v1533
        %v1614 = vunpack.c.l.b16 %v1534
        %v1615 = vunpack.c.h.b16 %v1534
        %v1616 = vunpack.c.l.b16 %v1535
        %v1617 = vunpack.c.h.b16 %v1535
        %v1618 = vunpack.c.l.b16 %v1536
        %v1619 = vunpack.c.h.b16 %v1536
        %v1620 = vunpack.c.l.b16 %v1537
        %v1621 = vunpack.c.h.b16 %v1537
        %v1622 = vunpack.c.l.b16 %v1538
        %v1623 = vunpack.c.h.b16 %v1538
        %v1624 = vunpack.c.l.b16 %v1539
        %v1625 = vunpack.c.h.b16 %v1539
        %v1626 = vunpack.c.l.b16 %v1540
        %v1627 = vunpack.c.h.b16 %v1540
        %v1628 = vunpack.c.l.b16 %v1541
        %v1629 = vunpack.c.h.b16 %v1541
        %v1630 = vunpack.c.l.b16 %v1542
        %v1631 = vunpack.c.h.b16 %v1542
        %v1632 = vunpack.c.l.b16 %v1543
        %v1633 = vunpack.c.h.b16 %v1543
        %v1634 = vunpack.c.l.b16 %v1544
        %v1635 = vunpack.c.h.b16 %v1544
        %v1636 = vunpack.c.l.b16 %v1545
        %v1637 = vunpack.c.h.b16 %v1545
        %v1638 = vunpack.c.l.b16 %v1546
        %v1639 = vunpack.c.h.b16 %v1546
        %v1640 = vunpack.c.l.b16 %v1547
        %v1641 = vunpack.c.h.b16 %v1547
        %v1642 = vunpack.c.l.b16 %v1548
        %v1643 = vunpack.c.h.b16 %v1548
        %v1644 = vunpack.c.l.b16 %v1549
        %v1645 = vunpack.c.h.b16 %v1549
        %v1646 = vpack.c.b16 %v1584, %v1582
        %v1647 = vpack.c.b16 %v1585, %v1583
        %v1648 = vpack.c.b16 %v1588, %v1586
        %v1649 = vpack.c.b16 %v1589, %v1587
        %v1650 = vpack.c.b16 %v1592, %v1590
        %v1651 = vpack.c.b16 %v1593, %v1591
        %v1652 = vpack.c.b16 %v1596, %v1594
        %v1653 = vpack.c.b16 %v1597, %v1595
        %v1654 = vpack.c.b16 %v1600, %v1598
        %v1655 = vpack.c.b16 %v1601, %v1599
        %v1656 = vpack.c.b16 %v1604, %v1602
        %v1657 = vpack.c.b16 %v1605, %v1603
        %v1658 = vpack.c.b16 %v1608, %v1606
        %v1659 = vpack.c.b16 %v1609, %v1607
        %v1660 = vpack.c.b16 %v1612, %v1610
        %v1661 = vpack.c.b16 %v1613, %v1611
        %v1662 = vpack.c.b16 %v1616, %v1614
        %v1663 = vpack.c.b16 %v1617, %v1615
        %v1664 = vpack.c.b16 %v1620, %v1618
        %v1665 = vpack.c.b16 %v1621, %v1619
        %v1666 = vpack.c.b16 %v1624, %v1622
        %v1667 = vpack.c.b16 %v1625, %v1623
        %v1668 = vpack.c.b16 %v1628, %v1626
        %v1669 = vpack.c.b16 %v1629, %v1627
        %v1670 = vpack.c.b16 %v1632, %v1630
        %v1671 = vpack.c.b16 %v1633, %v1631
        %v1672 = vpack.c.b16 %v1636, %v1634
        %v1673 = vpack.c.b16 %v1637, %v1635
        %v1674 = vpack.c.b16 %v1640, %v1638
        %v1675 = vpack.c.b16 %v1641, %v1639
        %v1676 = vpack.c.b16 %v1644, %v1642
        %v1677 = vpack.c.b16 %v1645, %v1643
        %1710 = vmatpush.bf16.msra.mxu0 %v1660
        %1711 = vmatpush.bf16.msra.mxu0 %v1658
        %1712 = vmatpush.bf16.msra.mxu0 %v1656
        %1713 = vmatpush.bf16.msra.mxu0 %v1654
        %1714 = vmatpush.bf16.msra.mxu0 %v1652
        %1715 = vmatpush.bf16.msra.mxu0 %v1650
        %1716 = vmatpush.bf16.msra.mxu0 %v1648
        %1717 = vmatpush.bf16.msra.mxu0 %v1646
        %1718 = vmatmul.bf16.gmra.mxu0 %v1515
        %v1719 = vpop.f32.mrf.mxu0
        %v1720 = vadd.f32 0.0, %v1719
        %v1721 = vpop.f32.mrf.mxu0
        %1722 = vdwg.mxu0
        %1723 = vmatpush.bf16.msra.mxu0 %v1676
        %1724 = vmatpush.bf16.msra.mxu0 %v1674
        %1725 = vmatpush.bf16.msra.mxu0 %v1672
        %1726 = vmatpush.bf16.msra.mxu0 %v1670
        %1727 = vmatpush.bf16.msra.mxu0 %v1668
        %1728 = vmatpush.bf16.msra.mxu0 %v1666
        %1729 = vmatpush.bf16.msra.mxu0 %v1664
        %1730 = vmatpush.bf16.msra.mxu0 %v1662
        %1731 = vmatmul.bf16.gmra.mxu0 %v1516
        %v1732 = vpop.f32.mrf.mxu0
        %v1733 = vadd.f32 %v1720, %v1732
        %v1734 = vpop.f32.mrf.mxu0
        %1735 = vdwg.mxu0
        %1736 = vmatpush.bf16.msra.mxu0 %v1661
        %1737 = vmatpush.bf16.msra.mxu0 %v1659
        %1738 = vmatpush.bf16.msra.mxu0 %v1657
        %1739 = vmatpush.bf16.msra.mxu0 %v1655
        %1740 = vmatpush.bf16.msra.mxu0 %v1653
        %1741 = vmatpush.bf16.msra.mxu0 %v1651
        %1742 = vmatpush.bf16.msra.mxu0 %v1649
        %1743 = vmatpush.bf16.msra.mxu0 %v1647
        %1744 = vmatmul.bf16.gmra.mxu0 %v1515
        %v1745 = vpop.f32.mrf.mxu0
        %v1746 = vadd.f32 0.0, %v1745
        %v1747 = vpop.f32.mrf.mxu0
        %1748 = vdwg.mxu0
        %1749 = vmatpush.bf16.msra.mxu0 %v1677
        %1750 = vmatpush.bf16.msra.mxu0 %v1675
        %1751 = vmatpush.bf16.msra.mxu0 %v1673
        %1752 = vmatpush.bf16.msra.mxu0 %v1671
        %1753 = vmatpush.bf16.msra.mxu0 %v1669
        %1754 = vmatpush.bf16.msra.mxu0 %v1667
        %1755 = vmatpush.bf16.msra.mxu0 %v1665
        %1756 = vmatpush.bf16.msra.mxu0 %v1663
        %1757 = vmatmul.bf16.gmra.mxu0 %v1516
        %v1758 = vpop.f32.mrf.mxu0
        %v1759 = vadd.f32 %v1746, %v1758
        %v1760 = vpop.f32.mrf.mxu0
        %1761 = vdwg.mxu0
        %v1762 = vadd.f32 %v1477, %v1733
        %v1763 = vadd.f32 %v1478, %v1759
        %s1764 = sld [smem:[#allocation3 + $0x4]]
        %s1765 = sld [smem:[#allocation3 + $0x84]]
        %s1766 = sld [smem:[#allocation3 + $0x104]]
        %s1767 = sld [smem:[#allocation3 + $0x184]]
        %v1768 = vstv %s1764
        %v1769 = vmul.f32 %v1768, %v619
        %v1770 = vmul.f32 %v1768, %v620
        %v1771 = vstv %s1765
        %v1772 = vmul.f32 %v1771, %v615
        %v1773 = vmul.f32 %v1771, %v616
        %v1774 = vadd.f32 %v1769, %v1772
        %v1775 = vadd.f32 %v1770, %v1773
        %v1776 = vstv %s1766
        %v1777 = vmul.f32 %v1776, %v617
        %v1778 = vmul.f32 %v1776, %v618
        %v1779 = vadd.f32 %v1774, %v1777
        %v1780 = vadd.f32 %v1775, %v1778
        %v1781 = vstv %s1767
        %v1782 = vadd.f32 %v1779, %v1781
        %v1783 = vadd.f32 %v1780, %v1781
        %v1784 = vmul.f32 %v1768, %v615
        %v1785 = vmul.f32 %v1768, %v616
        %v1786 = vmul.f32 %v1771, %v617
        %v1787 = vmul.f32 %v1771, %v618
        %v1788 = vadd.f32 %v1784, %v1786
        %v1789 = vadd.f32 %v1785, %v1787
        %v1790 = vmul.f32 %v1776, %v621
        %v1791 = vmul.f32 %v1776, %v622
        %v1792 = vadd.f32 %v1788, %v1790
        %v1793 = vadd.f32 %v1789, %v1791
        %v1794 = vadd.f32 %v1792, %v1781
        %v1795 = vadd.f32 %v1793, %v1781
        %v1796 = vmax.f32 %v1782, %v1794
        %v1797 = vmax.f32 %v1783, %v1795
        %v1798 = vmax.f32 %v1796, 0.0
        %v1799 = vmax.f32 %v1797, 0.0
        %v1800 = vpack.c.bf16 %v1798, %v1798
        %v1801 = vpack.c.bf16 %v1799, %v1799
        %s1802 = scalar_lea.vmem %s534, 1024 [#allocation12]
        %v1803 = vld [vmem:[%s1802] sm:$0xff]
        %v1804 = vld [vmem:[%s1802 + $0x8] sm:$0xff]
        %v1805 = vld [vmem:[%s1802 + $0x10] sm:$0xff]
        %v1806 = vld [vmem:[%s1802 + $0x18] sm:$0xff]
        %v1807 = vld [vmem:[%s1802 + $0x20] sm:$0xff]
        %v1808 = vld [vmem:[%s1802 + $0x28] sm:$0xff]
        %v1809 = vld [vmem:[%s1802 + $0x30] sm:$0xff]
        %v1810 = vld [vmem:[%s1802 + $0x38] sm:$0xff]
        %v1811 = vld [vmem:[%s1802 + $0x40] sm:$0xff]
        %v1812 = vld [vmem:[%s1802 + $0x48] sm:$0xff]
        %v1813 = vld [vmem:[%s1802 + $0x50] sm:$0xff]
        %v1814 = vld [vmem:[%s1802 + $0x58] sm:$0xff]
        %v1815 = vld [vmem:[%s1802 + $0x60] sm:$0xff]
        %v1816 = vld [vmem:[%s1802 + $0x68] sm:$0xff]
        %v1817 = vld [vmem:[%s1802 + $0x70] sm:$0xff]
        %v1818 = vld [vmem:[%s1802 + $0x78] sm:$0xff]
        %v1819 = vld [vmem:[%s1802 + $0x80] sm:$0xff]
        %v1820 = vld [vmem:[%s1802 + $0x88] sm:$0xff]
        %v1821 = vld [vmem:[%s1802 + $0x90] sm:$0xff]
        %v1822 = vld [vmem:[%s1802 + $0x98] sm:$0xff]
        %v1823 = vld [vmem:[%s1802 + $0xa0] sm:$0xff]
        %v1824 = vld [vmem:[%s1802 + $0xa8] sm:$0xff]
        %v1825 = vld [vmem:[%s1802 + $0xb0] sm:$0xff]
        %v1826 = vld [vmem:[%s1802 + $0xb8] sm:$0xff]
        %v1827 = vld [vmem:[%s1802 + $0xc0] sm:$0xff]
        %v1828 = vld [vmem:[%s1802 + $0xc8] sm:$0xff]
        %v1829 = vld [vmem:[%s1802 + $0xd0] sm:$0xff]
        %v1830 = vld [vmem:[%s1802 + $0xd8] sm:$0xff]
        %v1831 = vld [vmem:[%s1802 + $0xe0] sm:$0xff]
        %v1832 = vld [vmem:[%s1802 + $0xe8] sm:$0xff]
        %v1833 = vld [vmem:[%s1802 + $0xf0] sm:$0xff]
        %v1834 = vld [vmem:[%s1802 + $0xf8] sm:$0xff]
        %v1867 = vunpack.c.l.b16 %v1803
        %v1868 = vunpack.c.h.b16 %v1803
        %v1869 = vunpack.c.l.b16 %v1804
        %v1870 = vunpack.c.h.b16 %v1804
        %v1871 = vunpack.c.l.b16 %v1805
        %v1872 = vunpack.c.h.b16 %v1805
        %v1873 = vunpack.c.l.b16 %v1806
        %v1874 = vunpack.c.h.b16 %v1806
        %v1875 = vunpack.c.l.b16 %v1807
        %v1876 = vunpack.c.h.b16 %v1807
        %v1877 = vunpack.c.l.b16 %v1808
        %v1878 = vunpack.c.h.b16 %v1808
        %v1879 = vunpack.c.l.b16 %v1809
        %v1880 = vunpack.c.h.b16 %v1809
        %v1881 = vunpack.c.l.b16 %v1810
        %v1882 = vunpack.c.h.b16 %v1810
        %v1883 = vunpack.c.l.b16 %v1811
        %v1884 = vunpack.c.h.b16 %v1811
        %v1885 = vunpack.c.l.b16 %v1812
        %v1886 = vunpack.c.h.b16 %v1812
        %v1887 = vunpack.c.l.b16 %v1813
        %v1888 = vunpack.c.h.b16 %v1813
        %v1889 = vunpack.c.l.b16 %v1814
        %v1890 = vunpack.c.h.b16 %v1814
        %v1891 = vunpack.c.l.b16 %v1815
        %v1892 = vunpack.c.h.b16 %v1815
        %v1893 = vunpack.c.l.b16 %v1816
        %v1894 = vunpack.c.h.b16 %v1816
        %v1895 = vunpack.c.l.b16 %v1817
        %v1896 = vunpack.c.h.b16 %v1817
        %v1897 = vunpack.c.l.b16 %v1818
        %v1898 = vunpack.c.h.b16 %v1818
        %v1899 = vunpack.c.l.b16 %v1819
        %v1900 = vunpack.c.h.b16 %v1819
        %v1901 = vunpack.c.l.b16 %v1820
        %v1902 = vunpack.c.h.b16 %v1820
        %v1903 = vunpack.c.l.b16 %v1821
        %v1904 = vunpack.c.h.b16 %v1821
        %v1905 = vunpack.c.l.b16 %v1822
        %v1906 = vunpack.c.h.b16 %v1822
        %v1907 = vunpack.c.l.b16 %v1823
        %v1908 = vunpack.c.h.b16 %v1823
        %v1909 = vunpack.c.l.b16 %v1824
        %v1910 = vunpack.c.h.b16 %v1824
        %v1911 = vunpack.c.l.b16 %v1825
        %v1912 = vunpack.c.h.b16 %v1825
        %v1913 = vunpack.c.l.b16 %v1826
        %v1914 = vunpack.c.h.b16 %v1826
        %v1915 = vunpack.c.l.b16 %v1827
        %v1916 = vunpack.c.h.b16 %v1827
        %v1917 = vunpack.c.l.b16 %v1828
        %v1918 = vunpack.c.h.b16 %v1828
        %v1919 = vunpack.c.l.b16 %v1829
        %v1920 = vunpack.c.h.b16 %v1829
        %v1921 = vunpack.c.l.b16 %v1830
        %v1922 = vunpack.c.h.b16 %v1830
        %v1923 = vunpack.c.l.b16 %v1831
        %v1924 = vunpack.c.h.b16 %v1831
        %v1925 = vunpack.c.l.b16 %v1832
        %v1926 = vunpack.c.h.b16 %v1832
        %v1927 = vunpack.c.l.b16 %v1833
        %v1928 = vunpack.c.h.b16 %v1833
        %v1929 = vunpack.c.l.b16 %v1834
        %v1930 = vunpack.c.h.b16 %v1834
        %v1931 = vpack.c.b16 %v1869, %v1867
        %v1932 = vpack.c.b16 %v1870, %v1868
        %v1933 = vpack.c.b16 %v1873, %v1871
        %v1934 = vpack.c.b16 %v1874, %v1872
        %v1935 = vpack.c.b16 %v1877, %v1875
        %v1936 = vpack.c.b16 %v1878, %v1876
        %v1937 = vpack.c.b16 %v1881, %v1879
        %v1938 = vpack.c.b16 %v1882, %v1880
        %v1939 = vpack.c.b16 %v1885, %v1883
        %v1940 = vpack.c.b16 %v1886, %v1884
        %v1941 = vpack.c.b16 %v1889, %v1887
        %v1942 = vpack.c.b16 %v1890, %v1888
        %v1943 = vpack.c.b16 %v1893, %v1891
        %v1944 = vpack.c.b16 %v1894, %v1892
        %v1945 = vpack.c.b16 %v1897, %v1895
        %v1946 = vpack.c.b16 %v1898, %v1896
        %v1947 = vpack.c.b16 %v1901, %v1899
        %v1948 = vpack.c.b16 %v1902, %v1900
        %v1949 = vpack.c.b16 %v1905, %v1903
        %v1950 = vpack.c.b16 %v1906, %v1904
        %v1951 = vpack.c.b16 %v1909, %v1907
        %v1952 = vpack.c.b16 %v1910, %v1908
        %v1953 = vpack.c.b16 %v1913, %v1911
        %v1954 = vpack.c.b16 %v1914, %v1912
        %v1955 = vpack.c.b16 %v1917, %v1915
        %v1956 = vpack.c.b16 %v1918, %v1916
        %v1957 = vpack.c.b16 %v1921, %v1919
        %v1958 = vpack.c.b16 %v1922, %v1920
        %v1959 = vpack.c.b16 %v1925, %v1923
        %v1960 = vpack.c.b16 %v1926, %v1924
        %v1961 = vpack.c.b16 %v1929, %v1927
        %v1962 = vpack.c.b16 %v1930, %v1928
        %1995 = vmatpush.bf16.msra.mxu0 %v1945
        %1996 = vmatpush.bf16.msra.mxu0 %v1943
        %1997 = vmatpush.bf16.msra.mxu0 %v1941
        %1998 = vmatpush.bf16.msra.mxu0 %v1939
        %1999 = vmatpush.bf16.msra.mxu0 %v1937
        %2000 = vmatpush.bf16.msra.mxu0 %v1935
        %2001 = vmatpush.bf16.msra.mxu0 %v1933
        %2002 = vmatpush.bf16.msra.mxu0 %v1931
        %2003 = vmatmul.bf16.gmra.mxu0 %v1800
        %v2004 = vpop.f32.mrf.mxu0
        %v2005 = vadd.f32 0.0, %v2004
        %v2006 = vpop.f32.mrf.mxu0
        %2007 = vdwg.mxu0
        %2008 = vmatpush.bf16.msra.mxu0 %v1961
        %2009 = vmatpush.bf16.msra.mxu0 %v1959
        %2010 = vmatpush.bf16.msra.mxu0 %v1957
        %2011 = vmatpush.bf16.msra.mxu0 %v1955
        %2012 = vmatpush.bf16.msra.mxu0 %v1953
        %2013 = vmatpush.bf16.msra.mxu0 %v1951
        %2014 = vmatpush.bf16.msra.mxu0 %v1949
        %2015 = vmatpush.bf16.msra.mxu0 %v1947
        %2016 = vmatmul.bf16.gmra.mxu0 %v1801
        %v2017 = vpop.f32.mrf.mxu0
        %v2018 = vadd.f32 %v2005, %v2017
        %v2019 = vpop.f32.mrf.mxu0
        %2020 = vdwg.mxu0
        %2021 = vmatpush.bf16.msra.mxu0 %v1946
        %2022 = vmatpush.bf16.msra.mxu0 %v1944
        %2023 = vmatpush.bf16.msra.mxu0 %v1942
        %2024 = vmatpush.bf16.msra.mxu0 %v1940
        %2025 = vmatpush.bf16.msra.mxu0 %v1938
        %2026 = vmatpush.bf16.msra.mxu0 %v1936
        %2027 = vmatpush.bf16.msra.mxu0 %v1934
        %2028 = vmatpush.bf16.msra.mxu0 %v1932
        %2029 = vmatmul.bf16.gmra.mxu0 %v1800
        %v2030 = vpop.f32.mrf.mxu0
        %v2031 = vadd.f32 0.0, %v2030
        %v2032 = vpop.f32.mrf.mxu0
        %2033 = vdwg.mxu0
        %2034 = vmatpush.bf16.msra.mxu0 %v1962
        %2035 = vmatpush.bf16.msra.mxu0 %v1960
        %2036 = vmatpush.bf16.msra.mxu0 %v1958
        %2037 = vmatpush.bf16.msra.mxu0 %v1956
        %2038 = vmatpush.bf16.msra.mxu0 %v1954
        %2039 = vmatpush.bf16.msra.mxu0 %v1952
        %2040 = vmatpush.bf16.msra.mxu0 %v1950
        %2041 = vmatpush.bf16.msra.mxu0 %v1948
        %2042 = vmatmul.bf16.gmra.mxu0 %v1801
        %v2043 = vpop.f32.mrf.mxu0
        %v2044 = vadd.f32 %v2031, %v2043
        %v2045 = vpop.f32.mrf.mxu0
        %2046 = vdwg.mxu0
        %v2047 = vadd.f32 %v1762, %v2018
        %v2048 = vadd.f32 %v1763, %v2044
        %s2049 = sld [smem:[#allocation3 + $0x5]]
        %s2050 = sld [smem:[#allocation3 + $0x85]]
        %s2051 = sld [smem:[#allocation3 + $0x105]]
        %s2052 = sld [smem:[#allocation3 + $0x185]]
        %v2053 = vstv %s2049
        %v2054 = vmul.f32 %v2053, %v619
        %v2055 = vmul.f32 %v2053, %v620
        %v2056 = vstv %s2050
        %v2057 = vmul.f32 %v2056, %v615
        %v2058 = vmul.f32 %v2056, %v616
        %v2059 = vadd.f32 %v2054, %v2057
        %v2060 = vadd.f32 %v2055, %v2058
        %v2061 = vstv %s2051
        %v2062 = vmul.f32 %v2061, %v617
        %v2063 = vmul.f32 %v2061, %v618
        %v2064 = vadd.f32 %v2059, %v2062
        %v2065 = vadd.f32 %v2060, %v2063
        %v2066 = vstv %s2052
        %v2067 = vadd.f32 %v2064, %v2066
        %v2068 = vadd.f32 %v2065, %v2066
        %v2069 = vmul.f32 %v2053, %v615
        %v2070 = vmul.f32 %v2053, %v616
        %v2071 = vmul.f32 %v2056, %v617
        %v2072 = vmul.f32 %v2056, %v618
        %v2073 = vadd.f32 %v2069, %v2071
        %v2074 = vadd.f32 %v2070, %v2072
        %v2075 = vmul.f32 %v2061, %v621
        %v2076 = vmul.f32 %v2061, %v622
        %v2077 = vadd.f32 %v2073, %v2075
        %v2078 = vadd.f32 %v2074, %v2076
        %v2079 = vadd.f32 %v2077, %v2066
        %v2080 = vadd.f32 %v2078, %v2066
        %v2081 = vmax.f32 %v2067, %v2079
        %v2082 = vmax.f32 %v2068, %v2080
        %v2083 = vmax.f32 %v2081, 0.0
        %v2084 = vmax.f32 %v2082, 0.0
        %v2085 = vpack.c.bf16 %v2083, %v2083
        %v2086 = vpack.c.bf16 %v2084, %v2084
        %s2087 = scalar_lea.vmem %s534, 1280 [#allocation12]
        %v2088 = vld [vmem:[%s2087] sm:$0xff]
        %v2089 = vld [vmem:[%s2087 + $0x8] sm:$0xff]
        %v2090 = vld [vmem:[%s2087 + $0x10] sm:$0xff]
        %v2091 = vld [vmem:[%s2087 + $0x18] sm:$0xff]
        %v2092 = vld [vmem:[%s2087 + $0x20] sm:$0xff]
        %v2093 = vld [vmem:[%s2087 + $0x28] sm:$0xff]
        %v2094 = vld [vmem:[%s2087 + $0x30] sm:$0xff]
        %v2095 = vld [vmem:[%s2087 + $0x38] sm:$0xff]
        %v2096 = vld [vmem:[%s2087 + $0x40] sm:$0xff]
        %v2097 = vld [vmem:[%s2087 + $0x48] sm:$0xff]
        %v2098 = vld [vmem:[%s2087 + $0x50] sm:$0xff]
        %v2099 = vld [vmem:[%s2087 + $0x58] sm:$0xff]
        %v2100 = vld [vmem:[%s2087 + $0x60] sm:$0xff]
        %v2101 = vld [vmem:[%s2087 + $0x68] sm:$0xff]
        %v2102 = vld [vmem:[%s2087 + $0x70] sm:$0xff]
        %v2103 = vld [vmem:[%s2087 + $0x78] sm:$0xff]
        %v2104 = vld [vmem:[%s2087 + $0x80] sm:$0xff]
        %v2105 = vld [vmem:[%s2087 + $0x88] sm:$0xff]
        %v2106 = vld [vmem:[%s2087 + $0x90] sm:$0xff]
        %v2107 = vld [vmem:[%s2087 + $0x98] sm:$0xff]
        %v2108 = vld [vmem:[%s2087 + $0xa0] sm:$0xff]
        %v2109 = vld [vmem:[%s2087 + $0xa8] sm:$0xff]
        %v2110 = vld [vmem:[%s2087 + $0xb0] sm:$0xff]
        %v2111 = vld [vmem:[%s2087 + $0xb8] sm:$0xff]
        %v2112 = vld [vmem:[%s2087 + $0xc0] sm:$0xff]
        %v2113 = vld [vmem:[%s2087 + $0xc8] sm:$0xff]
        %v2114 = vld [vmem:[%s2087 + $0xd0] sm:$0xff]
        %v2115 = vld [vmem:[%s2087 + $0xd8] sm:$0xff]
        %v2116 = vld [vmem:[%s2087 + $0xe0] sm:$0xff]
        %v2117 = vld [vmem:[%s2087 + $0xe8] sm:$0xff]
        %v2118 = vld [vmem:[%s2087 + $0xf0] sm:$0xff]
        %v2119 = vld [vmem:[%s2087 + $0xf8] sm:$0xff]
        %v2152 = vunpack.c.l.b16 %v2088
        %v2153 = vunpack.c.h.b16 %v2088
        %v2154 = vunpack.c.l.b16 %v2089
        %v2155 = vunpack.c.h.b16 %v2089
        %v2156 = vunpack.c.l.b16 %v2090
        %v2157 = vunpack.c.h.b16 %v2090
        %v2158 = vunpack.c.l.b16 %v2091
        %v2159 = vunpack.c.h.b16 %v2091
        %v2160 = vunpack.c.l.b16 %v2092
        %v2161 = vunpack.c.h.b16 %v2092
        %v2162 = vunpack.c.l.b16 %v2093
        %v2163 = vunpack.c.h.b16 %v2093
        %v2164 = vunpack.c.l.b16 %v2094
        %v2165 = vunpack.c.h.b16 %v2094
        %v2166 = vunpack.c.l.b16 %v2095
        %v2167 = vunpack.c.h.b16 %v2095
        %v2168 = vunpack.c.l.b16 %v2096
        %v2169 = vunpack.c.h.b16 %v2096
        %v2170 = vunpack.c.l.b16 %v2097
        %v2171 = vunpack.c.h.b16 %v2097
        %v2172 = vunpack.c.l.b16 %v2098
        %v2173 = vunpack.c.h.b16 %v2098
        %v2174 = vunpack.c.l.b16 %v2099
        %v2175 = vunpack.c.h.b16 %v2099
        %v2176 = vunpack.c.l.b16 %v2100
        %v2177 = vunpack.c.h.b16 %v2100
        %v2178 = vunpack.c.l.b16 %v2101
        %v2179 = vunpack.c.h.b16 %v2101
        %v2180 = vunpack.c.l.b16 %v2102
        %v2181 = vunpack.c.h.b16 %v2102
        %v2182 = vunpack.c.l.b16 %v2103
        %v2183 = vunpack.c.h.b16 %v2103
        %v2184 = vunpack.c.l.b16 %v2104
        %v2185 = vunpack.c.h.b16 %v2104
        %v2186 = vunpack.c.l.b16 %v2105
        %v2187 = vunpack.c.h.b16 %v2105
        %v2188 = vunpack.c.l.b16 %v2106
        %v2189 = vunpack.c.h.b16 %v2106
        %v2190 = vunpack.c.l.b16 %v2107
        %v2191 = vunpack.c.h.b16 %v2107
        %v2192 = vunpack.c.l.b16 %v2108
        %v2193 = vunpack.c.h.b16 %v2108
        %v2194 = vunpack.c.l.b16 %v2109
        %v2195 = vunpack.c.h.b16 %v2109
        %v2196 = vunpack.c.l.b16 %v2110
        %v2197 = vunpack.c.h.b16 %v2110
        %v2198 = vunpack.c.l.b16 %v2111
        %v2199 = vunpack.c.h.b16 %v2111
        %v2200 = vunpack.c.l.b16 %v2112
        %v2201 = vunpack.c.h.b16 %v2112
        %v2202 = vunpack.c.l.b16 %v2113
        %v2203 = vunpack.c.h.b16 %v2113
        %v2204 = vunpack.c.l.b16 %v2114
        %v2205 = vunpack.c.h.b16 %v2114
        %v2206 = vunpack.c.l.b16 %v2115
        %v2207 = vunpack.c.h.b16 %v2115
        %v2208 = vunpack.c.l.b16 %v2116
        %v2209 = vunpack.c.h.b16 %v2116
        %v2210 = vunpack.c.l.b16 %v2117
        %v2211 = vunpack.c.h.b16 %v2117
        %v2212 = vunpack.c.l.b16 %v2118
        %v2213 = vunpack.c.h.b16 %v2118
        %v2214 = vunpack.c.l.b16 %v2119
        %v2215 = vunpack.c.h.b16 %v2119
        %v2216 = vpack.c.b16 %v2154, %v2152
        %v2217 = vpack.c.b16 %v2155, %v2153
        %v2218 = vpack.c.b16 %v2158, %v2156
        %v2219 = vpack.c.b16 %v2159, %v2157
        %v2220 = vpack.c.b16 %v2162, %v2160
        %v2221 = vpack.c.b16 %v2163, %v2161
        %v2222 = vpack.c.b16 %v2166, %v2164
        %v2223 = vpack.c.b16 %v2167, %v2165
        %v2224 = vpack.c.b16 %v2170, %v2168
        %v2225 = vpack.c.b16 %v2171, %v2169
        %v2226 = vpack.c.b16 %v2174, %v2172
        %v2227 = vpack.c.b16 %v2175, %v2173
        %v2228 = vpack.c.b16 %v2178, %v2176
        %v2229 = vpack.c.b16 %v2179, %v2177
        %v2230 = vpack.c.b16 %v2182, %v2180
        %v2231 = vpack.c.b16 %v2183, %v2181
        %v2232 = vpack.c.b16 %v2186, %v2184
        %v2233 = vpack.c.b16 %v2187, %v2185
        %v2234 = vpack.c.b16 %v2190, %v2188
        %v2235 = vpack.c.b16 %v2191, %v2189
        %v2236 = vpack.c.b16 %v2194, %v2192
        %v2237 = vpack.c.b16 %v2195, %v2193
        %v2238 = vpack.c.b16 %v2198, %v2196
        %v2239 = vpack.c.b16 %v2199, %v2197
        %v2240 = vpack.c.b16 %v2202, %v2200
        %v2241 = vpack.c.b16 %v2203, %v2201
        %v2242 = vpack.c.b16 %v2206, %v2204
        %v2243 = vpack.c.b16 %v2207, %v2205
        %v2244 = vpack.c.b16 %v2210, %v2208
        %v2245 = vpack.c.b16 %v2211, %v2209
        %v2246 = vpack.c.b16 %v2214, %v2212
        %v2247 = vpack.c.b16 %v2215, %v2213
        %2280 = vmatpush.bf16.msra.mxu0 %v2230
        %2281 = vmatpush.bf16.msra.mxu0 %v2228
        %2282 = vmatpush.bf16.msra.mxu0 %v2226
        %2283 = vmatpush.bf16.msra.mxu0 %v2224
        %2284 = vmatpush.bf16.msra.mxu0 %v2222
        %2285 = vmatpush.bf16.msra.mxu0 %v2220
        %2286 = vmatpush.bf16.msra.mxu0 %v2218
        %2287 = vmatpush.bf16.msra.mxu0 %v2216
        %2288 = vmatmul.bf16.gmra.mxu0 %v2085
        %v2289 = vpop.f32.mrf.mxu0
        %v2290 = vadd.f32 0.0, %v2289
        %v2291 = vpop.f32.mrf.mxu0
        %2292 = vdwg.mxu0
        %2293 = vmatpush.bf16.msra.mxu0 %v2246
        %2294 = vmatpush.bf16.msra.mxu0 %v2244
        %2295 = vmatpush.bf16.msra.mxu0 %v2242
        %2296 = vmatpush.bf16.msra.mxu0 %v2240
        %2297 = vmatpush.bf16.msra.mxu0 %v2238
        %2298 = vmatpush.bf16.msra.mxu0 %v2236
        %2299 = vmatpush.bf16.msra.mxu0 %v2234
        %2300 = vmatpush.bf16.msra.mxu0 %v2232
        %2301 = vmatmul.bf16.gmra.mxu0 %v2086
        %v2302 = vpop.f32.mrf.mxu0
        %v2303 = vadd.f32 %v2290, %v2302
        %v2304 = vpop.f32.mrf.mxu0
        %2305 = vdwg.mxu0
        %2306 = vmatpush.bf16.msra.mxu0 %v2231
        %2307 = vmatpush.bf16.msra.mxu0 %v2229
        %2308 = vmatpush.bf16.msra.mxu0 %v2227
        %2309 = vmatpush.bf16.msra.mxu0 %v2225
        %2310 = vmatpush.bf16.msra.mxu0 %v2223
        %2311 = vmatpush.bf16.msra.mxu0 %v2221
        %2312 = vmatpush.bf16.msra.mxu0 %v2219
        %2313 = vmatpush.bf16.msra.mxu0 %v2217
        %2314 = vmatmul.bf16.gmra.mxu0 %v2085
        %v2315 = vpop.f32.mrf.mxu0
        %v2316 = vadd.f32 0.0, %v2315
        %v2317 = vpop.f32.mrf.mxu0
        %2318 = vdwg.mxu0
        %2319 = vmatpush.bf16.msra.mxu0 %v2247
        %2320 = vmatpush.bf16.msra.mxu0 %v2245
        %2321 = vmatpush.bf16.msra.mxu0 %v2243
        %2322 = vmatpush.bf16.msra.mxu0 %v2241
        %2323 = vmatpush.bf16.msra.mxu0 %v2239
        %2324 = vmatpush.bf16.msra.mxu0 %v2237
        %2325 = vmatpush.bf16.msra.mxu0 %v2235
        %2326 = vmatpush.bf16.msra.mxu0 %v2233
        %2327 = vmatmul.bf16.gmra.mxu0 %v2086
        %v2328 = vpop.f32.mrf.mxu0
        %v2329 = vadd.f32 %v2316, %v2328
        %v2330 = vpop.f32.mrf.mxu0
        %2331 = vdwg.mxu0
        %v2332 = vadd.f32 %v2047, %v2303
        %v2333 = vadd.f32 %v2048, %v2329
        %s2334 = sld [smem:[#allocation3 + $0x6]]
        %s2335 = sld [smem:[#allocation3 + $0x86]]
        %s2336 = sld [smem:[#allocation3 + $0x106]]
        %s2337 = sld [smem:[#allocation3 + $0x186]]
        %v2338 = vstv %s2334
        %v2339 = vmul.f32 %v2338, %v619
        %v2340 = vmul.f32 %v2338, %v620
        %v2341 = vstv %s2335
        %v2342 = vmul.f32 %v2341, %v615
        %v2343 = vmul.f32 %v2341, %v616
        %v2344 = vadd.f32 %v2339, %v2342
        %v2345 = vadd.f32 %v2340, %v2343
        %v2346 = vstv %s2336
        %v2347 = vmul.f32 %v2346, %v617
        %v2348 = vmul.f32 %v2346, %v618
        %v2349 = vadd.f32 %v2344, %v2347
        %v2350 = vadd.f32 %v2345, %v2348
        %v2351 = vstv %s2337
        %v2352 = vadd.f32 %v2349, %v2351
        %v2353 = vadd.f32 %v2350, %v2351
        %v2354 = vmul.f32 %v2338, %v615
        %v2355 = vmul.f32 %v2338, %v616
        %v2356 = vmul.f32 %v2341, %v617
        %v2357 = vmul.f32 %v2341, %v618
        %v2358 = vadd.f32 %v2354, %v2356
        %v2359 = vadd.f32 %v2355, %v2357
        %v2360 = vmul.f32 %v2346, %v621
        %v2361 = vmul.f32 %v2346, %v622
        %v2362 = vadd.f32 %v2358, %v2360
        %v2363 = vadd.f32 %v2359, %v2361
        %v2364 = vadd.f32 %v2362, %v2351
        %v2365 = vadd.f32 %v2363, %v2351
        %v2366 = vmax.f32 %v2352, %v2364
        %v2367 = vmax.f32 %v2353, %v2365
        %v2368 = vmax.f32 %v2366, 0.0
        %v2369 = vmax.f32 %v2367, 0.0
        %v2370 = vpack.c.bf16 %v2368, %v2368
        %v2371 = vpack.c.bf16 %v2369, %v2369
        %s2372 = scalar_lea.vmem %s534, 1536 [#allocation12]
        %v2373 = vld [vmem:[%s2372] sm:$0xff]
        %v2374 = vld [vmem:[%s2372 + $0x8] sm:$0xff]
        %v2375 = vld [vmem:[%s2372 + $0x10] sm:$0xff]
        %v2376 = vld [vmem:[%s2372 + $0x18] sm:$0xff]
        %v2377 = vld [vmem:[%s2372 + $0x20] sm:$0xff]
        %v2378 = vld [vmem:[%s2372 + $0x28] sm:$0xff]
        %v2379 = vld [vmem:[%s2372 + $0x30] sm:$0xff]
        %v2380 = vld [vmem:[%s2372 + $0x38] sm:$0xff]
        %v2381 = vld [vmem:[%s2372 + $0x40] sm:$0xff]
        %v2382 = vld [vmem:[%s2372 + $0x48] sm:$0xff]
        %v2383 = vld [vmem:[%s2372 + $0x50] sm:$0xff]
        %v2384 = vld [vmem:[%s2372 + $0x58] sm:$0xff]
        %v2385 = vld [vmem:[%s2372 + $0x60] sm:$0xff]
        %v2386 = vld [vmem:[%s2372 + $0x68] sm:$0xff]
        %v2387 = vld [vmem:[%s2372 + $0x70] sm:$0xff]
        %v2388 = vld [vmem:[%s2372 + $0x78] sm:$0xff]
        %v2389 = vld [vmem:[%s2372 + $0x80] sm:$0xff]
        %v2390 = vld [vmem:[%s2372 + $0x88] sm:$0xff]
        %v2391 = vld [vmem:[%s2372 + $0x90] sm:$0xff]
        %v2392 = vld [vmem:[%s2372 + $0x98] sm:$0xff]
        %v2393 = vld [vmem:[%s2372 + $0xa0] sm:$0xff]
        %v2394 = vld [vmem:[%s2372 + $0xa8] sm:$0xff]
        %v2395 = vld [vmem:[%s2372 + $0xb0] sm:$0xff]
        %v2396 = vld [vmem:[%s2372 + $0xb8] sm:$0xff]
        %v2397 = vld [vmem:[%s2372 + $0xc0] sm:$0xff]
        %v2398 = vld [vmem:[%s2372 + $0xc8] sm:$0xff]
        %v2399 = vld [vmem:[%s2372 + $0xd0] sm:$0xff]
        %v2400 = vld [vmem:[%s2372 + $0xd8] sm:$0xff]
        %v2401 = vld [vmem:[%s2372 + $0xe0] sm:$0xff]
        %v2402 = vld [vmem:[%s2372 + $0xe8] sm:$0xff]
        %v2403 = vld [vmem:[%s2372 + $0xf0] sm:$0xff]
        %v2404 = vld [vmem:[%s2372 + $0xf8] sm:$0xff]
        %v2437 = vunpack.c.l.b16 %v2373
        %v2438 = vunpack.c.h.b16 %v2373
        %v2439 = vunpack.c.l.b16 %v2374
        %v2440 = vunpack.c.h.b16 %v2374
        %v2441 = vunpack.c.l.b16 %v2375
        %v2442 = vunpack.c.h.b16 %v2375
        %v2443 = vunpack.c.l.b16 %v2376
        %v2444 = vunpack.c.h.b16 %v2376
        %v2445 = vunpack.c.l.b16 %v2377
        %v2446 = vunpack.c.h.b16 %v2377
        %v2447 = vunpack.c.l.b16 %v2378
        %v2448 = vunpack.c.h.b16 %v2378
        %v2449 = vunpack.c.l.b16 %v2379
        %v2450 = vunpack.c.h.b16 %v2379
        %v2451 = vunpack.c.l.b16 %v2380
        %v2452 = vunpack.c.h.b16 %v2380
        %v2453 = vunpack.c.l.b16 %v2381
        %v2454 = vunpack.c.h.b16 %v2381
        %v2455 = vunpack.c.l.b16 %v2382
        %v2456 = vunpack.c.h.b16 %v2382
        %v2457 = vunpack.c.l.b16 %v2383
        %v2458 = vunpack.c.h.b16 %v2383
        %v2459 = vunpack.c.l.b16 %v2384
        %v2460 = vunpack.c.h.b16 %v2384
        %v2461 = vunpack.c.l.b16 %v2385
        %v2462 = vunpack.c.h.b16 %v2385
        %v2463 = vunpack.c.l.b16 %v2386
        %v2464 = vunpack.c.h.b16 %v2386
        %v2465 = vunpack.c.l.b16 %v2387
        %v2466 = vunpack.c.h.b16 %v2387
        %v2467 = vunpack.c.l.b16 %v2388
        %v2468 = vunpack.c.h.b16 %v2388
        %v2469 = vunpack.c.l.b16 %v2389
        %v2470 = vunpack.c.h.b16 %v2389
        %v2471 = vunpack.c.l.b16 %v2390
        %v2472 = vunpack.c.h.b16 %v2390
        %v2473 = vunpack.c.l.b16 %v2391
        %v2474 = vunpack.c.h.b16 %v2391
        %v2475 = vunpack.c.l.b16 %v2392
        %v2476 = vunpack.c.h.b16 %v2392
        %v2477 = vunpack.c.l.b16 %v2393
        %v2478 = vunpack.c.h.b16 %v2393
        %v2479 = vunpack.c.l.b16 %v2394
        %v2480 = vunpack.c.h.b16 %v2394
        %v2481 = vunpack.c.l.b16 %v2395
        %v2482 = vunpack.c.h.b16 %v2395
        %v2483 = vunpack.c.l.b16 %v2396
        %v2484 = vunpack.c.h.b16 %v2396
        %v2485 = vunpack.c.l.b16 %v2397
        %v2486 = vunpack.c.h.b16 %v2397
        %v2487 = vunpack.c.l.b16 %v2398
        %v2488 = vunpack.c.h.b16 %v2398
        %v2489 = vunpack.c.l.b16 %v2399
        %v2490 = vunpack.c.h.b16 %v2399
        %v2491 = vunpack.c.l.b16 %v2400
        %v2492 = vunpack.c.h.b16 %v2400
        %v2493 = vunpack.c.l.b16 %v2401
        %v2494 = vunpack.c.h.b16 %v2401
        %v2495 = vunpack.c.l.b16 %v2402
        %v2496 = vunpack.c.h.b16 %v2402
        %v2497 = vunpack.c.l.b16 %v2403
        %v2498 = vunpack.c.h.b16 %v2403
        %v2499 = vunpack.c.l.b16 %v2404
        %v2500 = vunpack.c.h.b16 %v2404
        %v2501 = vpack.c.b16 %v2439, %v2437
        %v2502 = vpack.c.b16 %v2440, %v2438
        %v2503 = vpack.c.b16 %v2443, %v2441
        %v2504 = vpack.c.b16 %v2444, %v2442
        %v2505 = vpack.c.b16 %v2447, %v2445
        %v2506 = vpack.c.b16 %v2448, %v2446
        %v2507 = vpack.c.b16 %v2451, %v2449
        %v2508 = vpack.c.b16 %v2452, %v2450
        %v2509 = vpack.c.b16 %v2455, %v2453
        %v2510 = vpack.c.b16 %v2456, %v2454
        %v2511 = vpack.c.b16 %v2459, %v2457
        %v2512 = vpack.c.b16 %v2460, %v2458
        %v2513 = vpack.c.b16 %v2463, %v2461
        %v2514 = vpack.c.b16 %v2464, %v2462
        %v2515 = vpack.c.b16 %v2467, %v2465
        %v2516 = vpack.c.b16 %v2468, %v2466
        %v2517 = vpack.c.b16 %v2471, %v2469
        %v2518 = vpack.c.b16 %v2472, %v2470
        %v2519 = vpack.c.b16 %v2475, %v2473
        %v2520 = vpack.c.b16 %v2476, %v2474
        %v2521 = vpack.c.b16 %v2479, %v2477
        %v2522 = vpack.c.b16 %v2480, %v2478
        %v2523 = vpack.c.b16 %v2483, %v2481
        %v2524 = vpack.c.b16 %v2484, %v2482
        %v2525 = vpack.c.b16 %v2487, %v2485
        %v2526 = vpack.c.b16 %v2488, %v2486
        %v2527 = vpack.c.b16 %v2491, %v2489
        %v2528 = vpack.c.b16 %v2492, %v2490
        %v2529 = vpack.c.b16 %v2495, %v2493
        %v2530 = vpack.c.b16 %v2496, %v2494
        %v2531 = vpack.c.b16 %v2499, %v2497
        %v2532 = vpack.c.b16 %v2500, %v2498
        %2565 = vmatpush.bf16.msra.mxu0 %v2515
        %2566 = vmatpush.bf16.msra.mxu0 %v2513
        %2567 = vmatpush.bf16.msra.mxu0 %v2511
        %2568 = vmatpush.bf16.msra.mxu0 %v2509
        %2569 = vmatpush.bf16.msra.mxu0 %v2507
        %2570 = vmatpush.bf16.msra.mxu0 %v2505
        %2571 = vmatpush.bf16.msra.mxu0 %v2503
        %2572 = vmatpush.bf16.msra.mxu0 %v2501
        %2573 = vmatmul.bf16.gmra.mxu0 %v2370
        %v2574 = vpop.f32.mrf.mxu0
        %v2575 = vadd.f32 0.0, %v2574
        %v2576 = vpop.f32.mrf.mxu0
        %2577 = vdwg.mxu0
        %2578 = vmatpush.bf16.msra.mxu0 %v2531
        %2579 = vmatpush.bf16.msra.mxu0 %v2529
        %2580 = vmatpush.bf16.msra.mxu0 %v2527
        %2581 = vmatpush.bf16.msra.mxu0 %v2525
        %2582 = vmatpush.bf16.msra.mxu0 %v2523
        %2583 = vmatpush.bf16.msra.mxu0 %v2521
        %2584 = vmatpush.bf16.msra.mxu0 %v2519
        %2585 = vmatpush.bf16.msra.mxu0 %v2517
        %2586 = vmatmul.bf16.gmra.mxu0 %v2371
        %v2587 = vpop.f32.mrf.mxu0
        %v2588 = vadd.f32 %v2575, %v2587
        %v2589 = vpop.f32.mrf.mxu0
        %2590 = vdwg.mxu0
        %2591 = vmatpush.bf16.msra.mxu0 %v2516
        %2592 = vmatpush.bf16.msra.mxu0 %v2514
        %2593 = vmatpush.bf16.msra.mxu0 %v2512
        %2594 = vmatpush.bf16.msra.mxu0 %v2510
        %2595 = vmatpush.bf16.msra.mxu0 %v2508
        %2596 = vmatpush.bf16.msra.mxu0 %v2506
        %2597 = vmatpush.bf16.msra.mxu0 %v2504
        %2598 = vmatpush.bf16.msra.mxu0 %v2502
        %2599 = vmatmul.bf16.gmra.mxu0 %v2370
        %v2600 = vpop.f32.mrf.mxu0
        %v2601 = vadd.f32 0.0, %v2600
        %v2602 = vpop.f32.mrf.mxu0
        %2603 = vdwg.mxu0
        %2604 = vmatpush.bf16.msra.mxu0 %v2532
        %2605 = vmatpush.bf16.msra.mxu0 %v2530
        %2606 = vmatpush.bf16.msra.mxu0 %v2528
        %2607 = vmatpush.bf16.msra.mxu0 %v2526
        %2608 = vmatpush.bf16.msra.mxu0 %v2524
        %2609 = vmatpush.bf16.msra.mxu0 %v2522
        %2610 = vmatpush.bf16.msra.mxu0 %v2520
        %2611 = vmatpush.bf16.msra.mxu0 %v2518
        %2612 = vmatmul.bf16.gmra.mxu0 %v2371
        %v2613 = vpop.f32.mrf.mxu0
        %v2614 = vadd.f32 %v2601, %v2613
        %v2615 = vpop.f32.mrf.mxu0
        %2616 = vdwg.mxu0
        %v2617 = vadd.f32 %v2332, %v2588
        %v2618 = vadd.f32 %v2333, %v2614
        %s2619 = sld [smem:[#allocation3 + $0x7]]
        %s2620 = sld [smem:[#allocation3 + $0x87]]
        %s2621 = sld [smem:[#allocation3 + $0x107]]
        %s2622 = sld [smem:[#allocation3 + $0x187]]
        %v2623 = vstv %s2619
        %v2624 = vmul.f32 %v2623, %v619
        %v2625 = vmul.f32 %v2623, %v620
        %v2626 = vstv %s2620
        %v2627 = vmul.f32 %v2626, %v615
        %v2628 = vmul.f32 %v2626, %v616
        %v2629 = vadd.f32 %v2624, %v2627
        %v2630 = vadd.f32 %v2625, %v2628
        %v2631 = vstv %s2621
        %v2632 = vmul.f32 %v2631, %v617
        %v2633 = vmul.f32 %v2631, %v618
        %v2634 = vadd.f32 %v2629, %v2632
        %v2635 = vadd.f32 %v2630, %v2633
        %v2636 = vstv %s2622
        %v2637 = vadd.f32 %v2634, %v2636
        %v2638 = vadd.f32 %v2635, %v2636
        %v2639 = vmul.f32 %v2623, %v615
        %v2640 = vmul.f32 %v2623, %v616
        %v2641 = vmul.f32 %v2626, %v617
        %v2642 = vmul.f32 %v2626, %v618
        %v2643 = vadd.f32 %v2639, %v2641
        %v2644 = vadd.f32 %v2640, %v2642
        %v2645 = vmul.f32 %v2631, %v621
        %v2646 = vmul.f32 %v2631, %v622
        %v2647 = vadd.f32 %v2643, %v2645
        %v2648 = vadd.f32 %v2644, %v2646
        %v2649 = vadd.f32 %v2647, %v2636
        %v2650 = vadd.f32 %v2648, %v2636
        %v2651 = vmax.f32 %v2637, %v2649
        %v2652 = vmax.f32 %v2638, %v2650
        %v2653 = vmax.f32 %v2651, 0.0
        %v2654 = vmax.f32 %v2652, 0.0
        %v2655 = vpack.c.bf16 %v2653, %v2653
        %v2656 = vpack.c.bf16 %v2654, %v2654
        %s2657 = scalar_lea.vmem %s534, 1792 [#allocation12]
        %v2658 = vld [vmem:[%s2657] sm:$0xff]
        %v2659 = vld [vmem:[%s2657 + $0x8] sm:$0xff]
        %v2660 = vld [vmem:[%s2657 + $0x10] sm:$0xff]
        %v2661 = vld [vmem:[%s2657 + $0x18] sm:$0xff]
        %v2662 = vld [vmem:[%s2657 + $0x20] sm:$0xff]
        %v2663 = vld [vmem:[%s2657 + $0x28] sm:$0xff]
        %v2664 = vld [vmem:[%s2657 + $0x30] sm:$0xff]
        %v2665 = vld [vmem:[%s2657 + $0x38] sm:$0xff]
        %v2666 = vld [vmem:[%s2657 + $0x40] sm:$0xff]
        %v2667 = vld [vmem:[%s2657 + $0x48] sm:$0xff]
        %v2668 = vld [vmem:[%s2657 + $0x50] sm:$0xff]
        %v2669 = vld [vmem:[%s2657 + $0x58] sm:$0xff]
        %v2670 = vld [vmem:[%s2657 + $0x60] sm:$0xff]
        %v2671 = vld [vmem:[%s2657 + $0x68] sm:$0xff]
        %v2672 = vld [vmem:[%s2657 + $0x70] sm:$0xff]
        %v2673 = vld [vmem:[%s2657 + $0x78] sm:$0xff]
        %v2674 = vld [vmem:[%s2657 + $0x80] sm:$0xff]
        %v2675 = vld [vmem:[%s2657 + $0x88] sm:$0xff]
        %v2676 = vld [vmem:[%s2657 + $0x90] sm:$0xff]
        %v2677 = vld [vmem:[%s2657 + $0x98] sm:$0xff]
        %v2678 = vld [vmem:[%s2657 + $0xa0] sm:$0xff]
        %v2679 = vld [vmem:[%s2657 + $0xa8] sm:$0xff]
        %v2680 = vld [vmem:[%s2657 + $0xb0] sm:$0xff]
        %v2681 = vld [vmem:[%s2657 + $0xb8] sm:$0xff]
        %v2682 = vld [vmem:[%s2657 + $0xc0] sm:$0xff]
        %v2683 = vld [vmem:[%s2657 + $0xc8] sm:$0xff]
        %v2684 = vld [vmem:[%s2657 + $0xd0] sm:$0xff]
        %v2685 = vld [vmem:[%s2657 + $0xd8] sm:$0xff]
        %v2686 = vld [vmem:[%s2657 + $0xe0] sm:$0xff]
        %v2687 = vld [vmem:[%s2657 + $0xe8] sm:$0xff]
        %v2688 = vld [vmem:[%s2657 + $0xf0] sm:$0xff]
        %v2689 = vld [vmem:[%s2657 + $0xf8] sm:$0xff]
        %v2722 = vunpack.c.l.b16 %v2658
        %v2723 = vunpack.c.h.b16 %v2658
        %v2724 = vunpack.c.l.b16 %v2659
        %v2725 = vunpack.c.h.b16 %v2659
        %v2726 = vunpack.c.l.b16 %v2660
        %v2727 = vunpack.c.h.b16 %v2660
        %v2728 = vunpack.c.l.b16 %v2661
        %v2729 = vunpack.c.h.b16 %v2661
        %v2730 = vunpack.c.l.b16 %v2662
        %v2731 = vunpack.c.h.b16 %v2662
        %v2732 = vunpack.c.l.b16 %v2663
        %v2733 = vunpack.c.h.b16 %v2663
        %v2734 = vunpack.c.l.b16 %v2664
        %v2735 = vunpack.c.h.b16 %v2664
        %v2736 = vunpack.c.l.b16 %v2665
        %v2737 = vunpack.c.h.b16 %v2665
        %v2738 = vunpack.c.l.b16 %v2666
        %v2739 = vunpack.c.h.b16 %v2666
        %v2740 = vunpack.c.l.b16 %v2667
        %v2741 = vunpack.c.h.b16 %v2667
        %v2742 = vunpack.c.l.b16 %v2668
        %v2743 = vunpack.c.h.b16 %v2668
        %v2744 = vunpack.c.l.b16 %v2669
        %v2745 = vunpack.c.h.b16 %v2669
        %v2746 = vunpack.c.l.b16 %v2670
        %v2747 = vunpack.c.h.b16 %v2670
        %v2748 = vunpack.c.l.b16 %v2671
        %v2749 = vunpack.c.h.b16 %v2671
        %v2750 = vunpack.c.l.b16 %v2672
        %v2751 = vunpack.c.h.b16 %v2672
        %v2752 = vunpack.c.l.b16 %v2673
        %v2753 = vunpack.c.h.b16 %v2673
        %v2754 = vunpack.c.l.b16 %v2674
        %v2755 = vunpack.c.h.b16 %v2674
        %v2756 = vunpack.c.l.b16 %v2675
        %v2757 = vunpack.c.h.b16 %v2675
        %v2758 = vunpack.c.l.b16 %v2676
        %v2759 = vunpack.c.h.b16 %v2676
        %v2760 = vunpack.c.l.b16 %v2677
        %v2761 = vunpack.c.h.b16 %v2677
        %v2762 = vunpack.c.l.b16 %v2678
        %v2763 = vunpack.c.h.b16 %v2678
        %v2764 = vunpack.c.l.b16 %v2679
        %v2765 = vunpack.c.h.b16 %v2679
        %v2766 = vunpack.c.l.b16 %v2680
        %v2767 = vunpack.c.h.b16 %v2680
        %v2768 = vunpack.c.l.b16 %v2681
        %v2769 = vunpack.c.h.b16 %v2681
        %v2770 = vunpack.c.l.b16 %v2682
        %v2771 = vunpack.c.h.b16 %v2682
        %v2772 = vunpack.c.l.b16 %v2683
        %v2773 = vunpack.c.h.b16 %v2683
        %v2774 = vunpack.c.l.b16 %v2684
        %v2775 = vunpack.c.h.b16 %v2684
        %v2776 = vunpack.c.l.b16 %v2685
        %v2777 = vunpack.c.h.b16 %v2685
        %v2778 = vunpack.c.l.b16 %v2686
        %v2779 = vunpack.c.h.b16 %v2686
        %v2780 = vunpack.c.l.b16 %v2687
        %v2781 = vunpack.c.h.b16 %v2687
        %v2782 = vunpack.c.l.b16 %v2688
        %v2783 = vunpack.c.h.b16 %v2688
        %v2784 = vunpack.c.l.b16 %v2689
        %v2785 = vunpack.c.h.b16 %v2689
        %v2786 = vpack.c.b16 %v2724, %v2722
        %v2787 = vpack.c.b16 %v2725, %v2723
        %v2788 = vpack.c.b16 %v2728, %v2726
        %v2789 = vpack.c.b16 %v2729, %v2727
        %v2790 = vpack.c.b16 %v2732, %v2730
        %v2791 = vpack.c.b16 %v2733, %v2731
        %v2792 = vpack.c.b16 %v2736, %v2734
        %v2793 = vpack.c.b16 %v2737, %v2735
        %v2794 = vpack.c.b16 %v2740, %v2738
        %v2795 = vpack.c.b16 %v2741, %v2739
        %v2796 = vpack.c.b16 %v2744, %v2742
        %v2797 = vpack.c.b16 %v2745, %v2743
        %v2798 = vpack.c.b16 %v2748, %v2746
        %v2799 = vpack.c.b16 %v2749, %v2747
        %v2800 = vpack.c.b16 %v2752, %v2750
        %v2801 = vpack.c.b16 %v2753, %v2751
        %v2802 = vpack.c.b16 %v2756, %v2754
        %v2803 = vpack.c.b16 %v2757, %v2755
        %v2804 = vpack.c.b16 %v2760, %v2758
        %v2805 = vpack.c.b16 %v2761, %v2759
        %v2806 = vpack.c.b16 %v2764, %v2762
        %v2807 = vpack.c.b16 %v2765, %v2763
        %v2808 = vpack.c.b16 %v2768, %v2766
        %v2809 = vpack.c.b16 %v2769, %v2767
        %v2810 = vpack.c.b16 %v2772, %v2770
        %v2811 = vpack.c.b16 %v2773, %v2771
        %v2812 = vpack.c.b16 %v2776, %v2774
        %v2813 = vpack.c.b16 %v2777, %v2775
        %v2814 = vpack.c.b16 %v2780, %v2778
        %v2815 = vpack.c.b16 %v2781, %v2779
        %v2816 = vpack.c.b16 %v2784, %v2782
        %v2817 = vpack.c.b16 %v2785, %v2783
        %2850 = vmatpush.bf16.msra.mxu0 %v2800
        %2851 = vmatpush.bf16.msra.mxu0 %v2798
        %2852 = vmatpush.bf16.msra.mxu0 %v2796
        %2853 = vmatpush.bf16.msra.mxu0 %v2794
        %2854 = vmatpush.bf16.msra.mxu0 %v2792
        %2855 = vmatpush.bf16.msra.mxu0 %v2790
        %2856 = vmatpush.bf16.msra.mxu0 %v2788
        %2857 = vmatpush.bf16.msra.mxu0 %v2786
        %2858 = vmatmul.bf16.gmra.mxu0 %v2655
        %v2859 = vpop.f32.mrf.mxu0
        %v2860 = vadd.f32 0.0, %v2859
        %v2861 = vpop.f32.mrf.mxu0
        %2862 = vdwg.mxu0
        %2863 = vmatpush.bf16.msra.mxu0 %v2816
        %2864 = vmatpush.bf16.msra.mxu0 %v2814
        %2865 = vmatpush.bf16.msra.mxu0 %v2812
        %2866 = vmatpush.bf16.msra.mxu0 %v2810
        %2867 = vmatpush.bf16.msra.mxu0 %v2808
        %2868 = vmatpush.bf16.msra.mxu0 %v2806
        %2869 = vmatpush.bf16.msra.mxu0 %v2804
        %2870 = vmatpush.bf16.msra.mxu0 %v2802
        %2871 = vmatmul.bf16.gmra.mxu0 %v2656
        %v2872 = vpop.f32.mrf.mxu0
        %v2873 = vadd.f32 %v2860, %v2872
        %v2874 = vpop.f32.mrf.mxu0
        %2875 = vdwg.mxu0
        %2876 = vmatpush.bf16.msra.mxu0 %v2801
        %2877 = vmatpush.bf16.msra.mxu0 %v2799
        %2878 = vmatpush.bf16.msra.mxu0 %v2797
        %2879 = vmatpush.bf16.msra.mxu0 %v2795
        %2880 = vmatpush.bf16.msra.mxu0 %v2793
        %2881 = vmatpush.bf16.msra.mxu0 %v2791
        %2882 = vmatpush.bf16.msra.mxu0 %v2789
        %2883 = vmatpush.bf16.msra.mxu0 %v2787
        %2884 = vmatmul.bf16.gmra.mxu0 %v2655
        %v2885 = vpop.f32.mrf.mxu0
        %v2886 = vadd.f32 0.0, %v2885
        %v2887 = vpop.f32.mrf.mxu0
        %2888 = vdwg.mxu0
        %2889 = vmatpush.bf16.msra.mxu0 %v2817
        %2890 = vmatpush.bf16.msra.mxu0 %v2815
        %2891 = vmatpush.bf16.msra.mxu0 %v2813
        %2892 = vmatpush.bf16.msra.mxu0 %v2811
        %2893 = vmatpush.bf16.msra.mxu0 %v2809
        %2894 = vmatpush.bf16.msra.mxu0 %v2807
        %2895 = vmatpush.bf16.msra.mxu0 %v2805
        %2896 = vmatpush.bf16.msra.mxu0 %v2803
        %2897 = vmatmul.bf16.gmra.mxu0 %v2656
        %v2898 = vpop.f32.mrf.mxu0
        %v2899 = vadd.f32 %v2886, %v2898
        %v2900 = vpop.f32.mrf.mxu0
        %2901 = vdwg.mxu0
        %v2902 = vadd.f32 %v2617, %v2873
        %v2903 = vadd.f32 %v2618, %v2899
        %2904 = vst [vmem:[#allocation2] sm:$0xff] %v2902
        %2905 = vst [vmem:[#allocation2 + $0x8] sm:$0xff] %v2903
        %p2906 = scmp.eq.s32.totalorder %s36, 1
        // Predicated region
        $region93: #{tpu_custom_call.1} parent=55 // pred_check
          %p2907 = pneg %p2906
        $region94: #{tpu_custom_call.1} parent=55 // pred_check_branch
          %2909 = sbr.rel (%p2907) target = $region96
        $region95: #{tpu_custom_call.1} parent=55 // pred_region
          %v2910 = vld [vmem:[#allocation13] sm:$0x3]
          %v2912 = vperm.slane %v2910, 0
          %v2913 = vperm.slane %v2910, 1
          %v2916 = vadd.f32 %v2902, %v2912
          %v2917 = vadd.f32 %v2903, %v2913
          %v2918 = vmax.f32 %v2916, 0.0
          %v2919 = vmax.f32 %v2917, 0.0
          %v2920 = vld [vmem:[%s7] sm:$0xff]
          %v2921 = vld [vmem:[%s7 + $0x8] sm:$0xff]
          %v2922 = vld [vmem:[%s7 + $0x10] sm:$0xff]
          %v2923 = vld [vmem:[%s7 + $0x18] sm:$0xff]
          %v2924 = vld [vmem:[%s7 + $0x20] sm:$0xff]
          %v2925 = vld [vmem:[%s7 + $0x28] sm:$0xff]
          %v2926 = vld [vmem:[%s7 + $0x30] sm:$0xff]
          %v2927 = vld [vmem:[%s7 + $0x38] sm:$0xff]
          %v2928 = vld [vmem:[%s7 + $0x40] sm:$0xff]
          %v2929 = vld [vmem:[%s7 + $0x48] sm:$0xff]
          %v2930 = vld [vmem:[%s7 + $0x50] sm:$0xff]
          %v2931 = vld [vmem:[%s7 + $0x58] sm:$0xff]
          %v2932 = vld [vmem:[%s7 + $0x60] sm:$0xff]
          %v2933 = vld [vmem:[%s7 + $0x68] sm:$0xff]
          %v2934 = vld [vmem:[%s7 + $0x70] sm:$0xff]
          %v2935 = vld [vmem:[%s7 + $0x78] sm:$0xff]
          %v2936 = vld [vmem:[%s7 + $0x80] sm:$0xff]
          %v2937 = vld [vmem:[%s7 + $0x88] sm:$0xff]
          %v2938 = vld [vmem:[%s7 + $0x90] sm:$0xff]
          %v2939 = vld [vmem:[%s7 + $0x98] sm:$0xff]
          %v2940 = vld [vmem:[%s7 + $0xa0] sm:$0xff]
          %v2941 = vld [vmem:[%s7 + $0xa8] sm:$0xff]
          %v2942 = vld [vmem:[%s7 + $0xb0] sm:$0xff]
          %v2943 = vld [vmem:[%s7 + $0xb8] sm:$0xff]
          %v2944 = vld [vmem:[%s7 + $0xc0] sm:$0xff]
          %v2945 = vld [vmem:[%s7 + $0xc8] sm:$0xff]
          %v2946 = vld [vmem:[%s7 + $0xd0] sm:$0xff]
          %v2947 = vld [vmem:[%s7 + $0xd8] sm:$0xff]
          %v2948 = vld [vmem:[%s7 + $0xe0] sm:$0xff]
          %v2949 = vld [vmem:[%s7 + $0xe8] sm:$0xff]
          %v2950 = vld [vmem:[%s7 + $0xf0] sm:$0xff]
          %v2951 = vld [vmem:[%s7 + $0xf8] sm:$0xff]
          %v2952 = vld [vmem:[#allocation15] sm:$0x1]
          %v2954 = vperm.slane %v2952, 0
          %2956 = vmatpush.msra.mxu0 %v2935
          %2957 = vmatpush.msra.mxu0 %v2934
          %2958 = vmatpush.msra.mxu0 %v2933
          %2959 = vmatpush.msra.mxu0 %v2932
          %2960 = vmatpush.msra.mxu0 %v2931
          %2961 = vmatpush.msra.mxu0 %v2930
          %2962 = vmatpush.msra.mxu0 %v2929
          %2963 = vmatpush.msra.mxu0 %v2928
          %2964 = vmatpush.msra.mxu0 %v2927
          %2965 = vmatpush.msra.mxu0 %v2926
          %2966 = vmatpush.msra.mxu0 %v2925
          %2967 = vmatpush.msra.mxu0 %v2924
          %2968 = vmatpush.msra.mxu0 %v2923
          %2969 = vmatpush.msra.mxu0 %v2922
          %2970 = vmatpush.msra.mxu0 %v2921
          %2971 = vmatpush.msra.mxu0 %v2920
          %2972 = vmatmul.f32.gmra.mxu0 %v2918
          %v2973 = vpop.f32.mrf.mxu0
          %v2974 = vadd.f32 %v2954, %v2973
          %2975 = vdwg.mxu0
          %2976 = vmatpush.msra.mxu0 %v2951
          %2977 = vmatpush.msra.mxu0 %v2950
          %2978 = vmatpush.msra.mxu0 %v2949
          %2979 = vmatpush.msra.mxu0 %v2948
          %2980 = vmatpush.msra.mxu0 %v2947
          %2981 = vmatpush.msra.mxu0 %v2946
          %2982 = vmatpush.msra.mxu0 %v2945
          %2983 = vmatpush.msra.mxu0 %v2944
          %2984 = vmatpush.msra.mxu0 %v2943
          %2985 = vmatpush.msra.mxu0 %v2942
          %2986 = vmatpush.msra.mxu0 %v2941
          %2987 = vmatpush.msra.mxu0 %v2940
          %2988 = vmatpush.msra.mxu0 %v2939
          %2989 = vmatpush.msra.mxu0 %v2938
          %2990 = vmatpush.msra.mxu0 %v2937
          %2991 = vmatpush.msra.mxu0 %v2936
          %2992 = vmatmul.f32.gmra.mxu0 %v2919
          %v2993 = vpop.f32.mrf.mxu0
          %v2994 = vadd.f32 %v2974, %v2993
          %2995 = vdwg.mxu0
          %vm2996 = vcmask 15360
          %2997 = vst.msk [vmem:[%s608] sm:$0xff] %vm2996, %v2994
        $region96: #{tpu_custom_call.1} parent=55 // pred_fallthru
          _
        %p2998 = scmp.lt.s32.totalorder %s35, 0
        %s2999 = scalar_select %p2998, %s35, 0
        %s3000 = smul.addr %s2999, 8
        %s3001 = scalar_lea.vmem %s9, %s3000
        // Predicated region
        $region97: #{tpu_custom_call.1} parent=55 // pred_check
          %p3002 = pneg %p283
        $region98: #{tpu_custom_call.1} parent=55 // pred_check_branch
          %3004 = sbr.rel (%p3002) target = $region100
        $region99: #{tpu_custom_call.1} parent=55 // pred_region
          _
        $region100: #{tpu_custom_call.1} parent=55 // pred_fallthru
          _
        // Predicated region
        $region101: #{tpu_custom_call.1} parent=55 // pred_check
          %p3005 = pneg %p283
        $region102: #{tpu_custom_call.1} parent=55 // pred_check_branch
          %3007 = sbr.rel (%p3005) target = $region104
        $region103: #{tpu_custom_call.1} parent=55 // pred_region
          %p3008 = scmp.lt.s32.totalorder %s35, 0
          %s3009 = scalar_select %p3008, %s35, 0
          %s3010 = smul.addr %s3009, 8
          %s3011 = scalar_lea.vmem %s9, %s3010
        $region104: #{tpu_custom_call.1} parent=55 // pred_fallthru
          _
      $region56: #{tpu_custom_call.1} parent=5 // pred_fallthru
        _
      %p3012 = scmp.le.s32.totalorder 2, %s26
      // Predicated region
      $region105: #{tpu_custom_call.1} parent=5 // pred_check
        %p3013 = pneg %p3012
      $region106: #{tpu_custom_call.1} parent=5 // pred_check_branch
        %3015 = sbr.rel (%p3013) target = $region108
      $region107: #{tpu_custom_call.1} parent=5 // pred_region
        %s3016 = ssub.s32 %s26, 2
      $region108: #{tpu_custom_call.1} parent=5 // pred_fallthru
        _
    $region6: #{tpu_custom_call.1} parent=1 // loop_footer
      %s30 = sadd.s32 1, %s26
    $region7: #{tpu_custom_call.1} parent=1 // loop_footer_branch
      %25 = sbr.rel target = $region3
    $region8: #{tpu_custom_call.1} parent=1 // loop_exit
      _
    %3017 = vsyncpa [#allocation4], 1
    %s3018 = scalar_lea.sflag [#allocation4], 1
    %3019 = vsyncpa %s3018, 1
    %3020 = vsyncpa [#allocation8], 1
    %s3021 = scalar_lea.sflag [#allocation8], 1
    %3022 = vsyncpa %s3021, 1
    %3023 = vsyncpa [#allocation11], 1
    %s3024 = scalar_lea.sflag [#allocation11], 1
    %3025 = vsyncpa %s3024, 1
    %3026 = vsyncpa [#allocation14], 1
    %3027 = vsyncpa [#allocation5], 1
    %s3028 = scalar_lea.sflag [#allocation5], 1
    %3029 = vsyncpa %s3028, 1

</llo_original>
